<compile_context>
chip_gen: v6e
topology: v6e:2x2x1
jax: 0.10.0
libtpu: 0.0.40
codegen_flags: <defaults>
</compile_context>

<pallas_src>
import math

import numpy as np

import jax
import jax.numpy as jnp
from jax import lax
from jax.experimental import pallas as pl
from jax.experimental.pallas import tpu as pltpu

# ---------------- configuration (small, consistent with the module) ----------------
BATCH = 2
OBS_LEN = 8          # cfg['observation_len']
PRED_LEN = 12        # cfg['prediction_len']
D_MODEL = 32         # hid_dim (tf d_model)
N_HEAD = 2
HEAD_DIM = D_MODEL // N_HEAD
FF_DIM = 64          # transformer feed-forward dim
NOISE_DIM = 4        # mlp_decoder_context noise_dim
CTX_DIM = D_MODEL - NOISE_DIM
DEC_HID = 64         # MLPDecoder hidden dim
Z_OUT = 2 * OBS_LEN * NOISE_DIM   # merged z_mu | z_var output width (64)
LN_EPS = 1e-5


# --------------------------- weight-slab layout (static) ----------------------------
def _build_layout():
    """Row layout of the single (R, 128) f32 weight slab; every entry is 8-row aligned."""
    layout = {}
    cur = 0

    def add(name, rows, cols):
        nonlocal cur
        layout[name] = (cur, rows, cols)
        cur += ((rows + 7) // 8) * 8

    for pfx, seq in (("x", OBS_LEN), ("y", PRED_LEN)):
        add(pfx + "_pe", seq * BATCH, D_MODEL)      # bias + positional enc, interleaved
        add(pfx + "_we", 2, D_MODEL)                # Linear(2, D) weight
        add(pfx + "_wqkv", D_MODEL, 3 * D_MODEL)    # fused QKV weight
        add(pfx + "_bqkv", 1, 3 * D_MODEL)
        add(pfx + "_wo", D_MODEL, D_MODEL)
        add(pfx + "_bo", 1, D_MODEL)
        add(pfx + "_ln", 4, D_MODEL)                # ln1_w, ln1_b, ln2_w, ln2_b
        add(pfx + "_w1", D_MODEL, FF_DIM)
        add(pfx + "_b1", 1, FF_DIM)
        add(pfx + "_w2", FF_DIM, D_MODEL)
        add(pfx + "_b2", 1, D_MODEL)
    add("zw", PRED_LEN * D_MODEL, Z_OUT)            # [z_mu_w | z_var_w]
    add("zb", 1, Z_OUT)
    add("ctx_w", D_MODEL, D_MODEL)                  # padded to 32 out-cols (last 4 zero)
    add("ctx_b", 1, D_MODEL)
    add("dw1", OBS_LEN * D_MODEL, DEC_HID)          # decoder layer-1 weight, as-is
    add("dw1n", OBS_LEN * NOISE_DIM, DEC_HID)       # its noise-feature rows, regrouped
    add("db1", 1, DEC_HID)
    add("dw2", DEC_HID, 32)                         # padded to 32 out-cols (last 8 zero)
    add("db2", 1, 32)
    return layout, cur


_LAYOUT, _SLAB_ROWS = _build_layout()


# ------------------------------ in-kernel helpers -----------------------------------
def _slab_get(w_ref, name):
    off, rows, cols = _LAYOUT[name]
    return w_ref[off:off + rows, 0:cols]


def _tree_sum(terms):
    """Pairwise (tree) reduction of a Python list of same-shaped values."""
    ts = list(terms)
    while len(ts) > 1:
        nxt = [ts[i] + ts[i + 1] for i in range(0, len(ts) - 1, 2)]
        if len(ts) % 2:
            nxt.append(ts[-1])
        ts = nxt
    return ts[0]


def _layer_norm(z, w, b):
    mu = jnp.mean(z, axis=-1, keepdims=True)
    var = jnp.mean((z - mu) ** 2, axis=-1, keepdims=True)
    return (z - mu) * lax.rsqrt(var + LN_EPS) * w + b


def _tf_encoder(traj, w_ref, pfx):
    """Linear(2->D) embedding (+bias+PE pre-folded) + one post-norm encoder layer.

    traj: (S*B, 2), rows interleaved time-major / batch-minor (r = t*B + b).
    Batch isolation in self-attention is enforced with a block-diagonal (same-batch) mask.
    TODO(synk): dropout inside the TransformerEncoderLayer is omitted (eval-mode identity).
    """
    n = traj.shape[0]
    we = _slab_get(w_ref, pfx + "_we")                                   # (2, D)
    pe = _slab_get(w_ref, pfx + "_pe")                                   # (S*B, D)
    # depth-2 contraction on the VPU (two broadcasted FMAs) instead of a padded MXU matmul
    x = traj[:, 0:1] * we[0:1, :] + traj[:, 1:2] * we[1:2, :] + pe       # (S*B, D)

    # fused QKV: one (N, D) @ (D, 3D) matmul per encoder (was 6 per-head matmuls)
    qkv = (jnp.dot(x, _slab_get(w_ref, pfx + "_wqkv"),
                   preferred_element_type=jnp.float32)
           + _slab_get(w_ref, pfx + "_bqkv"))                            # (N, 3D)

    # same-batch attention mask for the interleaved stacking (same batch <=> same parity)
    rid = lax.broadcasted_iota(jnp.int32, (n, n), 0)
    cid = lax.broadcasted_iota(jnp.int32, (n, n), 1)
    mask = jnp.where((rid % BATCH) == (cid % BATCH), 0.0, -1e30)         # (N, N)

    scale = 1.0 / math.sqrt(HEAD_DIM)
    heads = []
    for h in range(N_HEAD):                                              # static head loop
        qh = qkv[:, h * HEAD_DIM:(h + 1) * HEAD_DIM]
        kh = qkv[:, D_MODEL + h * HEAD_DIM:D_MODEL + (h + 1) * HEAD_DIM]
        vh = qkv[:, 2 * D_MODEL + h * HEAD_DIM:2 * D_MODEL + (h + 1) * HEAD_DIM]
        s = lax.dot_general(qh, kh, (((1,), (1,)), ((), ())),
                            preferred_element_type=jnp.float32) * scale + mask
        s = s - jnp.max(s, axis=-1, keepdims=True)
        p = jnp.exp(s)
        p = p * pl.reciprocal(jnp.sum(p, axis=-1, keepdims=True), approx=True)
        heads.append(jnp.dot(p, vh, preferred_element_type=jnp.float32))  # (N, HD)
    attn = (jnp.dot(jnp.concatenate(heads, axis=-1), _slab_get(w_ref, pfx + "_wo"),
                    preferred_element_type=jnp.float32)
            + _slab_get(w_ref, pfx + "_bo"))                             # (N, D)

    ln = _slab_get(w_ref, pfx + "_ln")                                   # (4, D)
    y = _layer_norm(x + attn, ln[0:1, :], ln[1:2, :])
    h1 = jnp.maximum(
        jnp.dot(y, _slab_get(w_ref, pfx + "_w1"), preferred_element_type=jnp.float32)
        + _slab_get(w_ref, pfx + "_b1"), 0.0)
    ff = (jnp.dot(h1, _slab_get(w_ref, pfx + "_w2"), preferred_element_type=jnp.float32)
          + _slab_get(w_ref, pfx + "_b2"))
    return _layer_norm(y + ff, ln[2:3, :], ln[3:4, :])


# ------------------------------ fused forward kernel --------------------------------
def _vae_fwd_kernel(tx_ref, ty_ref, eps_ref, w_ref, out_ref):
    enc_x = _tf_encoder(tx_ref[...], w_ref, "x")                         # (OBS*B, D)
    enc_y = _tf_encoder(ty_ref[...], w_ref, "y")                         # (PRED*B, D)

    # ---- sample_noise: z = flatten(enc_y) @ [Wmu|Wvar] + b, as a TREE of independent
    # per-timestep (B, D) @ (D, 64) partials (no 12-deep serial matmul->add chain, no
    # in-kernel reshape); reparameterization fused as a VPU/EUP epilogue.
    zw_off = _LAYOUT["zw"][0]
    zterms = []
    for t in range(PRED_LEN):
        lhs = enc_y[t * BATCH:(t + 1) * BATCH, :]                        # (B, D)
        rhs = w_ref[zw_off + t * D_MODEL: zw_off + (t + 1) * D_MODEL, 0:Z_OUT]
        zterms.append(jnp.dot(lhs, rhs, preferred_element_type=jnp.float32))
    z = _tree_sum(zterms) + _slab_get(w_ref, "zb")                       # (B, 64)
    mean_flat = z[:, :OBS_LEN * NOISE_DIM]                               # (B, 32)
    logvar_flat = z[:, OBS_LEN * NOISE_DIM:]                             # (B, 32)
    noise_flat = mean_flat + jnp.exp(logvar_flat * 0.5) * eps_ref[...]   # (B, 32)

    # ---- add_noise: mlp_decoder_context (Linear + ReLU), output zero-padded to D lanes
    # so the decoder can reuse the full per-timestep dec_w1 blocks unchanged.
    # TODO(synk): dropout in mlp_decoder_context / MLPDecoder omitted (eval-mode identity).
    ctx = jnp.maximum(
        jnp.dot(enc_x, _slab_get(w_ref, "ctx_w"), preferred_element_type=jnp.float32)
        + _slab_get(w_ref, "ctx_b"), 0.0)                                # (OBS*B, D)

    # ---- MLPDecoder layer 1: tree of per-timestep (B, D) @ (D, 64) partials + noise slab.
    dw1_off = _LAYOUT["dw1"][0]
    hterms = [jnp.dot(noise_flat, _slab_get(w_ref, "dw1n"),
                      preferred_element_type=jnp.float32)]               # (B, 64)
    for i in range(OBS_LEN):
        lhs = ctx[i * BATCH:(i + 1) * BATCH, :]                          # (B, D)
        rhs = w_ref[dw1_off + i * D_MODEL: dw1_off + (i + 1) * D_MODEL, 0:DEC_HID]
        hterms.append(jnp.dot(lhs, rhs, preferred_element_type=jnp.float32))
    h1 = jnp.maximum(_tree_sum(hterms) + _slab_get(w_ref, "db1"), 0.0)   # (B, 64)
    preds = (jnp.dot(h1, _slab_get(w_ref, "dw2"), preferred_element_type=jnp.float32)
             + _slab_get(w_ref, "db2"))                                  # (B, 32), lanes 24:32 == 0

    # ---- single lane-dense 128-wide store: [mean | logvar | noise | preds | zero-pad]
    out_ref[...] = jnp.concatenate([z, noise_flat, preds], axis=-1)      # (B, 128)


# --------------------------------- wrapper -------------------------------------------
def vae_forward(weight_slab, x, y, eps, scaler=None):
    """Mirrors VariationalAutoEncoder.forward in training mode (y is not None)."""
    traj_x = x["trajectories"]                       # [B, OBS, 2]
    traj_y = y["trajectories"]                       # [B, PRED, 2]
    b = traj_x.shape[0]
    assert b == BATCH, "weight slab (folded PE) is packed for BATCH"

    # time-major / batch-minor interleave so per-timestep rows are contiguous in-kernel
    tx = jnp.transpose(traj_x, (1, 0, 2)).reshape(OBS_LEN * b, 2)
    ty = jnp.transpose(traj_y, (1, 0, 2)).reshape(PRED_LEN * b, 2)
    eps2 = eps.reshape(b, OBS_LEN * NOISE_DIM)

    vmem_spec = pl.BlockSpec(memory_space=pltpu.MemorySpace.VMEM)
    out = pl.pallas_call(
        _vae_fwd_kernel,
        out_shape=jax.ShapeDtypeStruct((b, 128), jnp.float32),
        in_specs=[vmem_spec, vmem_spec, vmem_spec, vmem_spec],
        out_specs=vmem_spec,
    )(tx, ty, eps2, weight_slab)

    zdim = OBS_LEN * NOISE_DIM
    mean_ = out[:, 0:zdim].reshape(b, OBS_LEN, NOISE_DIM)
    log_var = out[:, zdim:2 * zdim].reshape(b, OBS_LEN, NOISE_DIM)
    random_noise = out[:, 2 * zdim:3 * zdim].reshape(b, OBS_LEN, NOISE_DIM)
    preds = out[:, 3 * zdim:3 * zdim + PRED_LEN * 2].reshape(b, PRED_LEN, 2)
    # torch does random_noise.squeeze(); for B > 1 that is a no-op, so keep the batch dim.
    return preds, mean_, log_var, random_noise


# ------------------------------ parameters / packing ---------------------------------
def sinusoidal_pe(seq_len, d_model):
    pos = jnp.arange(seq_len, dtype=jnp.float32)[:, None]
    i = jnp.arange(0, d_model, 2, dtype=jnp.float32)
    div = jnp.exp(-math.log(10000.0) * i / d_model)
    pe = jnp.zeros((seq_len, d_model), jnp.float32)
    pe = pe.at[:, 0::2].set(jnp.sin(pos * div))
    pe = pe.at[:, 1::2].set(jnp.cos(pos * div))
    return pe


def init_params(key):
    def lin(k, fan_in, fan_out):
        k1, k2 = jax.random.split(k)
        bound = 1.0 / math.sqrt(fan_in)
        w = jax.random.uniform(k1, (fan_in, fan_out), jnp.float32, -bound, bound)
        b = jax.random.uniform(k2, (fan_out,), jnp.float32, -bound, bound)
        return w, b

    def tf_params(k):
        ks = jax.random.split(k, 5)
        w_emb, b_emb = lin(ks[0], 2, D_MODEL)
        wqkv, bqkv = lin(ks[1], D_MODEL, 3 * D_MODEL)
        wo, bo = lin(ks[2], D_MODEL, D_MODEL)
        w1, b1 = lin(ks[3], D_MODEL, FF_DIM)
        w2, b2 = lin(ks[4], FF_DIM, D_MODEL)
        return dict(w_emb=w_emb, b_emb=b_emb, wqkv=wqkv, bqkv=bqkv, wo=wo, bo=bo,
                    w1=w1, b1=b1, w2=w2, b2=b2,
                    ln1_w=jnp.ones((D_MODEL,)), ln1_b=jnp.zeros((D_MODEL,)),
                    ln2_w=jnp.ones((D_MODEL,)), ln2_b=jnp.zeros((D_MODEL,)),
                    pe=sinusoidal_pe(max(OBS_LEN, PRED_LEN), D_MODEL))

    ks = jax.random.split(key, 8)
    params = {"encoder": tf_params(ks[0]), "encoder_kl": tf_params(ks[1])}
    params["z_mu_w"], params["z_mu_b"] = lin(ks[2], PRED_LEN * D_MODEL, OBS_LEN * NOISE_DIM)
    params["z_var_w"], params["z_var_b"] = lin(ks[3], PRED_LEN * D_MODEL, OBS_LEN * NOISE_DIM)
    params["ctx_w"], params["ctx_b"] = lin(ks[4], D_MODEL, CTX_DIM)
    params["dec_w1"], params["dec_b1"] = lin(ks[5], OBS_LEN * D_MODEL, DEC_HID)
    params["dec_w2"], params["dec_b2"] = lin(ks[6], DEC_HID, PRED_LEN * 2)
    # TODO(synk): reducer_kl (Linear(pred_len*noise, obs_len*noise)) is defined in __init__
    # but never used in forward(); omitted.
    return params


def pack_params(params):
    """One-time host-side packing of every weight into a single lane-dense (R, 128) slab."""
    slab = np.zeros((_SLAB_ROWS, 128), np.float32)

    def put(name, arr):
        arr = np.asarray(arr, np.float32)
        off, rows, cols = _LAYOUT[name]
        assert arr.shape == (rows, cols), (name, arr.shape, (rows, cols))
        slab[off:off + rows, 0:cols] = arr

    for pfx, key, seq in (("x", "encoder", OBS_LEN), ("y", "encoder_kl", PRED_LEN)):
        p = params[key]
        pe = np.asarray(p["pe"])[:seq]                                   # (S, D)
        put(pfx + "_pe", np.repeat(pe, BATCH, axis=0) + np.asarray(p["b_emb"])[None, :])
        put(pfx + "_we", p["w_emb"])
        put(pfx + "_wqkv", p["wqkv"])
        put(pfx + "_bqkv", np.asarray(p["bqkv"]).reshape(1, -1))
        put(pfx + "_wo", p["wo"])
        put(pfx + "_bo", np.asarray(p["bo"]).reshape(1, -1))
        put(pfx + "_ln", np.stack([np.asarray(p["ln1_w"]), np.asarray(p["ln1_b"]),
                                   np.asarray(p["ln2_w"]), np.asarray(p["ln2_b"])]))
        put(pfx + "_w1", p["w1"])
        put(pfx + "_b1", np.asarray(p["b1"]).reshape(1, -1))
        put(pfx + "_w2", p["w2"])
        put(pfx + "_b2", np.asarray(p["b2"]).reshape(1, -1))

    put("zw", np.concatenate([np.asarray(params["z_mu_w"]),
                              np.asarray(params["z_var_w"])], axis=1))
    put("zb", np.concatenate([np.asarray(params["z_mu_b"]),
                              np.asarray(params["z_var_b"])]).reshape(1, -1))

    ctx_w = np.zeros((D_MODEL, D_MODEL), np.float32)
    ctx_w[:, :CTX_DIM] = np.asarray(params["ctx_w"])
    put("ctx_w", ctx_w)
    ctx_b = np.zeros((1, D_MODEL), np.float32)
    ctx_b[0, :CTX_DIM] = np.asarray(params["ctx_b"])
    put("ctx_b", ctx_b)

    dec_w1 = np.asarray(params["dec_w1"])                                # (OBS*D, DEC_HID)
    put("dw1", dec_w1)
    put("dw1n", dec_w1.reshape(OBS_LEN, D_MODEL, DEC_HID)[:, CTX_DIM:, :]
        .reshape(OBS_LEN * NOISE_DIM, DEC_HID))
    put("db1", np.asarray(params["dec_b1"]).reshape(1, -1))
    dw2 = np.zeros((DEC_HID, 32), np.float32)
    dw2[:, :PRED_LEN * 2] = np.asarray(params["dec_w2"])
    put("dw2", dw2)
    db2 = np.zeros((1, 32), np.float32)
    db2[0, :PRED_LEN * 2] = np.asarray(params["dec_b2"])
    put("db2", db2)

    return jnp.asarray(slab)


# ------------------------------- pure-JAX reference ----------------------------------
def reference_forward(params, traj_x, traj_y, eps):
    def layer_norm(z, w, b):
        m = jnp.mean(z, axis=-1, keepdims=True)
        v = jnp.mean((z - m) ** 2, axis=-1, keepdims=True)
        return (z - m) / jnp.sqrt(v + LN_EPS) * w + b

    def encoder(p, traj, seq):
        xx = traj @ p["w_emb"] + p["b_emb"] + p["pe"][:seq]
        qkv = xx @ p["wqkv"] + p["bqkv"]
        outs = []
        for h in range(N_HEAD):
            q = qkv[..., h * HEAD_DIM:(h + 1) * HEAD_DIM]
            k = qkv[..., D_MODEL + h * HEAD_DIM:D_MODEL + (h + 1) * HEAD_DIM]
            v = qkv[..., 2 * D_MODEL + h * HEAD_DIM:2 * D_MODEL + (h + 1) * HEAD_DIM]
            s = jnp.einsum("bqd,bkd->bqk", q, k) / math.sqrt(HEAD_DIM)
            a = jax.nn.softmax(s, axis=-1)
            outs.append(jnp.einsum("bqk,bkd->bqd", a, v))
        attn = jnp.concatenate(outs, axis=-1) @ p["wo"] + p["bo"]
        yy = layer_norm(xx + attn, p["ln1_w"], p["ln1_b"])
        ff = jax.nn.relu(yy @ p["w1"] + p["b1"]) @ p["w2"] + p["b2"]
        return layer_norm(yy + ff, p["ln2_w"], p["ln2_b"])

    b = traj_x.shape[0]
    enc_x = encoder(params["encoder"], traj_x, OBS_LEN)
    enc_y = encoder(params["encoder_kl"], traj_y, PRED_LEN)
    flat_y = enc_y.reshape(b, -1)
    mean_ = flat_y @ params["z_mu_w"] + params["z_mu_b"]
    log_var = flat_y @ params["z_var_w"] + params["z_var_b"]
    noise = mean_ + jnp.exp(log_var * 0.5) * eps.reshape(b, -1)
    ctx = jax.nn.relu(enc_x @ params["ctx_w"] + params["ctx_b"])
    dec_in = jnp.concatenate([ctx, noise.reshape(b, OBS_LEN, NOISE_DIM)],
                             axis=-1).reshape(b, -1)
    h1 = jax.nn.relu(dec_in @ params["dec_w1"] + params["dec_b1"])
    preds = h1 @ params["dec_w2"] + params["dec_b2"]
    return (preds.reshape(b, PRED_LEN, 2),
            mean_.reshape(b, OBS_LEN, NOISE_DIM),
            log_var.reshape(b, OBS_LEN, NOISE_DIM),
            noise.reshape(b, OBS_LEN, NOISE_DIM))


if __name__ == "__main__":
    key = jax.random.PRNGKey(0)
    kp, kx, ky, ke = jax.random.split(key, 4)
    params = init_params(kp)
    weight_slab = pack_params(params)               # one-time host-side weight packing

    x = {"trajectories": jax.random.normal(kx, (BATCH, OBS_LEN, 2), jnp.float32)}
    y = {"trajectories": jax.random.normal(ky, (BATCH, PRED_LEN, 2), jnp.float32)}
    eps = jax.random.normal(ke, (BATCH, OBS_LEN, NOISE_DIM), jnp.float32)

    fwd = jax.jit(vae_forward)
    preds, mean_, log_var, noise = fwd(weight_slab, x, y, eps)
    jax.block_until_ready((preds, mean_, log_var, noise))

    assert preds.shape == (BATCH, PRED_LEN, 2)
    assert mean_.shape == (BATCH, OBS_LEN, NOISE_DIM)
    assert log_var.shape == (BATCH, OBS_LEN, NOISE_DIM)
    assert noise.shape == (BATCH, OBS_LEN, NOISE_DIM)
    assert bool(jnp.all(jnp.isfinite(preds)))

    # correctness vs pure-JAX reference (loose tol: approx softmax reciprocal + fp reorder)
    r_preds, r_mean, r_logv, r_noise = reference_forward(
        params, x["trajectories"], y["trajectories"], eps)
    for got, ref in ((preds, r_preds), (mean_, r_mean), (log_var, r_logv), (noise, r_noise)):
        err = float(np.max(np.abs(np.asarray(got) - np.asarray(ref))))
        assert np.allclose(np.asarray(got), np.asarray(ref), rtol=3e-2, atol=3e-2), err

    print("KERNEL_OK")
</pallas_src>

<mosaic_0001>
module attributes {stable_mosaic.version = 11 : i64} {
  func.func @_vae_fwd_kernel(%arg0: memref<16x2xf32, #tpu.memory_space<vmem>>, %arg1: memref<24x2xf32, #tpu.memory_space<vmem>>, %arg2: memref<2x32xf32, #tpu.memory_space<vmem>>, %arg3: memref<1256x128xf32, #tpu.memory_space<vmem>>, %arg4: memref<2x128xf32, #tpu.memory_space<vmem>>) attributes {dimension_semantics = [], scalar_prefetch = 0 : i64, scratch_operands = 0 : i64, tpu.core_type = #tpu.core_type<tc>} {
    %c0 = arith.constant 0 : index
    %c0_0 = arith.constant 0 : index
    %0 = vector.load %arg0[%c0, %c0_0] : memref<16x2xf32, #tpu.memory_space<vmem>>, vector<16x2xf32>
    %c16 = arith.constant 16 : index
    %c0_1 = arith.constant 0 : index
    %1 = vector.load %arg3[%c16, %c0_1] : memref<1256x128xf32, #tpu.memory_space<vmem>>, vector<2x32xf32>
    %c0_2 = arith.constant 0 : index
    %c0_3 = arith.constant 0 : index
    %2 = vector.load %arg3[%c0_2, %c0_3] : memref<1256x128xf32, #tpu.memory_space<vmem>>, vector<16x32xf32>
    %3 = vector.extract_strided_slice %0 {offsets = [0, 0], sizes = [16, 1], strides = [1, 1]} : vector<16x2xf32> to vector<16x1xf32>
    %4 = vector.extract_strided_slice %1 {offsets = [0, 0], sizes = [1, 32], strides = [1, 1]} : vector<2x32xf32> to vector<1x32xf32>
    %5 = vector.broadcast %3 : vector<16x1xf32> to vector<16x32xf32>
    %6 = vector.broadcast %4 : vector<1x32xf32> to vector<16x32xf32>
    %7 = arith.mulf %5, %6 : vector<16x32xf32>
    %8 = vector.extract_strided_slice %0 {offsets = [0, 1], sizes = [16, 1], strides = [1, 1]} : vector<16x2xf32> to vector<16x1xf32>
    %9 = vector.extract_strided_slice %1 {offsets = [1, 0], sizes = [1, 32], strides = [1, 1]} : vector<2x32xf32> to vector<1x32xf32>
    %10 = vector.broadcast %8 : vector<16x1xf32> to vector<16x32xf32>
    %11 = vector.broadcast %9 : vector<1x32xf32> to vector<16x32xf32>
    %12 = arith.mulf %10, %11 : vector<16x32xf32>
    %13 = arith.addf %7, %12 : vector<16x32xf32>
    %14 = arith.addf %13, %2 : vector<16x32xf32>
    %c24 = arith.constant 24 : index
    %c0_4 = arith.constant 0 : index
    %15 = vector.load %arg3[%c24, %c0_4] : memref<1256x128xf32, #tpu.memory_space<vmem>>, vector<32x96xf32>
    %cst = arith.constant dense<0.000000e+00> : vector<16x96xf32>
    %16 = tpu.matmul %14, %15, %cst {dimension_numbers = #tpu.dot_dimension_numbers<[1], [0], [0], [1], [0, 0, 1, 1], [], []>} : vector<16x32xf32>, vector<32x96xf32>, vector<16x96xf32> -> vector<16x96xf32>
    %c56 = arith.constant 56 : index
    %c0_5 = arith.constant 0 : index
    %17 = vector.load %arg3[%c56, %c0_5] : memref<1256x128xf32, #tpu.memory_space<vmem>>, vector<1x96xf32>
    %18 = vector.broadcast %17 : vector<1x96xf32> to vector<16x96xf32>
    %19 = arith.addf %16, %18 : vector<16x96xf32>
    %20 = tpu.iota {dimensions = array<i32: 0>} : vector<16x16xi32>
    %21 = tpu.iota {dimensions = array<i32: 1>} : vector<16x16xi32>
    %c2_i32 = arith.constant 2 : i32
    %c0_i32 = arith.constant 0 : i32
    %22 = arith.cmpi eq, %c2_i32, %c0_i32 : i32
    %c1_i32 = arith.constant 1 : i32
    %23 = arith.select %22, %c1_i32, %c2_i32 : i32
    %24 = vector.broadcast %23 : i32 to vector<16x16xi32>
    %25 = arith.remsi %20, %24 : vector<16x16xi32>
    %c0_i32_6 = arith.constant 0 : i32
    %26 = vector.broadcast %c0_i32_6 : i32 to vector<16x16xi32>
    %27 = arith.cmpi ne, %25, %26 : vector<16x16xi32>
    %c0_i32_7 = arith.constant 0 : i32
    %28 = vector.broadcast %c0_i32_7 : i32 to vector<16x16xi32>
    %29 = arith.cmpi slt, %25, %28 : vector<16x16xi32>
    %c0_i32_8 = arith.constant 0 : i32
    %30 = arith.cmpi slt, %23, %c0_i32_8 : i32
    %31 = vector.broadcast %30 : i1 to vector<16x16xi1>
    %32 = vector.broadcast %31 : vector<16x16xi1> to vector<16x16xi1>
    %33 = arith.xori %29, %32 : vector<16x16xi1>
    %34 = arith.andi %33, %27 : vector<16x16xi1>
    %35 = vector.broadcast %23 : i32 to vector<16x16xi32>
    %36 = arith.addi %25, %35 : vector<16x16xi32>
    %37 = arith.select %34, %36, %25 : vector<16x16xi1>, vector<16x16xi32>
    %c2_i32_9 = arith.constant 2 : i32
    %c0_i32_10 = arith.constant 0 : i32
    %38 = arith.cmpi eq, %c2_i32_9, %c0_i32_10 : i32
    %c1_i32_11 = arith.constant 1 : i32
    %39 = arith.select %38, %c1_i32_11, %c2_i32_9 : i32
    %40 = vector.broadcast %39 : i32 to vector<16x16xi32>
    %41 = arith.remsi %21, %40 : vector<16x16xi32>
    %c0_i32_12 = arith.constant 0 : i32
    %42 = vector.broadcast %c0_i32_12 : i32 to vector<16x16xi32>
    %43 = arith.cmpi ne, %41, %42 : vector<16x16xi32>
    %c0_i32_13 = arith.constant 0 : i32
    %44 = vector.broadcast %c0_i32_13 : i32 to vector<16x16xi32>
    %45 = arith.cmpi slt, %41, %44 : vector<16x16xi32>
    %c0_i32_14 = arith.constant 0 : i32
    %46 = arith.cmpi slt, %39, %c0_i32_14 : i32
    %47 = vector.broadcast %46 : i1 to vector<16x16xi1>
    %48 = vector.broadcast %47 : vector<16x16xi1> to vector<16x16xi1>
    %49 = arith.xori %45, %48 : vector<16x16xi1>
    %50 = arith.andi %49, %43 : vector<16x16xi1>
    %51 = vector.broadcast %39 : i32 to vector<16x16xi32>
    %52 = arith.addi %41, %51 : vector<16x16xi32>
    %53 = arith.select %50, %52, %41 : vector<16x16xi1>, vector<16x16xi32>
    %54 = arith.cmpi eq, %37, %53 : vector<16x16xi32>
    %cst_15 = arith.constant 0.000000e+00 : f32
    %cst_16 = arith.constant -1.000000e+30 : f32
    %55 = vector.broadcast %cst_15 : f32 to vector<16x16xf32>
    %56 = vector.broadcast %cst_16 : f32 to vector<16x16xf32>
    %57 = arith.select %54, %55, %56 : vector<16x16xi1>, vector<16x16xf32>
    %58 = vector.extract_strided_slice %19 {offsets = [0, 0], sizes = [16, 16], strides = [1, 1]} : vector<16x96xf32> to vector<16x16xf32>
    %59 = vector.extract_strided_slice %19 {offsets = [0, 32], sizes = [16, 16], strides = [1, 1]} : vector<16x96xf32> to vector<16x16xf32>
    %60 = vector.extract_strided_slice %19 {offsets = [0, 64], sizes = [16, 16], strides = [1, 1]} : vector<16x96xf32> to vector<16x16xf32>
    %cst_17 = arith.constant dense<0.000000e+00> : vector<16x16xf32>
    %61 = tpu.matmul %58, %59, %cst_17 {dimension_numbers = #tpu.dot_dimension_numbers<[1], [1], [0], [0], [0, 0, 1, 0], [], []>} : vector<16x16xf32>, vector<16x16xf32>, vector<16x16xf32> -> vector<16x16xf32>
    %cst_18 = arith.constant 2.500000e-01 : f32
    %62 = vector.broadcast %cst_18 : f32 to vector<16x16xf32>
    %63 = arith.mulf %61, %62 : vector<16x16xf32>
    %64 = arith.addf %63, %57 : vector<16x16xf32>
    %cst_19 = arith.constant dense<0xFF800000> : vector<16xf32>
    %65 = vector.multi_reduction <maximumf>, %64, %cst_19 [1] : vector<16x16xf32> to vector<16xf32>
    %66 = vector.shape_cast %65 : vector<16xf32> to vector<16x1xf32>
    %67 = vector.broadcast %66 : vector<16x1xf32> to vector<16x16xf32>
    %68 = arith.subf %64, %67 : vector<16x16xf32>
    %69 = math.exp %68 : vector<16x16xf32>
    %cst_20 = arith.constant dense<0.000000e+00> : vector<16xf32>
    %70 = vector.multi_reduction <add>, %69, %cst_20 [1] : vector<16x16xf32> to vector<16xf32>
    %71 = vector.shape_cast %70 : vector<16xf32> to vector<16x1xf32>
    %72 = tpu.reciprocal %71 {approx = true} : vector<16x1xf32> -> vector<16x1xf32>
    %73 = vector.broadcast %72 : vector<16x1xf32> to vector<16x16xf32>
    %74 = arith.mulf %69, %73 : vector<16x16xf32>
    %cst_21 = arith.constant dense<0.000000e+00> : vector<16x16xf32>
    %75 = tpu.matmul %74, %60, %cst_21 {dimension_numbers = #tpu.dot_dimension_numbers<[1], [0], [0], [1], [0, 0, 1, 1], [], []>} : vector<16x16xf32>, vector<16x16xf32>, vector<16x16xf32> -> vector<16x16xf32>
    %76 = vector.extract_strided_slice %19 {offsets = [0, 16], sizes = [16, 16], strides = [1, 1]} : vector<16x96xf32> to vector<16x16xf32>
    %77 = vector.extract_strided_slice %19 {offsets = [0, 48], sizes = [16, 16], strides = [1, 1]} : vector<16x96xf32> to vector<16x16xf32>
    %78 = vector.extract_strided_slice %19 {offsets = [0, 80], sizes = [16, 16], strides = [1, 1]} : vector<16x96xf32> to vector<16x16xf32>
    %cst_22 = arith.constant dense<0.000000e+00> : vector<16x16xf32>
    %79 = tpu.matmul %76, %77, %cst_22 {dimension_numbers = #tpu.dot_dimension_numbers<[1], [1], [0], [0], [0, 0, 1, 0], [], []>} : vector<16x16xf32>, vector<16x16xf32>, vector<16x16xf32> -> vector<16x16xf32>
    %cst_23 = arith.constant 2.500000e-01 : f32
    %80 = vector.broadcast %cst_23 : f32 to vector<16x16xf32>
    %81 = arith.mulf %79, %80 : vector<16x16xf32>
    %82 = arith.addf %81, %57 : vector<16x16xf32>
    %cst_24 = arith.constant dense<0xFF800000> : vector<16xf32>
    %83 = vector.multi_reduction <maximumf>, %82, %cst_24 [1] : vector<16x16xf32> to vector<16xf32>
    %84 = vector.shape_cast %83 : vector<16xf32> to vector<16x1xf32>
    %85 = vector.broadcast %84 : vector<16x1xf32> to vector<16x16xf32>
    %86 = arith.subf %82, %85 : vector<16x16xf32>
    %87 = math.exp %86 : vector<16x16xf32>
    %cst_25 = arith.constant dense<0.000000e+00> : vector<16xf32>
    %88 = vector.multi_reduction <add>, %87, %cst_25 [1] : vector<16x16xf32> to vector<16xf32>
    %89 = vector.shape_cast %88 : vector<16xf32> to vector<16x1xf32>
    %90 = tpu.reciprocal %89 {approx = true} : vector<16x1xf32> -> vector<16x1xf32>
    %91 = vector.broadcast %90 : vector<16x1xf32> to vector<16x16xf32>
    %92 = arith.mulf %87, %91 : vector<16x16xf32>
    %cst_26 = arith.constant dense<0.000000e+00> : vector<16x16xf32>
    %93 = tpu.matmul %92, %78, %cst_26 {dimension_numbers = #tpu.dot_dimension_numbers<[1], [0], [0], [1], [0, 0, 1, 1], [], []>} : vector<16x16xf32>, vector<16x16xf32>, vector<16x16xf32> -> vector<16x16xf32>
    %94 = tpu.concatenate %75, %93 in 1 : vector<16x16xf32>, vector<16x16xf32> -> vector<16x32xf32>
    %c64 = arith.constant 64 : index
    %c0_27 = arith.constant 0 : index
    %95 = vector.load %arg3[%c64, %c0_27] : memref<1256x128xf32, #tpu.memory_space<vmem>>, vector<32x32xf32>
    %cst_28 = arith.constant dense<0.000000e+00> : vector<16x32xf32>
    %96 = tpu.matmul %94, %95, %cst_28 {dimension_numbers = #tpu.dot_dimension_numbers<[1], [0], [0], [1], [0, 0, 1, 1], [], []>} : vector<16x32xf32>, vector<32x32xf32>, vector<16x32xf32> -> vector<16x32xf32>
    %c96 = arith.constant 96 : index
    %c0_29 = arith.constant 0 : index
    %97 = vector.load %arg3[%c96, %c0_29] : memref<1256x128xf32, #tpu.memory_space<vmem>>, vector<1x32xf32>
    %98 = vector.broadcast %97 : vector<1x32xf32> to vector<16x32xf32>
    %99 = arith.addf %96, %98 : vector<16x32xf32>
    %c104 = arith.constant 104 : index
    %c0_30 = arith.constant 0 : index
    %100 = vector.load %arg3[%c104, %c0_30] : memref<1256x128xf32, #tpu.memory_space<vmem>>, vector<4x32xf32>
    %101 = arith.addf %14, %99 : vector<16x32xf32>
    %102 = vector.extract_strided_slice %100 {offsets = [0, 0], sizes = [1, 32], strides = [1, 1]} : vector<4x32xf32> to vector<1x32xf32>
    %103 = vector.extract_strided_slice %100 {offsets = [1, 0], sizes = [1, 32], strides = [1, 1]} : vector<4x32xf32> to vector<1x32xf32>
    %cst_31 = arith.constant dense<0.000000e+00> : vector<16xf32>
    %104 = vector.multi_reduction <add>, %101, %cst_31 [1] : vector<16x32xf32> to vector<16xf32>
    %105 = vector.shape_cast %104 : vector<16xf32> to vector<16x1xf32>
    %cst_32 = arith.constant 3.200000e+01 : f32
    %106 = vector.broadcast %cst_32 : f32 to vector<16x1xf32>
    %107 = arith.divf %105, %106 : vector<16x1xf32>
    %108 = vector.broadcast %107 : vector<16x1xf32> to vector<16x32xf32>
    %109 = arith.subf %101, %108 : vector<16x32xf32>
    %110 = arith.mulf %109, %109 : vector<16x32xf32>
    %cst_33 = arith.constant dense<0.000000e+00> : vector<16xf32>
    %111 = vector.multi_reduction <add>, %110, %cst_33 [1] : vector<16x32xf32> to vector<16xf32>
    %112 = vector.shape_cast %111 : vector<16xf32> to vector<16x1xf32>
    %cst_34 = arith.constant 3.200000e+01 : f32
    %113 = vector.broadcast %cst_34 : f32 to vector<16x1xf32>
    %114 = arith.divf %112, %113 : vector<16x1xf32>
    %115 = vector.broadcast %107 : vector<16x1xf32> to vector<16x32xf32>
    %116 = arith.subf %101, %115 : vector<16x32xf32>
    %cst_35 = arith.constant 9.99999974E-6 : f32
    %117 = vector.broadcast %cst_35 : f32 to vector<16x1xf32>
    %118 = arith.addf %114, %117 : vector<16x1xf32>
    %119 = math.rsqrt %118 : vector<16x1xf32>
    %120 = vector.broadcast %119 : vector<16x1xf32> to vector<16x32xf32>
    %121 = arith.mulf %116, %120 : vector<16x32xf32>
    %122 = vector.broadcast %102 : vector<1x32xf32> to vector<16x32xf32>
    %123 = arith.mulf %121, %122 : vector<16x32xf32>
    %124 = vector.broadcast %103 : vector<1x32xf32> to vector<16x32xf32>
    %125 = arith.addf %123, %124 : vector<16x32xf32>
    %c112 = arith.constant 112 : index
    %c0_36 = arith.constant 0 : index
    %126 = vector.load %arg3[%c112, %c0_36] : memref<1256x128xf32, #tpu.memory_space<vmem>>, vector<32x64xf32>
    %cst_37 = arith.constant dense<0.000000e+00> : vector<16x64xf32>
    %127 = tpu.matmul %125, %126, %cst_37 {dimension_numbers = #tpu.dot_dimension_numbers<[1], [0], [0], [1], [0, 0, 1, 1], [], []>} : vector<16x32xf32>, vector<32x64xf32>, vector<16x64xf32> -> vector<16x64xf32>
    %c144 = arith.constant 144 : index
    %c0_38 = arith.constant 0 : index
    %128 = vector.load %arg3[%c144, %c0_38] : memref<1256x128xf32, #tpu.memory_space<vmem>>, vector<1x64xf32>
    %129 = vector.broadcast %128 : vector<1x64xf32> to vector<16x64xf32>
    %130 = arith.addf %127, %129 : vector<16x64xf32>
    %cst_39 = arith.constant 0.000000e+00 : f32
    %131 = vector.broadcast %cst_39 : f32 to vector<16x64xf32>
    %132 = arith.maximumf %130, %131 : vector<16x64xf32>
    %c152 = arith.constant 152 : index
    %c0_40 = arith.constant 0 : index
    %133 = vector.load %arg3[%c152, %c0_40] : memref<1256x128xf32, #tpu.memory_space<vmem>>, vector<64x32xf32>
    %cst_41 = arith.constant dense<0.000000e+00> : vector<16x32xf32>
    %134 = tpu.matmul %132, %133, %cst_41 {dimension_numbers = #tpu.dot_dimension_numbers<[1], [0], [0], [1], [0, 0, 1, 1], [], []>} : vector<16x64xf32>, vector<64x32xf32>, vector<16x32xf32> -> vector<16x32xf32>
    %c216 = arith.constant 216 : index
    %c0_42 = arith.constant 0 : index
    %135 = vector.load %arg3[%c216, %c0_42] : memref<1256x128xf32, #tpu.memory_space<vmem>>, vector<1x32xf32>
    %136 = vector.broadcast %135 : vector<1x32xf32> to vector<16x32xf32>
    %137 = arith.addf %134, %136 : vector<16x32xf32>
    %138 = arith.addf %125, %137 : vector<16x32xf32>
    %139 = vector.extract_strided_slice %100 {offsets = [2, 0], sizes = [1, 32], strides = [1, 1]} : vector<4x32xf32> to vector<1x32xf32>
    %140 = vector.extract_strided_slice %100 {offsets = [3, 0], sizes = [1, 32], strides = [1, 1]} : vector<4x32xf32> to vector<1x32xf32>
    %cst_43 = arith.constant dense<0.000000e+00> : vector<16xf32>
    %141 = vector.multi_reduction <add>, %138, %cst_43 [1] : vector<16x32xf32> to vector<16xf32>
    %142 = vector.shape_cast %141 : vector<16xf32> to vector<16x1xf32>
    %cst_44 = arith.constant 3.200000e+01 : f32
    %143 = vector.broadcast %cst_44 : f32 to vector<16x1xf32>
    %144 = arith.divf %142, %143 : vector<16x1xf32>
    %145 = vector.broadcast %144 : vector<16x1xf32> to vector<16x32xf32>
    %146 = arith.subf %138, %145 : vector<16x32xf32>
    %147 = arith.mulf %146, %146 : vector<16x32xf32>
    %cst_45 = arith.constant dense<0.000000e+00> : vector<16xf32>
    %148 = vector.multi_reduction <add>, %147, %cst_45 [1] : vector<16x32xf32> to vector<16xf32>
    %149 = vector.shape_cast %148 : vector<16xf32> to vector<16x1xf32>
    %cst_46 = arith.constant 3.200000e+01 : f32
    %150 = vector.broadcast %cst_46 : f32 to vector<16x1xf32>
    %151 = arith.divf %149, %150 : vector<16x1xf32>
    %152 = vector.broadcast %144 : vector<16x1xf32> to vector<16x32xf32>
    %153 = arith.subf %138, %152 : vector<16x32xf32>
    %cst_47 = arith.constant 9.99999974E-6 : f32
    %154 = vector.broadcast %cst_47 : f32 to vector<16x1xf32>
    %155 = arith.addf %151, %154 : vector<16x1xf32>
    %156 = math.rsqrt %155 : vector<16x1xf32>
    %157 = vector.broadcast %156 : vector<16x1xf32> to vector<16x32xf32>
    %158 = arith.mulf %153, %157 : vector<16x32xf32>
    %159 = vector.broadcast %139 : vector<1x32xf32> to vector<16x32xf32>
    %160 = arith.mulf %158, %159 : vector<16x32xf32>
    %161 = vector.broadcast %140 : vector<1x32xf32> to vector<16x32xf32>
    %162 = arith.addf %160, %161 : vector<16x32xf32>
    %c0_48 = arith.constant 0 : index
    %c0_49 = arith.constant 0 : index
    %163 = vector.load %arg1[%c0_48, %c0_49] : memref<24x2xf32, #tpu.memory_space<vmem>>, vector<24x2xf32>
    %c248 = arith.constant 248 : index
    %c0_50 = arith.constant 0 : index
    %164 = vector.load %arg3[%c248, %c0_50] : memref<1256x128xf32, #tpu.memory_space<vmem>>, vector<2x32xf32>
    %c224 = arith.constant 224 : index
    %c0_51 = arith.constant 0 : index
    %165 = vector.load %arg3[%c224, %c0_51] : memref<1256x128xf32, #tpu.memory_space<vmem>>, vector<24x32xf32>
    %166 = vector.extract_strided_slice %163 {offsets = [0, 0], sizes = [24, 1], strides = [1, 1]} : vector<24x2xf32> to vector<24x1xf32>
    %167 = vector.extract_strided_slice %164 {offsets = [0, 0], sizes = [1, 32], strides = [1, 1]} : vector<2x32xf32> to vector<1x32xf32>
    %168 = vector.broadcast %166 : vector<24x1xf32> to vector<24x32xf32>
    %169 = vector.broadcast %167 : vector<1x32xf32> to vector<24x32xf32>
    %170 = arith.mulf %168, %169 : vector<24x32xf32>
    %171 = vector.extract_strided_slice %163 {offsets = [0, 1], sizes = [24, 1], strides = [1, 1]} : vector<24x2xf32> to vector<24x1xf32>
    %172 = vector.extract_strided_slice %164 {offsets = [1, 0], sizes = [1, 32], strides = [1, 1]} : vector<2x32xf32> to vector<1x32xf32>
    %173 = vector.broadcast %171 : vector<24x1xf32> to vector<24x32xf32>
    %174 = vector.broadcast %172 : vector<1x32xf32> to vector<24x32xf32>
    %175 = arith.mulf %173, %174 : vector<24x32xf32>
    %176 = arith.addf %170, %175 : vector<24x32xf32>
    %177 = arith.addf %176, %165 : vector<24x32xf32>
    %c256 = arith.constant 256 : index
    %c0_52 = arith.constant 0 : index
    %178 = vector.load %arg3[%c256, %c0_52] : memref<1256x128xf32, #tpu.memory_space<vmem>>, vector<32x96xf32>
    %cst_53 = arith.constant dense<0.000000e+00> : vector<24x96xf32>
    %179 = tpu.matmul %177, %178, %cst_53 {dimension_numbers = #tpu.dot_dimension_numbers<[1], [0], [0], [1], [0, 0, 1, 1], [], []>} : vector<24x32xf32>, vector<32x96xf32>, vector<24x96xf32> -> vector<24x96xf32>
    %c288 = arith.constant 288 : index
    %c0_54 = arith.constant 0 : index
    %180 = vector.load %arg3[%c288, %c0_54] : memref<1256x128xf32, #tpu.memory_space<vmem>>, vector<1x96xf32>
    %181 = vector.broadcast %180 : vector<1x96xf32> to vector<24x96xf32>
    %182 = arith.addf %179, %181 : vector<24x96xf32>
    %183 = tpu.iota {dimensions = array<i32: 0>} : vector<24x24xi32>
    %184 = tpu.iota {dimensions = array<i32: 1>} : vector<24x24xi32>
    %c2_i32_55 = arith.constant 2 : i32
    %c0_i32_56 = arith.constant 0 : i32
    %185 = arith.cmpi eq, %c2_i32_55, %c0_i32_56 : i32
    %c1_i32_57 = arith.constant 1 : i32
    %186 = arith.select %185, %c1_i32_57, %c2_i32_55 : i32
    %187 = vector.broadcast %186 : i32 to vector<24x24xi32>
    %188 = arith.remsi %183, %187 : vector<24x24xi32>
    %c0_i32_58 = arith.constant 0 : i32
    %189 = vector.broadcast %c0_i32_58 : i32 to vector<24x24xi32>
    %190 = arith.cmpi ne, %188, %189 : vector<24x24xi32>
    %c0_i32_59 = arith.constant 0 : i32
    %191 = vector.broadcast %c0_i32_59 : i32 to vector<24x24xi32>
    %192 = arith.cmpi slt, %188, %191 : vector<24x24xi32>
    %c0_i32_60 = arith.constant 0 : i32
    %193 = arith.cmpi slt, %186, %c0_i32_60 : i32
    %194 = vector.broadcast %193 : i1 to vector<24x24xi1>
    %195 = vector.broadcast %194 : vector<24x24xi1> to vector<24x24xi1>
    %196 = arith.xori %192, %195 : vector<24x24xi1>
    %197 = arith.andi %196, %190 : vector<24x24xi1>
    %198 = vector.broadcast %186 : i32 to vector<24x24xi32>
    %199 = arith.addi %188, %198 : vector<24x24xi32>
    %200 = arith.select %197, %199, %188 : vector<24x24xi1>, vector<24x24xi32>
    %c2_i32_61 = arith.constant 2 : i32
    %c0_i32_62 = arith.constant 0 : i32
    %201 = arith.cmpi eq, %c2_i32_61, %c0_i32_62 : i32
    %c1_i32_63 = arith.constant 1 : i32
    %202 = arith.select %201, %c1_i32_63, %c2_i32_61 : i32
    %203 = vector.broadcast %202 : i32 to vector<24x24xi32>
    %204 = arith.remsi %184, %203 : vector<24x24xi32>
    %c0_i32_64 = arith.constant 0 : i32
    %205 = vector.broadcast %c0_i32_64 : i32 to vector<24x24xi32>
    %206 = arith.cmpi ne, %204, %205 : vector<24x24xi32>
    %c0_i32_65 = arith.constant 0 : i32
    %207 = vector.broadcast %c0_i32_65 : i32 to vector<24x24xi32>
    %208 = arith.cmpi slt, %204, %207 : vector<24x24xi32>
    %c0_i32_66 = arith.constant 0 : i32
    %209 = arith.cmpi slt, %202, %c0_i32_66 : i32
    %210 = vector.broadcast %209 : i1 to vector<24x24xi1>
    %211 = vector.broadcast %210 : vector<24x24xi1> to vector<24x24xi1>
    %212 = arith.xori %208, %211 : vector<24x24xi1>
    %213 = arith.andi %212, %206 : vector<24x24xi1>
    %214 = vector.broadcast %202 : i32 to vector<24x24xi32>
    %215 = arith.addi %204, %214 : vector<24x24xi32>
    %216 = arith.select %213, %215, %204 : vector<24x24xi1>, vector<24x24xi32>
    %217 = arith.cmpi eq, %200, %216 : vector<24x24xi32>
    %cst_67 = arith.constant 0.000000e+00 : f32
    %cst_68 = arith.constant -1.000000e+30 : f32
    %218 = vector.broadcast %cst_67 : f32 to vector<24x24xf32>
    %219 = vector.broadcast %cst_68 : f32 to vector<24x24xf32>
    %220 = arith.select %217, %218, %219 : vector<24x24xi1>, vector<24x24xf32>
    %221 = vector.extract_strided_slice %182 {offsets = [0, 0], sizes = [24, 16], strides = [1, 1]} : vector<24x96xf32> to vector<24x16xf32>
    %222 = vector.extract_strided_slice %182 {offsets = [0, 32], sizes = [24, 16], strides = [1, 1]} : vector<24x96xf32> to vector<24x16xf32>
    %223 = vector.extract_strided_slice %182 {offsets = [0, 64], sizes = [24, 16], strides = [1, 1]} : vector<24x96xf32> to vector<24x16xf32>
    %cst_69 = arith.constant dense<0.000000e+00> : vector<24x24xf32>
    %224 = tpu.matmul %221, %222, %cst_69 {dimension_numbers = #tpu.dot_dimension_numbers<[1], [1], [0], [0], [0, 0, 1, 0], [], []>} : vector<24x16xf32>, vector<24x16xf32>, vector<24x24xf32> -> vector<24x24xf32>
    %cst_70 = arith.constant 2.500000e-01 : f32
    %225 = vector.broadcast %cst_70 : f32 to vector<24x24xf32>
    %226 = arith.mulf %224, %225 : vector<24x24xf32>
    %227 = arith.addf %226, %220 : vector<24x24xf32>
    %cst_71 = arith.constant dense<0xFF800000> : vector<24xf32>
    %228 = vector.multi_reduction <maximumf>, %227, %cst_71 [1] : vector<24x24xf32> to vector<24xf32>
    %229 = vector.shape_cast %228 : vector<24xf32> to vector<24x1xf32>
    %230 = vector.broadcast %229 : vector<24x1xf32> to vector<24x24xf32>
    %231 = arith.subf %227, %230 : vector<24x24xf32>
    %232 = math.exp %231 : vector<24x24xf32>
    %cst_72 = arith.constant dense<0.000000e+00> : vector<24xf32>
    %233 = vector.multi_reduction <add>, %232, %cst_72 [1] : vector<24x24xf32> to vector<24xf32>
    %234 = vector.shape_cast %233 : vector<24xf32> to vector<24x1xf32>
    %235 = tpu.reciprocal %234 {approx = true} : vector<24x1xf32> -> vector<24x1xf32>
    %236 = vector.broadcast %235 : vector<24x1xf32> to vector<24x24xf32>
    %237 = arith.mulf %232, %236 : vector<24x24xf32>
    %cst_73 = arith.constant dense<0.000000e+00> : vector<24x16xf32>
    %238 = tpu.matmul %237, %223, %cst_73 {dimension_numbers = #tpu.dot_dimension_numbers<[1], [0], [0], [1], [0, 0, 1, 1], [], []>} : vector<24x24xf32>, vector<24x16xf32>, vector<24x16xf32> -> vector<24x16xf32>
    %239 = vector.extract_strided_slice %182 {offsets = [0, 16], sizes = [24, 16], strides = [1, 1]} : vector<24x96xf32> to vector<24x16xf32>
    %240 = vector.extract_strided_slice %182 {offsets = [0, 48], sizes = [24, 16], strides = [1, 1]} : vector<24x96xf32> to vector<24x16xf32>
    %241 = vector.extract_strided_slice %182 {offsets = [0, 80], sizes = [24, 16], strides = [1, 1]} : vector<24x96xf32> to vector<24x16xf32>
    %cst_74 = arith.constant dense<0.000000e+00> : vector<24x24xf32>
    %242 = tpu.matmul %239, %240, %cst_74 {dimension_numbers = #tpu.dot_dimension_numbers<[1], [1], [0], [0], [0, 0, 1, 0], [], []>} : vector<24x16xf32>, vector<24x16xf32>, vector<24x24xf32> -> vector<24x24xf32>
    %cst_75 = arith.constant 2.500000e-01 : f32
    %243 = vector.broadcast %cst_75 : f32 to vector<24x24xf32>
    %244 = arith.mulf %242, %243 : vector<24x24xf32>
    %245 = arith.addf %244, %220 : vector<24x24xf32>
    %cst_76 = arith.constant dense<0xFF800000> : vector<24xf32>
    %246 = vector.multi_reduction <maximumf>, %245, %cst_76 [1] : vector<24x24xf32> to vector<24xf32>
    %247 = vector.shape_cast %246 : vector<24xf32> to vector<24x1xf32>
    %248 = vector.broadcast %247 : vector<24x1xf32> to vector<24x24xf32>
    %249 = arith.subf %245, %248 : vector<24x24xf32>
    %250 = math.exp %249 : vector<24x24xf32>
    %cst_77 = arith.constant dense<0.000000e+00> : vector<24xf32>
    %251 = vector.multi_reduction <add>, %250, %cst_77 [1] : vector<24x24xf32> to vector<24xf32>
    %252 = vector.shape_cast %251 : vector<24xf32> to vector<24x1xf32>
    %253 = tpu.reciprocal %252 {approx = true} : vector<24x1xf32> -> vector<24x1xf32>
    %254 = vector.broadcast %253 : vector<24x1xf32> to vector<24x24xf32>
    %255 = arith.mulf %250, %254 : vector<24x24xf32>
    %cst_78 = arith.constant dense<0.000000e+00> : vector<24x16xf32>
    %256 = tpu.matmul %255, %241, %cst_78 {dimension_numbers = #tpu.dot_dimension_numbers<[1], [0], [0], [1], [0, 0, 1, 1], [], []>} : vector<24x24xf32>, vector<24x16xf32>, vector<24x16xf32> -> vector<24x16xf32>
    %257 = tpu.concatenate %238, %256 in 1 : vector<24x16xf32>, vector<24x16xf32> -> vector<24x32xf32>
    %c296 = arith.constant 296 : index
    %c0_79 = arith.constant 0 : index
    %258 = vector.load %arg3[%c296, %c0_79] : memref<1256x128xf32, #tpu.memory_space<vmem>>, vector<32x32xf32>
    %cst_80 = arith.constant dense<0.000000e+00> : vector<24x32xf32>
    %259 = tpu.matmul %257, %258, %cst_80 {dimension_numbers = #tpu.dot_dimension_numbers<[1], [0], [0], [1], [0, 0, 1, 1], [], []>} : vector<24x32xf32>, vector<32x32xf32>, vector<24x32xf32> -> vector<24x32xf32>
    %c328 = arith.constant 328 : index
    %c0_81 = arith.constant 0 : index
    %260 = vector.load %arg3[%c328, %c0_81] : memref<1256x128xf32, #tpu.memory_space<vmem>>, vector<1x32xf32>
    %261 = vector.broadcast %260 : vector<1x32xf32> to vector<24x32xf32>
    %262 = arith.addf %259, %261 : vector<24x32xf32>
    %c336 = arith.constant 336 : index
    %c0_82 = arith.constant 0 : index
    %263 = vector.load %arg3[%c336, %c0_82] : memref<1256x128xf32, #tpu.memory_space<vmem>>, vector<4x32xf32>
    %264 = arith.addf %177, %262 : vector<24x32xf32>
    %265 = vector.extract_strided_slice %263 {offsets = [0, 0], sizes = [1, 32], strides = [1, 1]} : vector<4x32xf32> to vector<1x32xf32>
    %266 = vector.extract_strided_slice %263 {offsets = [1, 0], sizes = [1, 32], strides = [1, 1]} : vector<4x32xf32> to vector<1x32xf32>
    %cst_83 = arith.constant dense<0.000000e+00> : vector<24xf32>
    %267 = vector.multi_reduction <add>, %264, %cst_83 [1] : vector<24x32xf32> to vector<24xf32>
    %268 = vector.shape_cast %267 : vector<24xf32> to vector<24x1xf32>
    %cst_84 = arith.constant 3.200000e+01 : f32
    %269 = vector.broadcast %cst_84 : f32 to vector<24x1xf32>
    %270 = arith.divf %268, %269 : vector<24x1xf32>
    %271 = vector.broadcast %270 : vector<24x1xf32> to vector<24x32xf32>
    %272 = arith.subf %264, %271 : vector<24x32xf32>
    %273 = arith.mulf %272, %272 : vector<24x32xf32>
    %cst_85 = arith.constant dense<0.000000e+00> : vector<24xf32>
    %274 = vector.multi_reduction <add>, %273, %cst_85 [1] : vector<24x32xf32> to vector<24xf32>
    %275 = vector.shape_cast %274 : vector<24xf32> to vector<24x1xf32>
    %cst_86 = arith.constant 3.200000e+01 : f32
    %276 = vector.broadcast %cst_86 : f32 to vector<24x1xf32>
    %277 = arith.divf %275, %276 : vector<24x1xf32>
    %278 = vector.broadcast %270 : vector<24x1xf32> to vector<24x32xf32>
    %279 = arith.subf %264, %278 : vector<24x32xf32>
    %cst_87 = arith.constant 9.99999974E-6 : f32
    %280 = vector.broadcast %cst_87 : f32 to vector<24x1xf32>
    %281 = arith.addf %277, %280 : vector<24x1xf32>
    %282 = math.rsqrt %281 : vector<24x1xf32>
    %283 = vector.broadcast %282 : vector<24x1xf32> to vector<24x32xf32>
    %284 = arith.mulf %279, %283 : vector<24x32xf32>
    %285 = vector.broadcast %265 : vector<1x32xf32> to vector<24x32xf32>
    %286 = arith.mulf %284, %285 : vector<24x32xf32>
    %287 = vector.broadcast %266 : vector<1x32xf32> to vector<24x32xf32>
    %288 = arith.addf %286, %287 : vector<24x32xf32>
    %c344 = arith.constant 344 : index
    %c0_88 = arith.constant 0 : index
    %289 = vector.load %arg3[%c344, %c0_88] : memref<1256x128xf32, #tpu.memory_space<vmem>>, vector<32x64xf32>
    %cst_89 = arith.constant dense<0.000000e+00> : vector<24x64xf32>
    %290 = tpu.matmul %288, %289, %cst_89 {dimension_numbers = #tpu.dot_dimension_numbers<[1], [0], [0], [1], [0, 0, 1, 1], [], []>} : vector<24x32xf32>, vector<32x64xf32>, vector<24x64xf32> -> vector<24x64xf32>
    %c376 = arith.constant 376 : index
    %c0_90 = arith.constant 0 : index
    %291 = vector.load %arg3[%c376, %c0_90] : memref<1256x128xf32, #tpu.memory_space<vmem>>, vector<1x64xf32>
    %292 = vector.broadcast %291 : vector<1x64xf32> to vector<24x64xf32>
    %293 = arith.addf %290, %292 : vector<24x64xf32>
    %cst_91 = arith.constant 0.000000e+00 : f32
    %294 = vector.broadcast %cst_91 : f32 to vector<24x64xf32>
    %295 = arith.maximumf %293, %294 : vector<24x64xf32>
    %c384 = arith.constant 384 : index
    %c0_92 = arith.constant 0 : index
    %296 = vector.load %arg3[%c384, %c0_92] : memref<1256x128xf32, #tpu.memory_space<vmem>>, vector<64x32xf32>
    %cst_93 = arith.constant dense<0.000000e+00> : vector<24x32xf32>
    %297 = tpu.matmul %295, %296, %cst_93 {dimension_numbers = #tpu.dot_dimension_numbers<[1], [0], [0], [1], [0, 0, 1, 1], [], []>} : vector<24x64xf32>, vector<64x32xf32>, vector<24x32xf32> -> vector<24x32xf32>
    %c448 = arith.constant 448 : index
    %c0_94 = arith.constant 0 : index
    %298 = vector.load %arg3[%c448, %c0_94] : memref<1256x128xf32, #tpu.memory_space<vmem>>, vector<1x32xf32>
    %299 = vector.broadcast %298 : vector<1x32xf32> to vector<24x32xf32>
    %300 = arith.addf %297, %299 : vector<24x32xf32>
    %301 = arith.addf %288, %300 : vector<24x32xf32>
    %302 = vector.extract_strided_slice %263 {offsets = [2, 0], sizes = [1, 32], strides = [1, 1]} : vector<4x32xf32> to vector<1x32xf32>
    %303 = vector.extract_strided_slice %263 {offsets = [3, 0], sizes = [1, 32], strides = [1, 1]} : vector<4x32xf32> to vector<1x32xf32>
    %cst_95 = arith.constant dense<0.000000e+00> : vector<24xf32>
    %304 = vector.multi_reduction <add>, %301, %cst_95 [1] : vector<24x32xf32> to vector<24xf32>
    %305 = vector.shape_cast %304 : vector<24xf32> to vector<24x1xf32>
    %cst_96 = arith.constant 3.200000e+01 : f32
    %306 = vector.broadcast %cst_96 : f32 to vector<24x1xf32>
    %307 = arith.divf %305, %306 : vector<24x1xf32>
    %308 = vector.broadcast %307 : vector<24x1xf32> to vector<24x32xf32>
    %309 = arith.subf %301, %308 : vector<24x32xf32>
    %310 = arith.mulf %309, %309 : vector<24x32xf32>
    %cst_97 = arith.constant dense<0.000000e+00> : vector<24xf32>
    %311 = vector.multi_reduction <add>, %310, %cst_97 [1] : vector<24x32xf32> to vector<24xf32>
    %312 = vector.shape_cast %311 : vector<24xf32> to vector<24x1xf32>
    %cst_98 = arith.constant 3.200000e+01 : f32
    %313 = vector.broadcast %cst_98 : f32 to vector<24x1xf32>
    %314 = arith.divf %312, %313 : vector<24x1xf32>
    %315 = vector.broadcast %307 : vector<24x1xf32> to vector<24x32xf32>
    %316 = arith.subf %301, %315 : vector<24x32xf32>
    %cst_99 = arith.constant 9.99999974E-6 : f32
    %317 = vector.broadcast %cst_99 : f32 to vector<24x1xf32>
    %318 = arith.addf %314, %317 : vector<24x1xf32>
    %319 = math.rsqrt %318 : vector<24x1xf32>
    %320 = vector.broadcast %319 : vector<24x1xf32> to vector<24x32xf32>
    %321 = arith.mulf %316, %320 : vector<24x32xf32>
    %322 = vector.broadcast %302 : vector<1x32xf32> to vector<24x32xf32>
    %323 = arith.mulf %321, %322 : vector<24x32xf32>
    %324 = vector.broadcast %303 : vector<1x32xf32> to vector<24x32xf32>
    %325 = arith.addf %323, %324 : vector<24x32xf32>
    %326 = vector.extract_strided_slice %325 {offsets = [0, 0], sizes = [2, 32], strides = [1, 1]} : vector<24x32xf32> to vector<2x32xf32>
    %c456 = arith.constant 456 : index
    %c0_100 = arith.constant 0 : index
    %327 = vector.load %arg3[%c456, %c0_100] : memref<1256x128xf32, #tpu.memory_space<vmem>>, vector<32x64xf32>
    %cst_101 = arith.constant dense<0.000000e+00> : vector<2x64xf32>
    %328 = tpu.matmul %326, %327, %cst_101 {dimension_numbers = #tpu.dot_dimension_numbers<[1], [0], [0], [1], [0, 0, 1, 1], [], []>} : vector<2x32xf32>, vector<32x64xf32>, vector<2x64xf32> -> vector<2x64xf32>
    %329 = vector.extract_strided_slice %325 {offsets = [2, 0], sizes = [2, 32], strides = [1, 1]} : vector<24x32xf32> to vector<2x32xf32>
    %c488 = arith.constant 488 : index
    %c0_102 = arith.constant 0 : index
    %330 = vector.load %arg3[%c488, %c0_102] : memref<1256x128xf32, #tpu.memory_space<vmem>>, vector<32x64xf32>
    %cst_103 = arith.constant dense<0.000000e+00> : vector<2x64xf32>
    %331 = tpu.matmul %329, %330, %cst_103 {dimension_numbers = #tpu.dot_dimension_numbers<[1], [0], [0], [1], [0, 0, 1, 1], [], []>} : vector<2x32xf32>, vector<32x64xf32>, vector<2x64xf32> -> vector<2x64xf32>
    %332 = vector.extract_strided_slice %325 {offsets = [4, 0], sizes = [2, 32], strides = [1, 1]} : vector<24x32xf32> to vector<2x32xf32>
    %c520 = arith.constant 520 : index
    %c0_104 = arith.constant 0 : index
    %333 = vector.load %arg3[%c520, %c0_104] : memref<1256x128xf32, #tpu.memory_space<vmem>>, vector<32x64xf32>
    %cst_105 = arith.constant dense<0.000000e+00> : vector<2x64xf32>
    %334 = tpu.matmul %332, %333, %cst_105 {dimension_numbers = #tpu.dot_dimension_numbers<[1], [0], [0], [1], [0, 0, 1, 1], [], []>} : vector<2x32xf32>, vector<32x64xf32>, vector<2x64xf32> -> vector<2x64xf32>
    %335 = vector.extract_strided_slice %325 {offsets = [6, 0], sizes = [2, 32], strides = [1, 1]} : vector<24x32xf32> to vector<2x32xf32>
    %c552 = arith.constant 552 : index
    %c0_106 = arith.constant 0 : index
    %336 = vector.load %arg3[%c552, %c0_106] : memref<1256x128xf32, #tpu.memory_space<vmem>>, vector<32x64xf32>
    %cst_107 = arith.constant dense<0.000000e+00> : vector<2x64xf32>
    %337 = tpu.matmul %335, %336, %cst_107 {dimension_numbers = #tpu.dot_dimension_numbers<[1], [0], [0], [1], [0, 0, 1, 1], [], []>} : vector<2x32xf32>, vector<32x64xf32>, vector<2x64xf32> -> vector<2x64xf32>
    %338 = vector.extract_strided_slice %325 {offsets = [8, 0], sizes = [2, 32], strides = [1, 1]} : vector<24x32xf32> to vector<2x32xf32>
    %c584 = arith.constant 584 : index
    %c0_108 = arith.constant 0 : index
    %339 = vector.load %arg3[%c584, %c0_108] : memref<1256x128xf32, #tpu.memory_space<vmem>>, vector<32x64xf32>
    %cst_109 = arith.constant dense<0.000000e+00> : vector<2x64xf32>
    %340 = tpu.matmul %338, %339, %cst_109 {dimension_numbers = #tpu.dot_dimension_numbers<[1], [0], [0], [1], [0, 0, 1, 1], [], []>} : vector<2x32xf32>, vector<32x64xf32>, vector<2x64xf32> -> vector<2x64xf32>
    %341 = vector.extract_strided_slice %325 {offsets = [10, 0], sizes = [2, 32], strides = [1, 1]} : vector<24x32xf32> to vector<2x32xf32>
    %c616 = arith.constant 616 : index
    %c0_110 = arith.constant 0 : index
    %342 = vector.load %arg3[%c616, %c0_110] : memref<1256x128xf32, #tpu.memory_space<vmem>>, vector<32x64xf32>
    %cst_111 = arith.constant dense<0.000000e+00> : vector<2x64xf32>
    %343 = tpu.matmul %341, %342, %cst_111 {dimension_numbers = #tpu.dot_dimension_numbers<[1], [0], [0], [1], [0, 0, 1, 1], [], []>} : vector<2x32xf32>, vector<32x64xf32>, vector<2x64xf32> -> vector<2x64xf32>
    %344 = vector.extract_strided_slice %325 {offsets = [12, 0], sizes = [2, 32], strides = [1, 1]} : vector<24x32xf32> to vector<2x32xf32>
    %c648 = arith.constant 648 : index
    %c0_112 = arith.constant 0 : index
    %345 = vector.load %arg3[%c648, %c0_112] : memref<1256x128xf32, #tpu.memory_space<vmem>>, vector<32x64xf32>
    %cst_113 = arith.constant dense<0.000000e+00> : vector<2x64xf32>
    %346 = tpu.matmul %344, %345, %cst_113 {dimension_numbers = #tpu.dot_dimension_numbers<[1], [0], [0], [1], [0, 0, 1, 1], [], []>} : vector<2x32xf32>, vector<32x64xf32>, vector<2x64xf32> -> vector<2x64xf32>
    %347 = vector.extract_strided_slice %325 {offsets = [14, 0], sizes = [2, 32], strides = [1, 1]} : vector<24x32xf32> to vector<2x32xf32>
    %c680 = arith.constant 680 : index
    %c0_114 = arith.constant 0 : index
    %348 = vector.load %arg3[%c680, %c0_114] : memref<1256x128xf32, #tpu.memory_space<vmem>>, vector<32x64xf32>
    %cst_115 = arith.constant dense<0.000000e+00> : vector<2x64xf32>
    %349 = tpu.matmul %347, %348, %cst_115 {dimension_numbers = #tpu.dot_dimension_numbers<[1], [0], [0], [1], [0, 0, 1, 1], [], []>} : vector<2x32xf32>, vector<32x64xf32>, vector<2x64xf32> -> vector<2x64xf32>
    %350 = vector.extract_strided_slice %325 {offsets = [16, 0], sizes = [2, 32], strides = [1, 1]} : vector<24x32xf32> to vector<2x32xf32>
    %c712 = arith.constant 712 : index
    %c0_116 = arith.constant 0 : index
    %351 = vector.load %arg3[%c712, %c0_116] : memref<1256x128xf32, #tpu.memory_space<vmem>>, vector<32x64xf32>
    %cst_117 = arith.constant dense<0.000000e+00> : vector<2x64xf32>
    %352 = tpu.matmul %350, %351, %cst_117 {dimension_numbers = #tpu.dot_dimension_numbers<[1], [0], [0], [1], [0, 0, 1, 1], [], []>} : vector<2x32xf32>, vector<32x64xf32>, vector<2x64xf32> -> vector<2x64xf32>
    %353 = vector.extract_strided_slice %325 {offsets = [18, 0], sizes = [2, 32], strides = [1, 1]} : vector<24x32xf32> to vector<2x32xf32>
    %c744 = arith.constant 744 : index
    %c0_118 = arith.constant 0 : index
    %354 = vector.load %arg3[%c744, %c0_118] : memref<1256x128xf32, #tpu.memory_space<vmem>>, vector<32x64xf32>
    %cst_119 = arith.constant dense<0.000000e+00> : vector<2x64xf32>
    %355 = tpu.matmul %353, %354, %cst_119 {dimension_numbers = #tpu.dot_dimension_numbers<[1], [0], [0], [1], [0, 0, 1, 1], [], []>} : vector<2x32xf32>, vector<32x64xf32>, vector<2x64xf32> -> vector<2x64xf32>
    %356 = vector.extract_strided_slice %325 {offsets = [20, 0], sizes = [2, 32], strides = [1, 1]} : vector<24x32xf32> to vector<2x32xf32>
    %c776 = arith.constant 776 : index
    %c0_120 = arith.constant 0 : index
    %357 = vector.load %arg3[%c776, %c0_120] : memref<1256x128xf32, #tpu.memory_space<vmem>>, vector<32x64xf32>
    %cst_121 = arith.constant dense<0.000000e+00> : vector<2x64xf32>
    %358 = tpu.matmul %356, %357, %cst_121 {dimension_numbers = #tpu.dot_dimension_numbers<[1], [0], [0], [1], [0, 0, 1, 1], [], []>} : vector<2x32xf32>, vector<32x64xf32>, vector<2x64xf32> -> vector<2x64xf32>
    %359 = vector.extract_strided_slice %325 {offsets = [22, 0], sizes = [2, 32], strides = [1, 1]} : vector<24x32xf32> to vector<2x32xf32>
    %c808 = arith.constant 808 : index
    %c0_122 = arith.constant 0 : index
    %360 = vector.load %arg3[%c808, %c0_122] : memref<1256x128xf32, #tpu.memory_space<vmem>>, vector<32x64xf32>
    %cst_123 = arith.constant dense<0.000000e+00> : vector<2x64xf32>
    %361 = tpu.matmul %359, %360, %cst_123 {dimension_numbers = #tpu.dot_dimension_numbers<[1], [0], [0], [1], [0, 0, 1, 1], [], []>} : vector<2x32xf32>, vector<32x64xf32>, vector<2x64xf32> -> vector<2x64xf32>
    %362 = arith.addf %328, %331 : vector<2x64xf32>
    %363 = arith.addf %334, %337 : vector<2x64xf32>
    %364 = arith.addf %340, %343 : vector<2x64xf32>
    %365 = arith.addf %346, %349 : vector<2x64xf32>
    %366 = arith.addf %352, %355 : vector<2x64xf32>
    %367 = arith.addf %358, %361 : vector<2x64xf32>
    %368 = arith.addf %362, %363 : vector<2x64xf32>
    %369 = arith.addf %364, %365 : vector<2x64xf32>
    %370 = arith.addf %366, %367 : vector<2x64xf32>
    %371 = arith.addf %368, %369 : vector<2x64xf32>
    %372 = arith.addf %371, %370 : vector<2x64xf32>
    %c840 = arith.constant 840 : index
    %c0_124 = arith.constant 0 : index
    %373 = vector.load %arg3[%c840, %c0_124] : memref<1256x128xf32, #tpu.memory_space<vmem>>, vector<1x64xf32>
    %374 = vector.broadcast %373 : vector<1x64xf32> to vector<2x64xf32>
    %375 = arith.addf %372, %374 : vector<2x64xf32>
    %376 = vector.extract_strided_slice %375 {offsets = [0, 0], sizes = [2, 32], strides = [1, 1]} : vector<2x64xf32> to vector<2x32xf32>
    %377 = vector.extract_strided_slice %375 {offsets = [0, 32], sizes = [2, 32], strides = [1, 1]} : vector<2x64xf32> to vector<2x32xf32>
    %cst_125 = arith.constant 5.000000e-01 : f32
    %378 = vector.broadcast %cst_125 : f32 to vector<2x32xf32>
    %379 = arith.mulf %377, %378 : vector<2x32xf32>
    %380 = math.exp %379 : vector<2x32xf32>
    %c0_126 = arith.constant 0 : index
    %c0_127 = arith.constant 0 : index
    %381 = vector.load %arg2[%c0_126, %c0_127] : memref<2x32xf32, #tpu.memory_space<vmem>>, vector<2x32xf32>
    %382 = arith.mulf %380, %381 : vector<2x32xf32>
    %383 = arith.addf %376, %382 : vector<2x32xf32>
    %c848 = arith.constant 848 : index
    %c0_128 = arith.constant 0 : index
    %384 = vector.load %arg3[%c848, %c0_128] : memref<1256x128xf32, #tpu.memory_space<vmem>>, vector<32x32xf32>
    %cst_129 = arith.constant dense<0.000000e+00> : vector<16x32xf32>
    %385 = tpu.matmul %162, %384, %cst_129 {dimension_numbers = #tpu.dot_dimension_numbers<[1], [0], [0], [1], [0, 0, 1, 1], [], []>} : vector<16x32xf32>, vector<32x32xf32>, vector<16x32xf32> -> vector<16x32xf32>
    %c880 = arith.constant 880 : index
    %c0_130 = arith.constant 0 : index
    %386 = vector.load %arg3[%c880, %c0_130] : memref<1256x128xf32, #tpu.memory_space<vmem>>, vector<1x32xf32>
    %387 = vector.broadcast %386 : vector<1x32xf32> to vector<16x32xf32>
    %388 = arith.addf %385, %387 : vector<16x32xf32>
    %cst_131 = arith.constant 0.000000e+00 : f32
    %389 = vector.broadcast %cst_131 : f32 to vector<16x32xf32>
    %390 = arith.maximumf %388, %389 : vector<16x32xf32>
    %c1144 = arith.constant 1144 : index
    %c0_132 = arith.constant 0 : index
    %391 = vector.load %arg3[%c1144, %c0_132] : memref<1256x128xf32, #tpu.memory_space<vmem>>, vector<32x64xf32>
    %cst_133 = arith.constant dense<0.000000e+00> : vector<2x64xf32>
    %392 = tpu.matmul %383, %391, %cst_133 {dimension_numbers = #tpu.dot_dimension_numbers<[1], [0], [0], [1], [0, 0, 1, 1], [], []>} : vector<2x32xf32>, vector<32x64xf32>, vector<2x64xf32> -> vector<2x64xf32>
    %393 = vector.extract_strided_slice %390 {offsets = [0, 0], sizes = [2, 32], strides = [1, 1]} : vector<16x32xf32> to vector<2x32xf32>
    %c888 = arith.constant 888 : index
    %c0_134 = arith.constant 0 : index
    %394 = vector.load %arg3[%c888, %c0_134] : memref<1256x128xf32, #tpu.memory_space<vmem>>, vector<32x64xf32>
    %cst_135 = arith.constant dense<0.000000e+00> : vector<2x64xf32>
    %395 = tpu.matmul %393, %394, %cst_135 {dimension_numbers = #tpu.dot_dimension_numbers<[1], [0], [0], [1], [0, 0, 1, 1], [], []>} : vector<2x32xf32>, vector<32x64xf32>, vector<2x64xf32> -> vector<2x64xf32>
    %396 = vector.extract_strided_slice %390 {offsets = [2, 0], sizes = [2, 32], strides = [1, 1]} : vector<16x32xf32> to vector<2x32xf32>
    %c920 = arith.constant 920 : index
    %c0_136 = arith.constant 0 : index
    %397 = vector.load %arg3[%c920, %c0_136] : memref<1256x128xf32, #tpu.memory_space<vmem>>, vector<32x64xf32>
    %cst_137 = arith.constant dense<0.000000e+00> : vector<2x64xf32>
    %398 = tpu.matmul %396, %397, %cst_137 {dimension_numbers = #tpu.dot_dimension_numbers<[1], [0], [0], [1], [0, 0, 1, 1], [], []>} : vector<2x32xf32>, vector<32x64xf32>, vector<2x64xf32> -> vector<2x64xf32>
    %399 = vector.extract_strided_slice %390 {offsets = [4, 0], sizes = [2, 32], strides = [1, 1]} : vector<16x32xf32> to vector<2x32xf32>
    %c952 = arith.constant 952 : index
    %c0_138 = arith.constant 0 : index
    %400 = vector.load %arg3[%c952, %c0_138] : memref<1256x128xf32, #tpu.memory_space<vmem>>, vector<32x64xf32>
    %cst_139 = arith.constant dense<0.000000e+00> : vector<2x64xf32>
    %401 = tpu.matmul %399, %400, %cst_139 {dimension_numbers = #tpu.dot_dimension_numbers<[1], [0], [0], [1], [0, 0, 1, 1], [], []>} : vector<2x32xf32>, vector<32x64xf32>, vector<2x64xf32> -> vector<2x64xf32>
    %402 = vector.extract_strided_slice %390 {offsets = [6, 0], sizes = [2, 32], strides = [1, 1]} : vector<16x32xf32> to vector<2x32xf32>
    %c984 = arith.constant 984 : index
    %c0_140 = arith.constant 0 : index
    %403 = vector.load %arg3[%c984, %c0_140] : memref<1256x128xf32, #tpu.memory_space<vmem>>, vector<32x64xf32>
    %cst_141 = arith.constant dense<0.000000e+00> : vector<2x64xf32>
    %404 = tpu.matmul %402, %403, %cst_141 {dimension_numbers = #tpu.dot_dimension_numbers<[1], [0], [0], [1], [0, 0, 1, 1], [], []>} : vector<2x32xf32>, vector<32x64xf32>, vector<2x64xf32> -> vector<2x64xf32>
    %405 = vector.extract_strided_slice %390 {offsets = [8, 0], sizes = [2, 32], strides = [1, 1]} : vector<16x32xf32> to vector<2x32xf32>
    %c1016 = arith.constant 1016 : index
    %c0_142 = arith.constant 0 : index
    %406 = vector.load %arg3[%c1016, %c0_142] : memref<1256x128xf32, #tpu.memory_space<vmem>>, vector<32x64xf32>
    %cst_143 = arith.constant dense<0.000000e+00> : vector<2x64xf32>
    %407 = tpu.matmul %405, %406, %cst_143 {dimension_numbers = #tpu.dot_dimension_numbers<[1], [0], [0], [1], [0, 0, 1, 1], [], []>} : vector<2x32xf32>, vector<32x64xf32>, vector<2x64xf32> -> vector<2x64xf32>
    %408 = vector.extract_strided_slice %390 {offsets = [10, 0], sizes = [2, 32], strides = [1, 1]} : vector<16x32xf32> to vector<2x32xf32>
    %c1048 = arith.constant 1048 : index
    %c0_144 = arith.constant 0 : index
    %409 = vector.load %arg3[%c1048, %c0_144] : memref<1256x128xf32, #tpu.memory_space<vmem>>, vector<32x64xf32>
    %cst_145 = arith.constant dense<0.000000e+00> : vector<2x64xf32>
    %410 = tpu.matmul %408, %409, %cst_145 {dimension_numbers = #tpu.dot_dimension_numbers<[1], [0], [0], [1], [0, 0, 1, 1], [], []>} : vector<2x32xf32>, vector<32x64xf32>, vector<2x64xf32> -> vector<2x64xf32>
    %411 = vector.extract_strided_slice %390 {offsets = [12, 0], sizes = [2, 32], strides = [1, 1]} : vector<16x32xf32> to vector<2x32xf32>
    %c1080 = arith.constant 1080 : index
    %c0_146 = arith.constant 0 : index
    %412 = vector.load %arg3[%c1080, %c0_146] : memref<1256x128xf32, #tpu.memory_space<vmem>>, vector<32x64xf32>
    %cst_147 = arith.constant dense<0.000000e+00> : vector<2x64xf32>
    %413 = tpu.matmul %411, %412, %cst_147 {dimension_numbers = #tpu.dot_dimension_numbers<[1], [0], [0], [1], [0, 0, 1, 1], [], []>} : vector<2x32xf32>, vector<32x64xf32>, vector<2x64xf32> -> vector<2x64xf32>
    %414 = vector.extract_strided_slice %390 {offsets = [14, 0], sizes = [2, 32], strides = [1, 1]} : vector<16x32xf32> to vector<2x32xf32>
    %c1112 = arith.constant 1112 : index
    %c0_148 = arith.constant 0 : index
    %415 = vector.load %arg3[%c1112, %c0_148] : memref<1256x128xf32, #tpu.memory_space<vmem>>, vector<32x64xf32>
    %cst_149 = arith.constant dense<0.000000e+00> : vector<2x64xf32>
    %416 = tpu.matmul %414, %415, %cst_149 {dimension_numbers = #tpu.dot_dimension_numbers<[1], [0], [0], [1], [0, 0, 1, 1], [], []>} : vector<2x32xf32>, vector<32x64xf32>, vector<2x64xf32> -> vector<2x64xf32>
    %417 = arith.addf %392, %395 : vector<2x64xf32>
    %418 = arith.addf %398, %401 : vector<2x64xf32>
    %419 = arith.addf %404, %407 : vector<2x64xf32>
    %420 = arith.addf %410, %413 : vector<2x64xf32>
    %421 = arith.addf %417, %418 : vector<2x64xf32>
    %422 = arith.addf %419, %420 : vector<2x64xf32>
    %423 = arith.addf %421, %422 : vector<2x64xf32>
    %424 = arith.addf %423, %416 : vector<2x64xf32>
    %c1176 = arith.constant 1176 : index
    %c0_150 = arith.constant 0 : index
    %425 = vector.load %arg3[%c1176, %c0_150] : memref<1256x128xf32, #tpu.memory_space<vmem>>, vector<1x64xf32>
    %426 = vector.broadcast %425 : vector<1x64xf32> to vector<2x64xf32>
    %427 = arith.addf %424, %426 : vector<2x64xf32>
    %cst_151 = arith.constant 0.000000e+00 : f32
    %428 = vector.broadcast %cst_151 : f32 to vector<2x64xf32>
    %429 = arith.maximumf %427, %428 : vector<2x64xf32>
    %c1184 = arith.constant 1184 : index
    %c0_152 = arith.constant 0 : index
    %430 = vector.load %arg3[%c1184, %c0_152] : memref<1256x128xf32, #tpu.memory_space<vmem>>, vector<64x32xf32>
    %cst_153 = arith.constant dense<0.000000e+00> : vector<2x32xf32>
    %431 = tpu.matmul %429, %430, %cst_153 {dimension_numbers = #tpu.dot_dimension_numbers<[1], [0], [0], [1], [0, 0, 1, 1], [], []>} : vector<2x64xf32>, vector<64x32xf32>, vector<2x32xf32> -> vector<2x32xf32>
    %c1248 = arith.constant 1248 : index
    %c0_154 = arith.constant 0 : index
    %432 = vector.load %arg3[%c1248, %c0_154] : memref<1256x128xf32, #tpu.memory_space<vmem>>, vector<1x32xf32>
    %433 = vector.broadcast %432 : vector<1x32xf32> to vector<2x32xf32>
    %434 = arith.addf %431, %433 : vector<2x32xf32>
    %435 = tpu.concatenate %375, %383, %434 in 1 : vector<2x64xf32>, vector<2x32xf32>, vector<2x32xf32> -> vector<2x128xf32>
    %c0_155 = arith.constant 0 : index
    %c0_156 = arith.constant 0 : index
    %436 = vector.load %arg4[%c0_155, %c0_156] : memref<2x128xf32, #tpu.memory_space<vmem>>, vector<2x128xf32>
    tpu.vector_store %arg4[%c0_155, %c0_156], %435 {strides = array<i32>} : memref<2x128xf32, #tpu.memory_space<vmem>>, vector<2x128xf32>,
    return
  }
}

</mosaic_0001>

<llo_original>
// kernel: vae_forward.1
$region0: #{vae_forward.1}
  #allocation0 [shape = 'u32[]', space=smem, size = 0x4, offset = 0x4, fixed_abs, tag = 'smem constant byte address 0x4 - core index']
  #allocation1 [shape = 'u32[144,128]{1,0:T(1,128)}', space=vmem, size = 0x12000, scoped, tag = 'internal scratch']
  %s0 = inlined_call_operand.vmem [shape: f32[16,2], index: 0, kind: input, shape index: {}]
  %s1 = inlined_call_operand.vmem [shape: f32[24,2], index: 1, kind: input, shape index: {}]
  %s2 = inlined_call_operand.vmem [shape: f32[2,32], index: 2, kind: input, shape index: {}]
  %s3 = inlined_call_operand.hbm [shape: f32[1256,128], index: 3, kind: input, shape index: {}]
  %s4 = inlined_call_operand.vmem [shape: f32[2,128], index: 4, kind: output, shape index: {}]
  %s5 = sld [smem:[#allocation0]]
  $region30: #{vae_forward.1} parent=0
    _
  %s7 = ssub.s32 1, %s5
  %s8 = scalar_select 0, %s7, %s5
  $region1: #{vae_forward.1} parent=0
    #allocation2 [shape = 'u8[643072]{0}', space=vmem, size = 0x9d000, scoped, tag = 'input window, operand 3, single buffered']
    #allocation3 [shape = 's32[1]{0}', space=sflag, size = 0x4, scoped, tag = 'scoped memory for vae_forward.1']
    %9 = vsyncpa [#allocation3], 0
    // Predicated region
    $region2: #{vae_forward.1} parent=1 // pred_check
      _
    $region3: #{vae_forward.1} parent=1 // pred_check_branch
      %11 = sbr.rel (0) target = $region5
    $region4: #{vae_forward.1} parent=1 // pred_region
      _
    $region5: #{vae_forward.1} parent=1 // pred_fallthru
      _
    // Predicated region
    $region6: #{vae_forward.1} parent=1 // pred_check
      _
    $region7: #{vae_forward.1} parent=1 // pred_check_branch
      %13 = sbr.rel (0) target = $region9
    $region8: #{vae_forward.1} parent=1 // pred_region
      _
    $region9: #{vae_forward.1} parent=1 // pred_fallthru
      _
    // Predicated region
    $region10: #{vae_forward.1} parent=1 // pred_check
      _
    $region11: #{vae_forward.1} parent=1 // pred_check_branch
      %15 = sbr.rel (0) target = $region13
    $region12: #{vae_forward.1} parent=1 // pred_region
      _
    $region13: #{vae_forward.1} parent=1 // pred_fallthru
      _
    // Predicated region
    $region14: #{vae_forward.1} parent=1 // pred_check
      _
    $region15: #{vae_forward.1} parent=1 // pred_check_branch
      %17 = sbr.rel (0) target = $region17
    $region16: #{vae_forward.1} parent=1 // pred_region
      %s19 = ssub.s32 20096, 20096
      %20 = vsyncadd [#allocation3], %s19
      %s21 = sshll.u32 [#allocation2], 4
      %s22 = int_to_ptr.vmem [resolvable:$true] %s21
      %27 = dma.hbm_to_vmem [thread:$0]  %s3, 20096, %s22, [#allocation3], 128, 128, 8
    $region17: #{vae_forward.1} parent=1 // pred_fallthru
      _
    // Predicated region
    $region18: #{vae_forward.1} parent=1 // pred_check
      _
    $region19: #{vae_forward.1} parent=1 // pred_check_branch
      %29 = sbr.rel (0) target = $region21
    $region20: #{vae_forward.1} parent=1 // pred_region
      %30 = dma.done [#allocation3], 20096
    $region21: #{vae_forward.1} parent=1 // pred_fallthru
      _
    %v31 = vld [vmem:[%s0] sm:$0xff]
    %v32 = vld [vmem:[%s0 + $0x8] sm:$0xff]
    %v33 = vld [vmem:[#allocation2 + $0x10] sm:$0x3]
    %v34 = vld [vmem:[#allocation2] sm:$0xff]
    %v35 = vld [vmem:[#allocation2 + $0x8] sm:$0xff]
    %37 = vset.pattern.permute.xlu0 0
    %38 = vperm.xlu0 %37, %v31
    %v39 = vpop.permute.xlu0 %38
    %42 = vset.pattern.permute.xlu0 0
    %43 = vperm.xlu0 %42, %v32
    %v44 = vpop.permute.xlu0 %43
    %v46 = vlaneseq
    %v47 = vshrl.u32 %v46, 7
    %v48 = vsub.s32 0, %v47
    %v49 = vrot.slane %v33, %v48
    %v50 = vmul.f32 %v39, %v49
    %v51 = vmul.f32 %v44, %v49
    %52 = vset.pattern.permute.xlu0 1
    %53 = vperm.xlu0 %52, %v31
    %v54 = vpop.permute.xlu0 %53
    %56 = vset.pattern.permute.xlu0 1
    %57 = vperm.xlu0 %56, %v32
    %v58 = vpop.permute.xlu0 %57
    %v60 = vlaneseq
    %v61 = vshrl.u32 %v60, 7
    %v62 = vsub.s32 1, %v61
    %v63 = vrot.slane %v33, %v62
    %v64 = vmul.f32 %v54, %v63
    %v65 = vmul.f32 %v58, %v63
    %v66 = vadd.f32 %v50, %v64
    %v67 = vadd.f32 %v51, %v65
    %v68 = vadd.f32 %v66, %v34
    %v69 = vadd.f32 %v67, %v35
    %v70 = vld [vmem:[#allocation2 + $0x18] sm:$0xff]
    %v71 = vld [vmem:[#allocation2 + $0x20] sm:$0xff]
    %v72 = vld [vmem:[#allocation2 + $0x28] sm:$0xff]
    %v73 = vld [vmem:[#allocation2 + $0x30] sm:$0xff]
    %v74 = vld [vmem:[#allocation2 + $0x38] sm:$0x1]
    %v75 = vlaneseq
    %v76 = vshrl.u32 %v75, 7
    %v77 = vsub.s32 0, %v76
    %v78 = vrot.slane %v74, %v77
    %vm79 = vcmask 261120
    %v81 = vsel %vm79, %v68, 0
    %v84 = vsel %vm79, %v69, 0
    %86 = vmatprep.subr.mxu0 0.0
    %87 = vmatpush1.msra.mxu0 0.0
    %88 = vmatprep.subr.mxu0 0.0
    %89 = vmatpush1.msra.mxu0 0.0
    %90 = vmatprep.subr.mxu0 0.0
    %91 = vmatpush1.msra.mxu0 0.0
    %92 = vmatprep.subr.mxu0 0.0
    %93 = vmatpush1.msra.mxu0 0.0
    %94 = vmatprep.subr.mxu0 0.0
    %95 = vmatpush1.msra.mxu0 0.0
    %96 = vmatprep.subr.mxu0 0.0
    %97 = vmatpush1.msra.mxu0 0.0
    %98 = vmatprep.subr.mxu0 0.0
    %99 = vmatpush1.msra.mxu0 0.0
    %100 = vmatprep.subr.mxu0 0.0
    %101 = vmatpush1.msra.mxu0 0.0
    %102 = vmatprep.subr.mxu0 0.0
    %103 = vmatpush1.msra.mxu0 0.0
    %104 = vmatprep.subr.mxu0 0.0
    %105 = vmatpush1.msra.mxu0 0.0
    %106 = vmatprep.subr.mxu0 0.0
    %107 = vmatpush1.msra.mxu0 0.0
    %108 = vmatprep.subr.mxu0 0.0
    %109 = vmatpush1.msra.mxu0 0.0
    %110 = vmatprep.subr.mxu0 0.0
    %111 = vmatpush1.msra.mxu0 %v73
    %112 = vmatprep.subr.mxu0 0.0
    %113 = vmatpush1.msra.mxu0 %v72
    %114 = vmatprep.subr.mxu0 0.0
    %115 = vmatpush1.msra.mxu0 %v71
    %116 = vmatprep.subr.mxu0 0.0
    %117 = vmatpush1.msra.mxu0 %v70
    %118 = vmatprep.subr.mxu0 0.0
    %119 = vmatpush2.msra.mxu0 0.0
    %120 = vmatprep.subr.mxu0 0.0
    %121 = vmatpush2.msra.mxu0 0.0
    %122 = vmatprep.subr.mxu0 0.0
    %123 = vmatpush2.msra.mxu0 0.0
    %124 = vmatprep.subr.mxu0 0.0
    %125 = vmatpush2.msra.mxu0 0.0
    %126 = vmatprep.subr.mxu0 0.0
    %127 = vmatpush2.msra.mxu0 0.0
    %128 = vmatprep.subr.mxu0 0.0
    %129 = vmatpush2.msra.mxu0 0.0
    %130 = vmatprep.subr.mxu0 0.0
    %131 = vmatpush2.msra.mxu0 0.0
    %132 = vmatprep.subr.mxu0 0.0
    %133 = vmatpush2.msra.mxu0 0.0
    %134 = vmatprep.subr.mxu0 0.0
    %135 = vmatpush2.msra.mxu0 0.0
    %136 = vmatprep.subr.mxu0 0.0
    %137 = vmatpush2.msra.mxu0 0.0
    %138 = vmatprep.subr.mxu0 0.0
    %139 = vmatpush2.msra.mxu0 0.0
    %140 = vmatprep.subr.mxu0 0.0
    %141 = vmatpush2.msra.mxu0 0.0
    %142 = vmatprep.subr.mxu0 0.0
    %143 = vmatpush2.msra.mxu0 0.0
    %144 = vmatprep.subr.mxu0 0.0
    %145 = vmatpush2.msra.mxu0 0.0
    %146 = vmatprep.subr.mxu0 0.0
    %147 = vmatpush2.msra.mxu0 0.0
    %148 = vmatprep.subr.mxu0 0.0
    %149 = vmatpush2.msra.mxu0 0.0
    %150 = vmatprep.mubr.f32.mxu0 0.0
    %151 = vmatmul.mubr.f32.gmra.mxu0 %v81
    %v152 = vpop.f32.mrf.mxu0
    %v153 = vadd.f32 %v78, %v152
    %v154 = vpop.f32.mrf.mxu0
    %155 = vmatprep.mubr.f32.mxu0 0.0
    %156 = vmatmul.mubr.f32.gmra.mxu0 %v84
    %v157 = vpop.f32.mrf.mxu0
    %v158 = vadd.f32 %v78, %v157
    %v159 = vpop.f32.mrf.mxu0
    %160 = vdwg.mxu0
    %v161 = vlaneseq
    %v162 = vshrl.u32 %v161, 7
    %v163 = vadd.s32 %v162, 8
    %v164 = vlaneseq
    %v165 = vand.u32 %v164, 127
    %vm166 = vcmp.lt.s32.totalorder %v162, 0
    %v167 = vsub.s32 0, %v162
    %v168 = vsel %vm166, %v167, %v162
    %v169 = vshrl.u32 %v168, 1
    %v170 = vand.u32 %v168, 1
    %v171 = vsub.s32 0, %v170
    %v172 = vsel %vm166, %v171, %v170
    %vm173 = vcmp.lt.s32.totalorder %v163, 0
    %v174 = vsub.s32 0, %v163
    %v175 = vsel %vm173, %v174, %v163
    %v176 = vshrl.u32 %v175, 1
    %v177 = vand.u32 %v175, 1
    %v178 = vsub.s32 0, %v177
    %v179 = vsel %vm173, %v178, %v177
    %vm180 = vcmp.ne.s32.totalorder %v172, 0
    %vm181 = vcmp.ne.s32.totalorder %v179, 0
    %vm182 = vcmp.lt.s32.totalorder %v172, 0
    %vm183 = vcmp.lt.s32.totalorder %v179, 0
    %vm184 = vmand %vm182, %vm180
    %vm185 = vmand %vm183, %vm181
    %v186 = vadd.s32 %v172, 2
    %v187 = vadd.s32 %v179, 2
    %v188 = vsel %vm184, %v186, %v172
    %v189 = vsel %vm185, %v187, %v179
    %vm190 = vcmp.lt.s32.totalorder %v165, 0
    %v191 = vsub.s32 0, %v165
    %v192 = vsel %vm190, %v191, %v165
    %v193 = vshrl.u32 %v192, 1
    %v194 = vand.u32 %v192, 1
    %v195 = vsub.s32 0, %v194
    %v196 = vsel %vm190, %v195, %v194
    %vm197 = vcmp.ne.s32.totalorder %v196, 0
    %vm198 = vcmp.lt.s32.totalorder %v196, 0
    %vm199 = vmand %vm198, %vm197
    %v200 = vadd.s32 %v196, 2
    %v201 = vsel %vm199, %v200, %v196
    %vm202 = vcmp.eq.s32.totalorder %v188, %v201
    %vm203 = vcmp.eq.s32.totalorder %v189, %v201
    %v204 = vsel %vm202, 0.0, -1e+30
    %v205 = vsel %vm203, 0.0, -1e+30
    %208 = vrot.lane.b32.xlu0 %v153, 96
    %v209 = vpop.permute.xlu0 %208
    %210 = vrot.lane.b32.xlu0 %v158, 96
    %v211 = vpop.permute.xlu0 %210
    %vm212 = vcmask 130048
    %v213 = vsel %vm212, %v153, 0
    %v215 = vsel %vm212, %v158, 0
    %v217 = vsel %vm212, %v209, 0
    %v219 = vsel %vm212, %v211, 0
    %221 = vmatprep.subr.mxu0 0.0
    %222 = vmatpush1.xpose.msra.mxu0 0.0
    %223 = vmatprep.subr.mxu0 0.0
    %224 = vmatpush1.xpose.msra.mxu0 0.0
    %225 = vmatprep.subr.mxu0 0.0
    %226 = vmatpush1.xpose.msra.mxu0 0.0
    %227 = vmatprep.subr.mxu0 0.0
    %228 = vmatpush1.xpose.msra.mxu0 0.0
    %229 = vmatprep.subr.mxu0 0.0
    %230 = vmatpush1.xpose.msra.mxu0 0.0
    %231 = vmatprep.subr.mxu0 0.0
    %232 = vmatpush1.xpose.msra.mxu0 0.0
    %233 = vmatprep.subr.mxu0 0.0
    %234 = vmatpush1.xpose.msra.mxu0 0.0
    %235 = vmatprep.subr.mxu0 0.0
    %236 = vmatpush1.xpose.msra.mxu0 0.0
    %237 = vmatprep.subr.mxu0 0.0
    %238 = vmatpush1.xpose.msra.mxu0 0.0
    %239 = vmatprep.subr.mxu0 0.0
    %240 = vmatpush1.xpose.msra.mxu0 0.0
    %241 = vmatprep.subr.mxu0 0.0
    %242 = vmatpush1.xpose.msra.mxu0 0.0
    %243 = vmatprep.subr.mxu0 0.0
    %244 = vmatpush1.xpose.msra.mxu0 0.0
    %245 = vmatprep.subr.mxu0 0.0
    %246 = vmatpush1.xpose.msra.mxu0 0.0
    %247 = vmatprep.subr.mxu0 0.0
    %248 = vmatpush1.xpose.msra.mxu0 0.0
    %249 = vmatprep.subr.mxu0 0.0
    %250 = vmatpush1.xpose.msra.mxu0 %v219
    %251 = vmatprep.subr.mxu0 0.0
    %252 = vmatpush1.xpose.msra.mxu0 %v217
    %253 = vmatprep.subr.mxu0 0.0
    %254 = vmatpush2.xpose.msra.mxu0 0.0
    %255 = vmatprep.subr.mxu0 0.0
    %256 = vmatpush2.xpose.msra.mxu0 0.0
    %257 = vmatprep.subr.mxu0 0.0
    %258 = vmatpush2.xpose.msra.mxu0 0.0
    %259 = vmatprep.subr.mxu0 0.0
    %260 = vmatpush2.xpose.msra.mxu0 0.0
    %261 = vmatprep.subr.mxu0 0.0
    %262 = vmatpush2.xpose.msra.mxu0 0.0
    %263 = vmatprep.subr.mxu0 0.0
    %264 = vmatpush2.xpose.msra.mxu0 0.0
    %265 = vmatprep.subr.mxu0 0.0
    %266 = vmatpush2.xpose.msra.mxu0 0.0
    %267 = vmatprep.subr.mxu0 0.0
    %268 = vmatpush2.xpose.msra.mxu0 0.0
    %269 = vmatprep.subr.mxu0 0.0
    %270 = vmatpush2.xpose.msra.mxu0 0.0
    %271 = vmatprep.subr.mxu0 0.0
    %272 = vmatpush2.xpose.msra.mxu0 0.0
    %273 = vmatprep.subr.mxu0 0.0
    %274 = vmatpush2.xpose.msra.mxu0 0.0
    %275 = vmatprep.subr.mxu0 0.0
    %276 = vmatpush2.xpose.msra.mxu0 0.0
    %277 = vmatprep.subr.mxu0 0.0
    %278 = vmatpush2.xpose.msra.mxu0 0.0
    %279 = vmatprep.subr.mxu0 0.0
    %280 = vmatpush2.xpose.msra.mxu0 0.0
    %281 = vmatprep.subr.mxu0 0.0
    %282 = vmatpush2.xpose.msra.mxu0 0.0
    %283 = vmatprep.subr.mxu0 0.0
    %284 = vmatpush2.xpose.msra.mxu0 0.0
    %285 = vmatprep.mubr.f32.mxu0 0.0
    %286 = vmatmul.mubr.f32.gmra.mxu0 %v213
    %v287 = vpop.f32.mrf.mxu0
    %v288 = vadd.f32 0.0, %v287
    %v289 = vpop.f32.mrf.mxu0
    %290 = vmatprep.mubr.f32.mxu0 0.0
    %291 = vmatmul.mubr.f32.gmra.mxu0 %v215
    %v292 = vpop.f32.mrf.mxu0
    %v293 = vadd.f32 0.0, %v292
    %v294 = vpop.f32.mrf.mxu0
    %295 = vdwg.mxu0
    %v296 = vmul.f32 %v288, 0.25
    %v297 = vmul.f32 %v293, 0.25
    %v298 = vadd.f32 %v296, %v204
    %v299 = vadd.f32 %v297, %v205
    %v300 = vsel %vm212, %v298, -inf
    %301 = vmax.xlane.f32.xlu0 %v300
    %v302 = vpop.xlane.xlu0 %301
    %v303 = vsel %vm212, %v299, -inf
    %304 = vmax.xlane.f32.xlu0 %v303
    %v305 = vpop.xlane.xlu0 %304
    %v306 = vsub.f32 %v298, %v302
    %v307 = vsub.f32 %v299, %v305
    %v308 = vmul.f32 %v306, 1.442695
    %v309 = vpow.pop %v308
    %v310 = vmul.f32 %v307, 1.442695
    %v311 = vpow.pop %v310
    %v312 = vsel %vm212, %v309, 0.0
    %313 = vadd.xlane.f32.xlu0 %v312
    %v314 = vpop.xlane.xlu0 %313
    %v315 = vsel %vm212, %v311, 0.0
    %316 = vadd.xlane.f32.xlu0 %v315
    %v317 = vpop.xlane.xlu0 %316
    %v318 = vrcp.pop %v314
    %v319 = vrcp.pop %v317
    %v320 = vmul.f32 %v309, %v318
    %v321 = vmul.f32 %v311, %v319
    %322 = vrot.lane.b32.xlu0 %v153, 64
    %v323 = vpop.permute.xlu0 %322
    %324 = vrot.lane.b32.xlu0 %v158, 64
    %v325 = vpop.permute.xlu0 %324
    %v329 = vsel %vm212, %v320, 0
    %v332 = vsel %vm212, %v321, 0
    %334 = vmatprep.subr.mxu0 0.0
    %335 = vmatpush1.msra.mxu0 0.0
    %336 = vmatprep.subr.mxu0 0.0
    %337 = vmatpush1.msra.mxu0 0.0
    %338 = vmatprep.subr.mxu0 0.0
    %339 = vmatpush1.msra.mxu0 0.0
    %340 = vmatprep.subr.mxu0 0.0
    %341 = vmatpush1.msra.mxu0 0.0
    %342 = vmatprep.subr.mxu0 0.0
    %343 = vmatpush1.msra.mxu0 0.0
    %344 = vmatprep.subr.mxu0 0.0
    %345 = vmatpush1.msra.mxu0 0.0
    %346 = vmatprep.subr.mxu0 0.0
    %347 = vmatpush1.msra.mxu0 0.0
    %348 = vmatprep.subr.mxu0 0.0
    %349 = vmatpush1.msra.mxu0 0.0
    %350 = vmatprep.subr.mxu0 0.0
    %351 = vmatpush1.msra.mxu0 0.0
    %352 = vmatprep.subr.mxu0 0.0
    %353 = vmatpush1.msra.mxu0 0.0
    %354 = vmatprep.subr.mxu0 0.0
    %355 = vmatpush1.msra.mxu0 0.0
    %356 = vmatprep.subr.mxu0 0.0
    %357 = vmatpush1.msra.mxu0 0.0
    %358 = vmatprep.subr.mxu0 0.0
    %359 = vmatpush1.msra.mxu0 0.0
    %360 = vmatprep.subr.mxu0 0.0
    %361 = vmatpush1.msra.mxu0 0.0
    %362 = vmatprep.subr.mxu0 0.0
    %363 = vmatpush1.msra.mxu0 %v325
    %364 = vmatprep.subr.mxu0 0.0
    %365 = vmatpush1.msra.mxu0 %v323
    %366 = vmatprep.subr.mxu0 0.0
    %367 = vmatpush2.msra.mxu0 0.0
    %368 = vmatprep.subr.mxu0 0.0
    %369 = vmatpush2.msra.mxu0 0.0
    %370 = vmatprep.subr.mxu0 0.0
    %371 = vmatpush2.msra.mxu0 0.0
    %372 = vmatprep.subr.mxu0 0.0
    %373 = vmatpush2.msra.mxu0 0.0
    %374 = vmatprep.subr.mxu0 0.0
    %375 = vmatpush2.msra.mxu0 0.0
    %376 = vmatprep.subr.mxu0 0.0
    %377 = vmatpush2.msra.mxu0 0.0
    %378 = vmatprep.subr.mxu0 0.0
    %379 = vmatpush2.msra.mxu0 0.0
    %380 = vmatprep.subr.mxu0 0.0
    %381 = vmatpush2.msra.mxu0 0.0
    %382 = vmatprep.subr.mxu0 0.0
    %383 = vmatpush2.msra.mxu0 0.0
    %384 = vmatprep.subr.mxu0 0.0
    %385 = vmatpush2.msra.mxu0 0.0
    %386 = vmatprep.subr.mxu0 0.0
    %387 = vmatpush2.msra.mxu0 0.0
    %388 = vmatprep.subr.mxu0 0.0
    %389 = vmatpush2.msra.mxu0 0.0
    %390 = vmatprep.subr.mxu0 0.0
    %391 = vmatpush2.msra.mxu0 0.0
    %392 = vmatprep.subr.mxu0 0.0
    %393 = vmatpush2.msra.mxu0 0.0
    %394 = vmatprep.subr.mxu0 0.0
    %395 = vmatpush2.msra.mxu0 0.0
    %396 = vmatprep.subr.mxu0 0.0
    %397 = vmatpush2.msra.mxu0 0.0
    %398 = vmatprep.mubr.f32.mxu0 0.0
    %399 = vmatmul.mubr.f32.gmra.mxu0 %v329
    %v400 = vpop.f32.mrf.mxu0
    %v401 = vadd.f32 0.0, %v400
    %v402 = vpop.f32.mrf.mxu0
    %403 = vmatprep.mubr.f32.mxu0 0.0
    %404 = vmatmul.mubr.f32.gmra.mxu0 %v332
    %v405 = vpop.f32.mrf.mxu0
    %v406 = vadd.f32 0.0, %v405
    %v407 = vpop.f32.mrf.mxu0
    %408 = vdwg.mxu0
    %409 = vrot.lane.b32.xlu0 %v153, 112
    %v410 = vpop.permute.xlu0 %409
    %411 = vrot.lane.b32.xlu0 %v158, 112
    %v412 = vpop.permute.xlu0 %411
    %413 = vrot.lane.b32.xlu0 %v153, 80
    %v414 = vpop.permute.xlu0 %413
    %415 = vrot.lane.b32.xlu0 %v158, 80
    %v416 = vpop.permute.xlu0 %415
    %v417 = vsel %vm212, %v410, 0
    %v419 = vsel %vm212, %v412, 0
    %v421 = vsel %vm212, %v414, 0
    %v423 = vsel %vm212, %v416, 0
    %425 = vmatprep.subr.mxu0 0.0
    %426 = vmatpush1.xpose.msra.mxu0 0.0
    %427 = vmatprep.subr.mxu0 0.0
    %428 = vmatpush1.xpose.msra.mxu0 0.0
    %429 = vmatprep.subr.mxu0 0.0
    %430 = vmatpush1.xpose.msra.mxu0 0.0
    %431 = vmatprep.subr.mxu0 0.0
    %432 = vmatpush1.xpose.msra.mxu0 0.0
    %433 = vmatprep.subr.mxu0 0.0
    %434 = vmatpush1.xpose.msra.mxu0 0.0
    %435 = vmatprep.subr.mxu0 0.0
    %436 = vmatpush1.xpose.msra.mxu0 0.0
    %437 = vmatprep.subr.mxu0 0.0
    %438 = vmatpush1.xpose.msra.mxu0 0.0
    %439 = vmatprep.subr.mxu0 0.0
    %440 = vmatpush1.xpose.msra.mxu0 0.0
    %441 = vmatprep.subr.mxu0 0.0
    %442 = vmatpush1.xpose.msra.mxu0 0.0
    %443 = vmatprep.subr.mxu0 0.0
    %444 = vmatpush1.xpose.msra.mxu0 0.0
    %445 = vmatprep.subr.mxu0 0.0
    %446 = vmatpush1.xpose.msra.mxu0 0.0
    %447 = vmatprep.subr.mxu0 0.0
    %448 = vmatpush1.xpose.msra.mxu0 0.0
    %449 = vmatprep.subr.mxu0 0.0
    %450 = vmatpush1.xpose.msra.mxu0 0.0
    %451 = vmatprep.subr.mxu0 0.0
    %452 = vmatpush1.xpose.msra.mxu0 0.0
    %453 = vmatprep.subr.mxu0 0.0
    %454 = vmatpush1.xpose.msra.mxu0 %v423
    %455 = vmatprep.subr.mxu0 0.0
    %456 = vmatpush1.xpose.msra.mxu0 %v421
    %457 = vmatprep.subr.mxu0 0.0
    %458 = vmatpush2.xpose.msra.mxu0 0.0
    %459 = vmatprep.subr.mxu0 0.0
    %460 = vmatpush2.xpose.msra.mxu0 0.0
    %461 = vmatprep.subr.mxu0 0.0
    %462 = vmatpush2.xpose.msra.mxu0 0.0
    %463 = vmatprep.subr.mxu0 0.0
    %464 = vmatpush2.xpose.msra.mxu0 0.0
    %465 = vmatprep.subr.mxu0 0.0
    %466 = vmatpush2.xpose.msra.mxu0 0.0
    %467 = vmatprep.subr.mxu0 0.0
    %468 = vmatpush2.xpose.msra.mxu0 0.0
    %469 = vmatprep.subr.mxu0 0.0
    %470 = vmatpush2.xpose.msra.mxu0 0.0
    %471 = vmatprep.subr.mxu0 0.0
    %472 = vmatpush2.xpose.msra.mxu0 0.0
    %473 = vmatprep.subr.mxu0 0.0
    %474 = vmatpush2.xpose.msra.mxu0 0.0
    %475 = vmatprep.subr.mxu0 0.0
    %476 = vmatpush2.xpose.msra.mxu0 0.0
    %477 = vmatprep.subr.mxu0 0.0
    %478 = vmatpush2.xpose.msra.mxu0 0.0
    %479 = vmatprep.subr.mxu0 0.0
    %480 = vmatpush2.xpose.msra.mxu0 0.0
    %481 = vmatprep.subr.mxu0 0.0
    %482 = vmatpush2.xpose.msra.mxu0 0.0
    %483 = vmatprep.subr.mxu0 0.0
    %484 = vmatpush2.xpose.msra.mxu0 0.0
    %485 = vmatprep.subr.mxu0 0.0
    %486 = vmatpush2.xpose.msra.mxu0 0.0
    %487 = vmatprep.subr.mxu0 0.0
    %488 = vmatpush2.xpose.msra.mxu0 0.0
    %489 = vmatprep.mubr.f32.mxu0 0.0
    %490 = vmatmul.mubr.f32.gmra.mxu0 %v417
    %v491 = vpop.f32.mrf.mxu0
    %v492 = vadd.f32 0.0, %v491
    %v493 = vpop.f32.mrf.mxu0
    %494 = vmatprep.mubr.f32.mxu0 0.0
    %495 = vmatmul.mubr.f32.gmra.mxu0 %v419
    %v496 = vpop.f32.mrf.mxu0
    %v497 = vadd.f32 0.0, %v496
    %v498 = vpop.f32.mrf.mxu0
    %499 = vdwg.mxu0
    %v500 = vmul.f32 %v492, 0.25
    %v501 = vmul.f32 %v497, 0.25
    %v502 = vadd.f32 %v500, %v204
    %v503 = vadd.f32 %v501, %v205
    %v504 = vsel %vm212, %v502, -inf
    %505 = vmax.xlane.f32.xlu0 %v504
    %v506 = vpop.xlane.xlu0 %505
    %v507 = vsel %vm212, %v503, -inf
    %508 = vmax.xlane.f32.xlu0 %v507
    %v509 = vpop.xlane.xlu0 %508
    %v510 = vsub.f32 %v502, %v506
    %v511 = vsub.f32 %v503, %v509
    %v512 = vmul.f32 %v510, 1.442695
    %v513 = vpow.pop %v512
    %v514 = vmul.f32 %v511, 1.442695
    %v515 = vpow.pop %v514
    %v516 = vsel %vm212, %v513, 0.0
    %517 = vadd.xlane.f32.xlu0 %v516
    %v518 = vpop.xlane.xlu0 %517
    %v519 = vsel %vm212, %v515, 0.0
    %520 = vadd.xlane.f32.xlu0 %v519
    %v521 = vpop.xlane.xlu0 %520
    %v522 = vrcp.pop %v518
    %v523 = vrcp.pop %v521
    %v524 = vmul.f32 %v513, %v522
    %v525 = vmul.f32 %v515, %v523
    %526 = vrot.lane.b32.xlu0 %v153, 48
    %v527 = vpop.permute.xlu0 %526
    %528 = vrot.lane.b32.xlu0 %v158, 48
    %v529 = vpop.permute.xlu0 %528
    %v533 = vsel %vm212, %v524, 0
    %v536 = vsel %vm212, %v525, 0
    %538 = vmatprep.subr.mxu0 0.0
    %539 = vmatpush1.msra.mxu0 0.0
    %540 = vmatprep.subr.mxu0 0.0
    %541 = vmatpush1.msra.mxu0 0.0
    %542 = vmatprep.subr.mxu0 0.0
    %543 = vmatpush1.msra.mxu0 0.0
    %544 = vmatprep.subr.mxu0 0.0
    %545 = vmatpush1.msra.mxu0 0.0
    %546 = vmatprep.subr.mxu0 0.0
    %547 = vmatpush1.msra.mxu0 0.0
    %548 = vmatprep.subr.mxu0 0.0
    %549 = vmatpush1.msra.mxu0 0.0
    %550 = vmatprep.subr.mxu0 0.0
    %551 = vmatpush1.msra.mxu0 0.0
    %552 = vmatprep.subr.mxu0 0.0
    %553 = vmatpush1.msra.mxu0 0.0
    %554 = vmatprep.subr.mxu0 0.0
    %555 = vmatpush1.msra.mxu0 0.0
    %556 = vmatprep.subr.mxu0 0.0
    %557 = vmatpush1.msra.mxu0 0.0
    %558 = vmatprep.subr.mxu0 0.0
    %559 = vmatpush1.msra.mxu0 0.0
    %560 = vmatprep.subr.mxu0 0.0
    %561 = vmatpush1.msra.mxu0 0.0
    %562 = vmatprep.subr.mxu0 0.0
    %563 = vmatpush1.msra.mxu0 0.0
    %564 = vmatprep.subr.mxu0 0.0
    %565 = vmatpush1.msra.mxu0 0.0
    %566 = vmatprep.subr.mxu0 0.0
    %567 = vmatpush1.msra.mxu0 %v529
    %568 = vmatprep.subr.mxu0 0.0
    %569 = vmatpush1.msra.mxu0 %v527
    %570 = vmatprep.subr.mxu0 0.0
    %571 = vmatpush2.msra.mxu0 0.0
    %572 = vmatprep.subr.mxu0 0.0
    %573 = vmatpush2.msra.mxu0 0.0
    %574 = vmatprep.subr.mxu0 0.0
    %575 = vmatpush2.msra.mxu0 0.0
    %576 = vmatprep.subr.mxu0 0.0
    %577 = vmatpush2.msra.mxu0 0.0
    %578 = vmatprep.subr.mxu0 0.0
    %579 = vmatpush2.msra.mxu0 0.0
    %580 = vmatprep.subr.mxu0 0.0
    %581 = vmatpush2.msra.mxu0 0.0
    %582 = vmatprep.subr.mxu0 0.0
    %583 = vmatpush2.msra.mxu0 0.0
    %584 = vmatprep.subr.mxu0 0.0
    %585 = vmatpush2.msra.mxu0 0.0
    %586 = vmatprep.subr.mxu0 0.0
    %587 = vmatpush2.msra.mxu0 0.0
    %588 = vmatprep.subr.mxu0 0.0
    %589 = vmatpush2.msra.mxu0 0.0
    %590 = vmatprep.subr.mxu0 0.0
    %591 = vmatpush2.msra.mxu0 0.0
    %592 = vmatprep.subr.mxu0 0.0
    %593 = vmatpush2.msra.mxu0 0.0
    %594 = vmatprep.subr.mxu0 0.0
    %595 = vmatpush2.msra.mxu0 0.0
    %596 = vmatprep.subr.mxu0 0.0
    %597 = vmatpush2.msra.mxu0 0.0
    %598 = vmatprep.subr.mxu0 0.0
    %599 = vmatpush2.msra.mxu0 0.0
    %600 = vmatprep.subr.mxu0 0.0
    %601 = vmatpush2.msra.mxu0 0.0
    %602 = vmatprep.mubr.f32.mxu0 0.0
    %603 = vmatmul.mubr.f32.gmra.mxu0 %v533
    %v604 = vpop.f32.mrf.mxu0
    %v605 = vadd.f32 0.0, %v604
    %v606 = vpop.f32.mrf.mxu0
    %607 = vmatprep.mubr.f32.mxu0 0.0
    %608 = vmatmul.mubr.f32.gmra.mxu0 %v536
    %v609 = vpop.f32.mrf.mxu0
    %v610 = vadd.f32 0.0, %v609
    %v611 = vpop.f32.mrf.mxu0
    %612 = vdwg.mxu0
    %615 = vrot.lane.b32.xlu0 %v605, 16
    %v616 = vpop.permute.xlu0 %615
    %617 = vrot.lane.b32.xlu0 %v610, 16
    %v618 = vpop.permute.xlu0 %617
    %v621 = vsel %vm212, %v401, %v616
    %v622 = vsel %vm212, %v406, %v618
    %v623 = vld [vmem:[#allocation2 + $0x40] sm:$0xff]
    %v624 = vld [vmem:[#allocation2 + $0x48] sm:$0xff]
    %v625 = vld [vmem:[#allocation2 + $0x50] sm:$0xff]
    %v626 = vld [vmem:[#allocation2 + $0x58] sm:$0xff]
    %v627 = vld [vmem:[#allocation2 + $0x60] sm:$0x1]
    %v628 = vlaneseq
    %v629 = vshrl.u32 %v628, 7
    %v630 = vsub.s32 0, %v629
    %v631 = vrot.slane %v627, %v630
    %v633 = vsel %vm79, %v621, 0
    %v636 = vsel %vm79, %v622, 0
    %638 = vmatprep.subr.mxu0 0.0
    %639 = vmatpush1.msra.mxu0 0.0
    %640 = vmatprep.subr.mxu0 0.0
    %641 = vmatpush1.msra.mxu0 0.0
    %642 = vmatprep.subr.mxu0 0.0
    %643 = vmatpush1.msra.mxu0 0.0
    %644 = vmatprep.subr.mxu0 0.0
    %645 = vmatpush1.msra.mxu0 0.0
    %646 = vmatprep.subr.mxu0 0.0
    %647 = vmatpush1.msra.mxu0 0.0
    %648 = vmatprep.subr.mxu0 0.0
    %649 = vmatpush1.msra.mxu0 0.0
    %650 = vmatprep.subr.mxu0 0.0
    %651 = vmatpush1.msra.mxu0 0.0
    %652 = vmatprep.subr.mxu0 0.0
    %653 = vmatpush1.msra.mxu0 0.0
    %654 = vmatprep.subr.mxu0 0.0
    %655 = vmatpush1.msra.mxu0 0.0
    %656 = vmatprep.subr.mxu0 0.0
    %657 = vmatpush1.msra.mxu0 0.0
    %658 = vmatprep.subr.mxu0 0.0
    %659 = vmatpush1.msra.mxu0 0.0
    %660 = vmatprep.subr.mxu0 0.0
    %661 = vmatpush1.msra.mxu0 0.0
    %662 = vmatprep.subr.mxu0 0.0
    %663 = vmatpush1.msra.mxu0 %v626
    %664 = vmatprep.subr.mxu0 0.0
    %665 = vmatpush1.msra.mxu0 %v625
    %666 = vmatprep.subr.mxu0 0.0
    %667 = vmatpush1.msra.mxu0 %v624
    %668 = vmatprep.subr.mxu0 0.0
    %669 = vmatpush1.msra.mxu0 %v623
    %670 = vmatprep.subr.mxu0 0.0
    %671 = vmatpush2.msra.mxu0 0.0
    %672 = vmatprep.subr.mxu0 0.0
    %673 = vmatpush2.msra.mxu0 0.0
    %674 = vmatprep.subr.mxu0 0.0
    %675 = vmatpush2.msra.mxu0 0.0
    %676 = vmatprep.subr.mxu0 0.0
    %677 = vmatpush2.msra.mxu0 0.0
    %678 = vmatprep.subr.mxu0 0.0
    %679 = vmatpush2.msra.mxu0 0.0
    %680 = vmatprep.subr.mxu0 0.0
    %681 = vmatpush2.msra.mxu0 0.0
    %682 = vmatprep.subr.mxu0 0.0
    %683 = vmatpush2.msra.mxu0 0.0
    %684 = vmatprep.subr.mxu0 0.0
    %685 = vmatpush2.msra.mxu0 0.0
    %686 = vmatprep.subr.mxu0 0.0
    %687 = vmatpush2.msra.mxu0 0.0
    %688 = vmatprep.subr.mxu0 0.0
    %689 = vmatpush2.msra.mxu0 0.0
    %690 = vmatprep.subr.mxu0 0.0
    %691 = vmatpush2.msra.mxu0 0.0
    %692 = vmatprep.subr.mxu0 0.0
    %693 = vmatpush2.msra.mxu0 0.0
    %694 = vmatprep.subr.mxu0 0.0
    %695 = vmatpush2.msra.mxu0 0.0
    %696 = vmatprep.subr.mxu0 0.0
    %697 = vmatpush2.msra.mxu0 0.0
    %698 = vmatprep.subr.mxu0 0.0
    %699 = vmatpush2.msra.mxu0 0.0
    %700 = vmatprep.subr.mxu0 0.0
    %701 = vmatpush2.msra.mxu0 0.0
    %702 = vmatprep.mubr.f32.mxu0 0.0
    %703 = vmatmul.mubr.f32.gmra.mxu0 %v633
    %v704 = vpop.f32.mrf.mxu0
    %v705 = vadd.f32 %v631, %v704
    %v706 = vpop.f32.mrf.mxu0
    %707 = vmatprep.mubr.f32.mxu0 0.0
    %708 = vmatmul.mubr.f32.gmra.mxu0 %v636
    %v709 = vpop.f32.mrf.mxu0
    %v710 = vadd.f32 %v631, %v709
    %v711 = vpop.f32.mrf.mxu0
    %712 = vdwg.mxu0
    %v713 = vld [vmem:[#allocation2 + $0x68] sm:$0xf]
    %v714 = vadd.f32 %v68, %v705
    %v715 = vadd.f32 %v69, %v710
    %v716 = vsel %vm79, %v714, 0.0
    %717 = vadd.xlane.f32.xlu0 %v716
    %v718 = vpop.xlane.xlu0 %717
    %v719 = vsel %vm79, %v715, 0.0
    %720 = vadd.xlane.f32.xlu0 %v719
    %v721 = vpop.xlane.xlu0 %720
    %v722 = vrcp.pop 32.0
    %v723 = vmul.f32 %v718, %v722
    %v724 = vmul.f32 %v721, %v722
    %v725 = vsub.f32 %v714, %v723
    %v726 = vsub.f32 %v715, %v724
    %v727 = vmul.f32 %v725, %v725
    %v728 = vmul.f32 %v726, %v726
    %v729 = vsel %vm79, %v727, 0.0
    %730 = vadd.xlane.f32.xlu0 %v729
    %v731 = vpop.xlane.xlu0 %730
    %v732 = vsel %vm79, %v728, 0.0
    %733 = vadd.xlane.f32.xlu0 %v732
    %v734 = vpop.xlane.xlu0 %733
    %v735 = vmul.f32 %v731, %v722
    %v736 = vmul.f32 %v734, %v722
    %v737 = vadd.f32 %v735, 1e-05
    %v738 = vadd.f32 %v736, 1e-05
    %v739 = vrsqrt.pop %v737
    %v740 = vrsqrt.pop %v738
    %v741 = vmul.f32 %v725, %v739
    %v742 = vmul.f32 %v726, %v740
    %v743 = vlaneseq
    %v744 = vshrl.u32 %v743, 7
    %v745 = vsub.s32 0, %v744
    %v746 = vrot.slane %v713, %v745
    %v747 = vmul.f32 %v741, %v746
    %v748 = vmul.f32 %v742, %v746
    %v749 = vlaneseq
    %v750 = vshrl.u32 %v749, 7
    %v751 = vsub.s32 1, %v750
    %v752 = vrot.slane %v713, %v751
    %v753 = vadd.f32 %v747, %v752
    %v754 = vadd.f32 %v748, %v752
    %v755 = vld [vmem:[#allocation2 + $0x70] sm:$0xff]
    %v756 = vld [vmem:[#allocation2 + $0x78] sm:$0xff]
    %v757 = vld [vmem:[#allocation2 + $0x80] sm:$0xff]
    %v758 = vld [vmem:[#allocation2 + $0x88] sm:$0xff]
    %v759 = vld [vmem:[#allocation2 + $0x90] sm:$0x1]
    %v760 = vlaneseq
    %v761 = vshrl.u32 %v760, 7
    %v762 = vsub.s32 0, %v761
    %v763 = vrot.slane %v759, %v762
    %v765 = vsel %vm79, %v753, 0
    %v768 = vsel %vm79, %v754, 0
    %770 = vmatprep.subr.mxu0 0.0
    %771 = vmatpush1.msra.mxu0 0.0
    %772 = vmatprep.subr.mxu0 0.0
    %773 = vmatpush1.msra.mxu0 0.0
    %774 = vmatprep.subr.mxu0 0.0
    %775 = vmatpush1.msra.mxu0 0.0
    %776 = vmatprep.subr.mxu0 0.0
    %777 = vmatpush1.msra.mxu0 0.0
    %778 = vmatprep.subr.mxu0 0.0
    %779 = vmatpush1.msra.mxu0 0.0
    %780 = vmatprep.subr.mxu0 0.0
    %781 = vmatpush1.msra.mxu0 0.0
    %782 = vmatprep.subr.mxu0 0.0
    %783 = vmatpush1.msra.mxu0 0.0
    %784 = vmatprep.subr.mxu0 0.0
    %785 = vmatpush1.msra.mxu0 0.0
    %786 = vmatprep.subr.mxu0 0.0
    %787 = vmatpush1.msra.mxu0 0.0
    %788 = vmatprep.subr.mxu0 0.0
    %789 = vmatpush1.msra.mxu0 0.0
    %790 = vmatprep.subr.mxu0 0.0
    %791 = vmatpush1.msra.mxu0 0.0
    %792 = vmatprep.subr.mxu0 0.0
    %793 = vmatpush1.msra.mxu0 0.0
    %794 = vmatprep.subr.mxu0 0.0
    %795 = vmatpush1.msra.mxu0 %v758
    %796 = vmatprep.subr.mxu0 0.0
    %797 = vmatpush1.msra.mxu0 %v757
    %798 = vmatprep.subr.mxu0 0.0
    %799 = vmatpush1.msra.mxu0 %v756
    %800 = vmatprep.subr.mxu0 0.0
    %801 = vmatpush1.msra.mxu0 %v755
    %802 = vmatprep.subr.mxu0 0.0
    %803 = vmatpush2.msra.mxu0 0.0
    %804 = vmatprep.subr.mxu0 0.0
    %805 = vmatpush2.msra.mxu0 0.0
    %806 = vmatprep.subr.mxu0 0.0
    %807 = vmatpush2.msra.mxu0 0.0
    %808 = vmatprep.subr.mxu0 0.0
    %809 = vmatpush2.msra.mxu0 0.0
    %810 = vmatprep.subr.mxu0 0.0
    %811 = vmatpush2.msra.mxu0 0.0
    %812 = vmatprep.subr.mxu0 0.0
    %813 = vmatpush2.msra.mxu0 0.0
    %814 = vmatprep.subr.mxu0 0.0
    %815 = vmatpush2.msra.mxu0 0.0
    %816 = vmatprep.subr.mxu0 0.0
    %817 = vmatpush2.msra.mxu0 0.0
    %818 = vmatprep.subr.mxu0 0.0
    %819 = vmatpush2.msra.mxu0 0.0
    %820 = vmatprep.subr.mxu0 0.0
    %821 = vmatpush2.msra.mxu0 0.0
    %822 = vmatprep.subr.mxu0 0.0
    %823 = vmatpush2.msra.mxu0 0.0
    %824 = vmatprep.subr.mxu0 0.0
    %825 = vmatpush2.msra.mxu0 0.0
    %826 = vmatprep.subr.mxu0 0.0
    %827 = vmatpush2.msra.mxu0 0.0
    %828 = vmatprep.subr.mxu0 0.0
    %829 = vmatpush2.msra.mxu0 0.0
    %830 = vmatprep.subr.mxu0 0.0
    %831 = vmatpush2.msra.mxu0 0.0
    %832 = vmatprep.subr.mxu0 0.0
    %833 = vmatpush2.msra.mxu0 0.0
    %834 = vmatprep.mubr.f32.mxu0 0.0
    %835 = vmatmul.mubr.f32.gmra.mxu0 %v765
    %v836 = vpop.f32.mrf.mxu0
    %v837 = vadd.f32 %v763, %v836
    %v838 = vpop.f32.mrf.mxu0
    %839 = vmatprep.mubr.f32.mxu0 0.0
    %840 = vmatmul.mubr.f32.gmra.mxu0 %v768
    %v841 = vpop.f32.mrf.mxu0
    %v842 = vadd.f32 %v763, %v841
    %v843 = vpop.f32.mrf.mxu0
    %844 = vdwg.mxu0
    %v845 = vmax.f32 %v837, 0.0
    %v846 = vmax.f32 %v842, 0.0
    %v847 = vld [vmem:[#allocation2 + $0x98] sm:$0xff]
    %v848 = vld [vmem:[#allocation2 + $0xa0] sm:$0xff]
    %v849 = vld [vmem:[#allocation2 + $0xa8] sm:$0xff]
    %v850 = vld [vmem:[#allocation2 + $0xb0] sm:$0xff]
    %v851 = vld [vmem:[#allocation2 + $0xb8] sm:$0xff]
    %v852 = vld [vmem:[#allocation2 + $0xc0] sm:$0xff]
    %v853 = vld [vmem:[#allocation2 + $0xc8] sm:$0xff]
    %v854 = vld [vmem:[#allocation2 + $0xd0] sm:$0xff]
    %v855 = vld [vmem:[#allocation2 + $0xd8] sm:$0x1]
    %v856 = vlaneseq
    %v857 = vshrl.u32 %v856, 7
    %v858 = vsub.s32 0, %v857
    %v859 = vrot.slane %v855, %v858
    %vm860 = vcmask 523264
    %v862 = vsel %vm860, %v845, 0
    %v865 = vsel %vm860, %v846, 0
    %867 = vmatprep.subr.mxu0 0.0
    %868 = vmatpush1.msra.mxu0 0.0
    %869 = vmatprep.subr.mxu0 0.0
    %870 = vmatpush1.msra.mxu0 0.0
    %871 = vmatprep.subr.mxu0 0.0
    %872 = vmatpush1.msra.mxu0 0.0
    %873 = vmatprep.subr.mxu0 0.0
    %874 = vmatpush1.msra.mxu0 0.0
    %875 = vmatprep.subr.mxu0 0.0
    %876 = vmatpush1.msra.mxu0 0.0
    %877 = vmatprep.subr.mxu0 0.0
    %878 = vmatpush1.msra.mxu0 0.0
    %879 = vmatprep.subr.mxu0 0.0
    %880 = vmatpush1.msra.mxu0 0.0
    %881 = vmatprep.subr.mxu0 0.0
    %882 = vmatpush1.msra.mxu0 0.0
    %883 = vmatprep.subr.mxu0 0.0
    %884 = vmatpush1.msra.mxu0 %v854
    %885 = vmatprep.subr.mxu0 0.0
    %886 = vmatpush1.msra.mxu0 %v853
    %887 = vmatprep.subr.mxu0 0.0
    %888 = vmatpush1.msra.mxu0 %v852
    %889 = vmatprep.subr.mxu0 0.0
    %890 = vmatpush1.msra.mxu0 %v851
    %891 = vmatprep.subr.mxu0 0.0
    %892 = vmatpush1.msra.mxu0 %v850
    %893 = vmatprep.subr.mxu0 0.0
    %894 = vmatpush1.msra.mxu0 %v849
    %895 = vmatprep.subr.mxu0 0.0
    %896 = vmatpush1.msra.mxu0 %v848
    %897 = vmatprep.subr.mxu0 0.0
    %898 = vmatpush1.msra.mxu0 %v847
    %899 = vmatprep.subr.mxu0 0.0
    %900 = vmatpush2.msra.mxu0 0.0
    %901 = vmatprep.subr.mxu0 0.0
    %902 = vmatpush2.msra.mxu0 0.0
    %903 = vmatprep.subr.mxu0 0.0
    %904 = vmatpush2.msra.mxu0 0.0
    %905 = vmatprep.subr.mxu0 0.0
    %906 = vmatpush2.msra.mxu0 0.0
    %907 = vmatprep.subr.mxu0 0.0
    %908 = vmatpush2.msra.mxu0 0.0
    %909 = vmatprep.subr.mxu0 0.0
    %910 = vmatpush2.msra.mxu0 0.0
    %911 = vmatprep.subr.mxu0 0.0
    %912 = vmatpush2.msra.mxu0 0.0
    %913 = vmatprep.subr.mxu0 0.0
    %914 = vmatpush2.msra.mxu0 0.0
    %915 = vmatprep.subr.mxu0 0.0
    %916 = vmatpush2.msra.mxu0 0.0
    %917 = vmatprep.subr.mxu0 0.0
    %918 = vmatpush2.msra.mxu0 0.0
    %919 = vmatprep.subr.mxu0 0.0
    %920 = vmatpush2.msra.mxu0 0.0
    %921 = vmatprep.subr.mxu0 0.0
    %922 = vmatpush2.msra.mxu0 0.0
    %923 = vmatprep.subr.mxu0 0.0
    %924 = vmatpush2.msra.mxu0 0.0
    %925 = vmatprep.subr.mxu0 0.0
    %926 = vmatpush2.msra.mxu0 0.0
    %927 = vmatprep.subr.mxu0 0.0
    %928 = vmatpush2.msra.mxu0 0.0
    %929 = vmatprep.subr.mxu0 0.0
    %930 = vmatpush2.msra.mxu0 0.0
    %931 = vmatprep.mubr.f32.mxu0 0.0
    %932 = vmatmul.mubr.f32.gmra.mxu0 %v862
    %v933 = vpop.f32.mrf.mxu0
    %v934 = vadd.f32 %v859, %v933
    %v935 = vpop.f32.mrf.mxu0
    %936 = vmatprep.mubr.f32.mxu0 0.0
    %937 = vmatmul.mubr.f32.gmra.mxu0 %v865
    %v938 = vpop.f32.mrf.mxu0
    %v939 = vadd.f32 %v859, %v938
    %v940 = vpop.f32.mrf.mxu0
    %941 = vdwg.mxu0
    %v942 = vadd.f32 %v753, %v934
    %v943 = vadd.f32 %v754, %v939
    %v944 = vsel %vm79, %v942, 0.0
    %945 = vadd.xlane.f32.xlu0 %v944
    %v946 = vpop.xlane.xlu0 %945
    %v947 = vsel %vm79, %v943, 0.0
    %948 = vadd.xlane.f32.xlu0 %v947
    %v949 = vpop.xlane.xlu0 %948
    %v950 = vmul.f32 %v946, %v722
    %v951 = vmul.f32 %v949, %v722
    %v952 = vsub.f32 %v942, %v950
    %v953 = vsub.f32 %v943, %v951
    %v954 = vmul.f32 %v952, %v952
    %v955 = vmul.f32 %v953, %v953
    %v956 = vsel %vm79, %v954, 0.0
    %957 = vadd.xlane.f32.xlu0 %v956
    %v958 = vpop.xlane.xlu0 %957
    %v959 = vsel %vm79, %v955, 0.0
    %960 = vadd.xlane.f32.xlu0 %v959
    %v961 = vpop.xlane.xlu0 %960
    %v962 = vmul.f32 %v958, %v722
    %v963 = vmul.f32 %v961, %v722
    %v964 = vadd.f32 %v962, 1e-05
    %v965 = vadd.f32 %v963, 1e-05
    %v966 = vrsqrt.pop %v964
    %v967 = vrsqrt.pop %v965
    %v968 = vmul.f32 %v952, %v966
    %v969 = vmul.f32 %v953, %v967
    %v970 = vlaneseq
    %v971 = vshrl.u32 %v970, 7
    %v972 = vsub.s32 2, %v971
    %v973 = vrot.slane %v713, %v972
    %v974 = vmul.f32 %v968, %v973
    %v975 = vmul.f32 %v969, %v973
    %v976 = vlaneseq
    %v977 = vshrl.u32 %v976, 7
    %v978 = vsub.s32 3, %v977
    %v979 = vrot.slane %v713, %v978
    %v980 = vadd.f32 %v974, %v979
    %v981 = vadd.f32 %v975, %v979
    %v982 = vld [vmem:[%s1] sm:$0xff]
    %v983 = vld [vmem:[%s1 + $0x8] sm:$0xff]
    %v984 = vld [vmem:[%s1 + $0x10] sm:$0xff]
    %v985 = vld [vmem:[#allocation2 + $0xf8] sm:$0x3]
    %v986 = vld [vmem:[#allocation2 + $0xe0] sm:$0xff]
    %v987 = vld [vmem:[#allocation2 + $0xe8] sm:$0xff]
    %v988 = vld [vmem:[#allocation2 + $0xf0] sm:$0xff]
    %990 = vset.pattern.permute.xlu0 0
    %991 = vperm.xlu0 %990, %v982
    %v992 = vpop.permute.xlu0 %991
    %995 = vset.pattern.permute.xlu0 0
    %996 = vperm.xlu0 %995, %v983
    %v997 = vpop.permute.xlu0 %996
    %1000 = vset.pattern.permute.xlu0 0
    %1001 = vperm.xlu0 %1000, %v984
    %v1002 = vpop.permute.xlu0 %1001
    %v1004 = vlaneseq
    %v1005 = vshrl.u32 %v1004, 7
    %v1006 = vsub.s32 0, %v1005
    %v1007 = vrot.slane %v985, %v1006
    %v1008 = vmul.f32 %v992, %v1007
    %v1009 = vmul.f32 %v997, %v1007
    %v1010 = vmul.f32 %v1002, %v1007
    %1011 = vset.pattern.permute.xlu0 1
    %1012 = vperm.xlu0 %1011, %v982
    %v1013 = vpop.permute.xlu0 %1012
    %1015 = vset.pattern.permute.xlu0 1
    %1016 = vperm.xlu0 %1015, %v983
    %v1017 = vpop.permute.xlu0 %1016
    %1019 = vset.pattern.permute.xlu0 1
    %1020 = vperm.xlu0 %1019, %v984
    %v1021 = vpop.permute.xlu0 %1020
    %v1023 = vlaneseq
    %v1024 = vshrl.u32 %v1023, 7
    %v1025 = vsub.s32 1, %v1024
    %v1026 = vrot.slane %v985, %v1025
    %v1027 = vmul.f32 %v1013, %v1026
    %v1028 = vmul.f32 %v1017, %v1026
    %v1029 = vmul.f32 %v1021, %v1026
    %v1030 = vadd.f32 %v1008, %v1027
    %v1031 = vadd.f32 %v1009, %v1028
    %v1032 = vadd.f32 %v1010, %v1029
    %v1033 = vadd.f32 %v1030, %v986
    %v1034 = vadd.f32 %v1031, %v987
    %v1035 = vadd.f32 %v1032, %v988
    %v1036 = vld [vmem:[#allocation2 + $0x100] sm:$0xff]
    %v1037 = vld [vmem:[#allocation2 + $0x108] sm:$0xff]
    %v1038 = vld [vmem:[#allocation2 + $0x110] sm:$0xff]
    %v1039 = vld [vmem:[#allocation2 + $0x118] sm:$0xff]
    %v1040 = vld [vmem:[#allocation2 + $0x120] sm:$0x1]
    %v1041 = vlaneseq
    %v1042 = vshrl.u32 %v1041, 7
    %v1043 = vsub.s32 0, %v1042
    %v1044 = vrot.slane %v1040, %v1043
    %v1046 = vsel %vm79, %v1033, 0
    %v1049 = vsel %vm79, %v1034, 0
    %v1052 = vsel %vm79, %v1035, 0
    %1054 = vmatprep.subr.mxu0 0.0
    %1055 = vmatpush1.msra.mxu0 0.0
    %1056 = vmatprep.subr.mxu0 0.0
    %1057 = vmatpush1.msra.mxu0 0.0
    %1058 = vmatprep.subr.mxu0 0.0
    %1059 = vmatpush1.msra.mxu0 0.0
    %1060 = vmatprep.subr.mxu0 0.0
    %1061 = vmatpush1.msra.mxu0 0.0
    %1062 = vmatprep.subr.mxu0 0.0
    %1063 = vmatpush1.msra.mxu0 0.0
    %1064 = vmatprep.subr.mxu0 0.0
    %1065 = vmatpush1.msra.mxu0 0.0
    %1066 = vmatprep.subr.mxu0 0.0
    %1067 = vmatpush1.msra.mxu0 0.0
    %1068 = vmatprep.subr.mxu0 0.0
    %1069 = vmatpush1.msra.mxu0 0.0
    %1070 = vmatprep.subr.mxu0 0.0
    %1071 = vmatpush1.msra.mxu0 0.0
    %1072 = vmatprep.subr.mxu0 0.0
    %1073 = vmatpush1.msra.mxu0 0.0
    %1074 = vmatprep.subr.mxu0 0.0
    %1075 = vmatpush1.msra.mxu0 0.0
    %1076 = vmatprep.subr.mxu0 0.0
    %1077 = vmatpush1.msra.mxu0 0.0
    %1078 = vmatprep.subr.mxu0 0.0
    %1079 = vmatpush1.msra.mxu0 %v1039
    %1080 = vmatprep.subr.mxu0 0.0
    %1081 = vmatpush1.msra.mxu0 %v1038
    %1082 = vmatprep.subr.mxu0 0.0
    %1083 = vmatpush1.msra.mxu0 %v1037
    %1084 = vmatprep.subr.mxu0 0.0
    %1085 = vmatpush1.msra.mxu0 %v1036
    %1086 = vmatprep.subr.mxu0 0.0
    %1087 = vmatpush2.msra.mxu0 0.0
    %1088 = vmatprep.subr.mxu0 0.0
    %1089 = vmatpush2.msra.mxu0 0.0
    %1090 = vmatprep.subr.mxu0 0.0
    %1091 = vmatpush2.msra.mxu0 0.0
    %1092 = vmatprep.subr.mxu0 0.0
    %1093 = vmatpush2.msra.mxu0 0.0
    %1094 = vmatprep.subr.mxu0 0.0
    %1095 = vmatpush2.msra.mxu0 0.0
    %1096 = vmatprep.subr.mxu0 0.0
    %1097 = vmatpush2.msra.mxu0 0.0
    %1098 = vmatprep.subr.mxu0 0.0
    %1099 = vmatpush2.msra.mxu0 0.0
    %1100 = vmatprep.subr.mxu0 0.0
    %1101 = vmatpush2.msra.mxu0 0.0
    %1102 = vmatprep.subr.mxu0 0.0
    %1103 = vmatpush2.msra.mxu0 0.0
    %1104 = vmatprep.subr.mxu0 0.0
    %1105 = vmatpush2.msra.mxu0 0.0
    %1106 = vmatprep.subr.mxu0 0.0
    %1107 = vmatpush2.msra.mxu0 0.0
    %1108 = vmatprep.subr.mxu0 0.0
    %1109 = vmatpush2.msra.mxu0 0.0
    %1110 = vmatprep.subr.mxu0 0.0
    %1111 = vmatpush2.msra.mxu0 0.0
    %1112 = vmatprep.subr.mxu0 0.0
    %1113 = vmatpush2.msra.mxu0 0.0
    %1114 = vmatprep.subr.mxu0 0.0
    %1115 = vmatpush2.msra.mxu0 0.0
    %1116 = vmatprep.subr.mxu0 0.0
    %1117 = vmatpush2.msra.mxu0 0.0
    %1118 = vmatprep.mubr.f32.mxu0 0.0
    %1119 = vmatmul.mubr.f32.gmra.mxu0 %v1046
    %v1120 = vpop.f32.mrf.mxu0
    %v1121 = vadd.f32 %v1044, %v1120
    %v1122 = vpop.f32.mrf.mxu0
    %1123 = vmatprep.mubr.f32.mxu0 0.0
    %1124 = vmatmul.mubr.f32.gmra.mxu0 %v1049
    %v1125 = vpop.f32.mrf.mxu0
    %v1126 = vadd.f32 %v1044, %v1125
    %v1127 = vpop.f32.mrf.mxu0
    %1128 = vmatprep.mubr.f32.mxu0 0.0
    %1129 = vmatmul.mubr.f32.gmra.mxu0 %v1052
    %v1130 = vpop.f32.mrf.mxu0
    %v1131 = vadd.f32 %v1044, %v1130
    %v1132 = vpop.f32.mrf.mxu0
    %1133 = vdwg.mxu0
    %v1134 = vadd.s32 %v162, 16
    %vm1135 = vcmp.lt.s32.totalorder %v1134, 0
    %v1136 = vsub.s32 0, %v1134
    %v1137 = vsel %vm1135, %v1136, %v1134
    %v1138 = vshrl.u32 %v1137, 1
    %v1139 = vand.u32 %v1137, 1
    %v1140 = vsub.s32 0, %v1139
    %v1141 = vsel %vm1135, %v1140, %v1139
    %vm1142 = vcmp.ne.s32.totalorder %v1141, 0
    %vm1143 = vcmp.lt.s32.totalorder %v1141, 0
    %vm1144 = vmand %vm1143, %vm1142
    %v1145 = vadd.s32 %v1141, 2
    %v1146 = vsel %vm1144, %v1145, %v1141
    %vm1147 = vcmp.eq.s32.totalorder %v1146, %v201
    %v1148 = vsel %vm1147, 0.0, -1e+30
    %1152 = vrot.lane.b32.xlu0 %v1121, 96
    %v1153 = vpop.permute.xlu0 %1152
    %1154 = vrot.lane.b32.xlu0 %v1126, 96
    %v1155 = vpop.permute.xlu0 %1154
    %1156 = vrot.lane.b32.xlu0 %v1131, 96
    %v1157 = vpop.permute.xlu0 %1156
    %v1158 = vsel %vm212, %v1121, 0
    %v1160 = vsel %vm212, %v1126, 0
    %v1162 = vsel %vm212, %v1131, 0
    %v1164 = vsel %vm212, %v1153, 0
    %v1166 = vsel %vm212, %v1155, 0
    %v1168 = vsel %vm212, %v1157, 0
    %1170 = vmatprep.subr.mxu0 0.0
    %1171 = vmatpush1.xpose.msra.mxu0 0.0
    %1172 = vmatprep.subr.mxu0 0.0
    %1173 = vmatpush1.xpose.msra.mxu0 0.0
    %1174 = vmatprep.subr.mxu0 0.0
    %1175 = vmatpush1.xpose.msra.mxu0 0.0
    %1176 = vmatprep.subr.mxu0 0.0
    %1177 = vmatpush1.xpose.msra.mxu0 0.0
    %1178 = vmatprep.subr.mxu0 0.0
    %1179 = vmatpush1.xpose.msra.mxu0 0.0
    %1180 = vmatprep.subr.mxu0 0.0
    %1181 = vmatpush1.xpose.msra.mxu0 0.0
    %1182 = vmatprep.subr.mxu0 0.0
    %1183 = vmatpush1.xpose.msra.mxu0 0.0
    %1184 = vmatprep.subr.mxu0 0.0
    %1185 = vmatpush1.xpose.msra.mxu0 0.0
    %1186 = vmatprep.subr.mxu0 0.0
    %1187 = vmatpush1.xpose.msra.mxu0 0.0
    %1188 = vmatprep.subr.mxu0 0.0
    %1189 = vmatpush1.xpose.msra.mxu0 0.0
    %1190 = vmatprep.subr.mxu0 0.0
    %1191 = vmatpush1.xpose.msra.mxu0 0.0
    %1192 = vmatprep.subr.mxu0 0.0
    %1193 = vmatpush1.xpose.msra.mxu0 0.0
    %1194 = vmatprep.subr.mxu0 0.0
    %1195 = vmatpush1.xpose.msra.mxu0 0.0
    %1196 = vmatprep.subr.mxu0 0.0
    %1197 = vmatpush1.xpose.msra.mxu0 %v1168
    %1198 = vmatprep.subr.mxu0 0.0
    %1199 = vmatpush1.xpose.msra.mxu0 %v1166
    %1200 = vmatprep.subr.mxu0 0.0
    %1201 = vmatpush1.xpose.msra.mxu0 %v1164
    %1202 = vmatprep.subr.mxu0 0.0
    %1203 = vmatpush2.xpose.msra.mxu0 0.0
    %1204 = vmatprep.subr.mxu0 0.0
    %1205 = vmatpush2.xpose.msra.mxu0 0.0
    %1206 = vmatprep.subr.mxu0 0.0
    %1207 = vmatpush2.xpose.msra.mxu0 0.0
    %1208 = vmatprep.subr.mxu0 0.0
    %1209 = vmatpush2.xpose.msra.mxu0 0.0
    %1210 = vmatprep.subr.mxu0 0.0
    %1211 = vmatpush2.xpose.msra.mxu0 0.0
    %1212 = vmatprep.subr.mxu0 0.0
    %1213 = vmatpush2.xpose.msra.mxu0 0.0
    %1214 = vmatprep.subr.mxu0 0.0
    %1215 = vmatpush2.xpose.msra.mxu0 0.0
    %1216 = vmatprep.subr.mxu0 0.0
    %1217 = vmatpush2.xpose.msra.mxu0 0.0
    %1218 = vmatprep.subr.mxu0 0.0
    %1219 = vmatpush2.xpose.msra.mxu0 0.0
    %1220 = vmatprep.subr.mxu0 0.0
    %1221 = vmatpush2.xpose.msra.mxu0 0.0
    %1222 = vmatprep.subr.mxu0 0.0
    %1223 = vmatpush2.xpose.msra.mxu0 0.0
    %1224 = vmatprep.subr.mxu0 0.0
    %1225 = vmatpush2.xpose.msra.mxu0 0.0
    %1226 = vmatprep.subr.mxu0 0.0
    %1227 = vmatpush2.xpose.msra.mxu0 0.0
    %1228 = vmatprep.subr.mxu0 0.0
    %1229 = vmatpush2.xpose.msra.mxu0 0.0
    %1230 = vmatprep.subr.mxu0 0.0
    %1231 = vmatpush2.xpose.msra.mxu0 0.0
    %1232 = vmatprep.subr.mxu0 0.0
    %1233 = vmatpush2.xpose.msra.mxu0 0.0
    %1234 = vmatprep.mubr.f32.mxu0 0.0
    %1235 = vmatmul.mubr.f32.gmra.mxu0 %v1158
    %v1236 = vpop.f32.mrf.mxu0
    %v1237 = vadd.f32 0.0, %v1236
    %v1238 = vpop.f32.mrf.mxu0
    %1239 = vmatprep.mubr.f32.mxu0 0.0
    %1240 = vmatmul.mubr.f32.gmra.mxu0 %v1160
    %v1241 = vpop.f32.mrf.mxu0
    %v1242 = vadd.f32 0.0, %v1241
    %v1243 = vpop.f32.mrf.mxu0
    %1244 = vmatprep.mubr.f32.mxu0 0.0
    %1245 = vmatmul.mubr.f32.gmra.mxu0 %v1162
    %v1246 = vpop.f32.mrf.mxu0
    %v1247 = vadd.f32 0.0, %v1246
    %v1248 = vpop.f32.mrf.mxu0
    %1249 = vdwg.mxu0
    %v1250 = vmul.f32 %v1237, 0.25
    %v1251 = vmul.f32 %v1242, 0.25
    %v1252 = vmul.f32 %v1247, 0.25
    %v1253 = vadd.f32 %v1250, %v204
    %v1254 = vadd.f32 %v1251, %v205
    %v1255 = vadd.f32 %v1252, %v1148
    %vm1256 = vcmask 195584
    %v1257 = vsel %vm1256, %v1253, -inf
    %1258 = vmax.xlane.f32.xlu0 %v1257
    %v1259 = vpop.xlane.xlu0 %1258
    %v1260 = vsel %vm1256, %v1254, -inf
    %1261 = vmax.xlane.f32.xlu0 %v1260
    %v1262 = vpop.xlane.xlu0 %1261
    %v1263 = vsel %vm1256, %v1255, -inf
    %1264 = vmax.xlane.f32.xlu0 %v1263
    %v1265 = vpop.xlane.xlu0 %1264
    %v1266 = vsub.f32 %v1253, %v1259
    %v1267 = vsub.f32 %v1254, %v1262
    %v1268 = vsub.f32 %v1255, %v1265
    %v1269 = vmul.f32 %v1266, 1.442695
    %v1270 = vpow.pop %v1269
    %v1271 = vmul.f32 %v1267, 1.442695
    %v1272 = vpow.pop %v1271
    %v1273 = vmul.f32 %v1268, 1.442695
    %v1274 = vpow.pop %v1273
    %v1275 = vsel %vm1256, %v1270, 0.0
    %1276 = vadd.xlane.f32.xlu0 %v1275
    %v1277 = vpop.xlane.xlu0 %1276
    %v1278 = vsel %vm1256, %v1272, 0.0
    %1279 = vadd.xlane.f32.xlu0 %v1278
    %v1280 = vpop.xlane.xlu0 %1279
    %v1281 = vsel %vm1256, %v1274, 0.0
    %1282 = vadd.xlane.f32.xlu0 %v1281
    %v1283 = vpop.xlane.xlu0 %1282
    %v1284 = vrcp.pop %v1277
    %v1285 = vrcp.pop %v1280
    %v1286 = vrcp.pop %v1283
    %v1287 = vmul.f32 %v1270, %v1284
    %v1288 = vmul.f32 %v1272, %v1285
    %v1289 = vmul.f32 %v1274, %v1286
    %1290 = vrot.lane.b32.xlu0 %v1121, 64
    %v1291 = vpop.permute.xlu0 %1290
    %1292 = vrot.lane.b32.xlu0 %v1126, 64
    %v1293 = vpop.permute.xlu0 %1292
    %1294 = vrot.lane.b32.xlu0 %v1131, 64
    %v1295 = vpop.permute.xlu0 %1294
    %v1300 = vsel %vm1256, %v1287, 0
    %v1303 = vsel %vm1256, %v1288, 0
    %v1306 = vsel %vm1256, %v1289, 0
    %1308 = vmatprep.subr.mxu0 0.0
    %1309 = vmatpush1.msra.mxu0 0.0
    %1310 = vmatprep.subr.mxu0 0.0
    %1311 = vmatpush1.msra.mxu0 0.0
    %1312 = vmatprep.subr.mxu0 0.0
    %1313 = vmatpush1.msra.mxu0 0.0
    %1314 = vmatprep.subr.mxu0 0.0
    %1315 = vmatpush1.msra.mxu0 0.0
    %1316 = vmatprep.subr.mxu0 0.0
    %1317 = vmatpush1.msra.mxu0 0.0
    %1318 = vmatprep.subr.mxu0 0.0
    %1319 = vmatpush1.msra.mxu0 0.0
    %1320 = vmatprep.subr.mxu0 0.0
    %1321 = vmatpush1.msra.mxu0 0.0
    %1322 = vmatprep.subr.mxu0 0.0
    %1323 = vmatpush1.msra.mxu0 0.0
    %1324 = vmatprep.subr.mxu0 0.0
    %1325 = vmatpush1.msra.mxu0 0.0
    %1326 = vmatprep.subr.mxu0 0.0
    %1327 = vmatpush1.msra.mxu0 0.0
    %1328 = vmatprep.subr.mxu0 0.0
    %1329 = vmatpush1.msra.mxu0 0.0
    %1330 = vmatprep.subr.mxu0 0.0
    %1331 = vmatpush1.msra.mxu0 0.0
    %1332 = vmatprep.subr.mxu0 0.0
    %1333 = vmatpush1.msra.mxu0 0.0
    %1334 = vmatprep.subr.mxu0 0.0
    %1335 = vmatpush1.msra.mxu0 %v1295
    %1336 = vmatprep.subr.mxu0 0.0
    %1337 = vmatpush1.msra.mxu0 %v1293
    %1338 = vmatprep.subr.mxu0 0.0
    %1339 = vmatpush1.msra.mxu0 %v1291
    %1340 = vmatprep.subr.mxu0 0.0
    %1341 = vmatpush2.msra.mxu0 0.0
    %1342 = vmatprep.subr.mxu0 0.0
    %1343 = vmatpush2.msra.mxu0 0.0
    %1344 = vmatprep.subr.mxu0 0.0
    %1345 = vmatpush2.msra.mxu0 0.0
    %1346 = vmatprep.subr.mxu0 0.0
    %1347 = vmatpush2.msra.mxu0 0.0
    %1348 = vmatprep.subr.mxu0 0.0
    %1349 = vmatpush2.msra.mxu0 0.0
    %1350 = vmatprep.subr.mxu0 0.0
    %1351 = vmatpush2.msra.mxu0 0.0
    %1352 = vmatprep.subr.mxu0 0.0
    %1353 = vmatpush2.msra.mxu0 0.0
    %1354 = vmatprep.subr.mxu0 0.0
    %1355 = vmatpush2.msra.mxu0 0.0
    %1356 = vmatprep.subr.mxu0 0.0
    %1357 = vmatpush2.msra.mxu0 0.0
    %1358 = vmatprep.subr.mxu0 0.0
    %1359 = vmatpush2.msra.mxu0 0.0
    %1360 = vmatprep.subr.mxu0 0.0
    %1361 = vmatpush2.msra.mxu0 0.0
    %1362 = vmatprep.subr.mxu0 0.0
    %1363 = vmatpush2.msra.mxu0 0.0
    %1364 = vmatprep.subr.mxu0 0.0
    %1365 = vmatpush2.msra.mxu0 0.0
    %1366 = vmatprep.subr.mxu0 0.0
    %1367 = vmatpush2.msra.mxu0 0.0
    %1368 = vmatprep.subr.mxu0 0.0
    %1369 = vmatpush2.msra.mxu0 0.0
    %1370 = vmatprep.subr.mxu0 0.0
    %1371 = vmatpush2.msra.mxu0 0.0
    %1372 = vmatprep.mubr.f32.mxu0 0.0
    %1373 = vmatmul.mubr.f32.gmra.mxu0 %v1300
    %v1374 = vpop.f32.mrf.mxu0
    %v1375 = vadd.f32 0.0, %v1374
    %v1376 = vpop.f32.mrf.mxu0
    %1377 = vmatprep.mubr.f32.mxu0 0.0
    %1378 = vmatmul.mubr.f32.gmra.mxu0 %v1303
    %v1379 = vpop.f32.mrf.mxu0
    %v1380 = vadd.f32 0.0, %v1379
    %v1381 = vpop.f32.mrf.mxu0
    %1382 = vmatprep.mubr.f32.mxu0 0.0
    %1383 = vmatmul.mubr.f32.gmra.mxu0 %v1306
    %v1384 = vpop.f32.mrf.mxu0
    %v1385 = vadd.f32 0.0, %v1384
    %v1386 = vpop.f32.mrf.mxu0
    %1387 = vdwg.mxu0
    %1388 = vrot.lane.b32.xlu0 %v1121, 112
    %v1389 = vpop.permute.xlu0 %1388
    %1390 = vrot.lane.b32.xlu0 %v1126, 112
    %v1391 = vpop.permute.xlu0 %1390
    %1392 = vrot.lane.b32.xlu0 %v1131, 112
    %v1393 = vpop.permute.xlu0 %1392
    %1394 = vrot.lane.b32.xlu0 %v1121, 80
    %v1395 = vpop.permute.xlu0 %1394
    %1396 = vrot.lane.b32.xlu0 %v1126, 80
    %v1397 = vpop.permute.xlu0 %1396
    %1398 = vrot.lane.b32.xlu0 %v1131, 80
    %v1399 = vpop.permute.xlu0 %1398
    %v1400 = vsel %vm212, %v1389, 0
    %v1402 = vsel %vm212, %v1391, 0
    %v1404 = vsel %vm212, %v1393, 0
    %v1406 = vsel %vm212, %v1395, 0
    %v1408 = vsel %vm212, %v1397, 0
    %v1410 = vsel %vm212, %v1399, 0
    %1412 = vmatprep.subr.mxu0 0.0
    %1413 = vmatpush1.xpose.msra.mxu0 0.0
    %1414 = vmatprep.subr.mxu0 0.0
    %1415 = vmatpush1.xpose.msra.mxu0 0.0
    %1416 = vmatprep.subr.mxu0 0.0
    %1417 = vmatpush1.xpose.msra.mxu0 0.0
    %1418 = vmatprep.subr.mxu0 0.0
    %1419 = vmatpush1.xpose.msra.mxu0 0.0
    %1420 = vmatprep.subr.mxu0 0.0
    %1421 = vmatpush1.xpose.msra.mxu0 0.0
    %1422 = vmatprep.subr.mxu0 0.0
    %1423 = vmatpush1.xpose.msra.mxu0 0.0
    %1424 = vmatprep.subr.mxu0 0.0
    %1425 = vmatpush1.xpose.msra.mxu0 0.0
    %1426 = vmatprep.subr.mxu0 0.0
    %1427 = vmatpush1.xpose.msra.mxu0 0.0
    %1428 = vmatprep.subr.mxu0 0.0
    %1429 = vmatpush1.xpose.msra.mxu0 0.0
    %1430 = vmatprep.subr.mxu0 0.0
    %1431 = vmatpush1.xpose.msra.mxu0 0.0
    %1432 = vmatprep.subr.mxu0 0.0
    %1433 = vmatpush1.xpose.msra.mxu0 0.0
    %1434 = vmatprep.subr.mxu0 0.0
    %1435 = vmatpush1.xpose.msra.mxu0 0.0
    %1436 = vmatprep.subr.mxu0 0.0
    %1437 = vmatpush1.xpose.msra.mxu0 0.0
    %1438 = vmatprep.subr.mxu0 0.0
    %1439 = vmatpush1.xpose.msra.mxu0 %v1410
    %1440 = vmatprep.subr.mxu0 0.0
    %1441 = vmatpush1.xpose.msra.mxu0 %v1408
    %1442 = vmatprep.subr.mxu0 0.0
    %1443 = vmatpush1.xpose.msra.mxu0 %v1406
    %1444 = vmatprep.subr.mxu0 0.0
    %1445 = vmatpush2.xpose.msra.mxu0 0.0
    %1446 = vmatprep.subr.mxu0 0.0
    %1447 = vmatpush2.xpose.msra.mxu0 0.0
    %1448 = vmatprep.subr.mxu0 0.0
    %1449 = vmatpush2.xpose.msra.mxu0 0.0
    %1450 = vmatprep.subr.mxu0 0.0
    %1451 = vmatpush2.xpose.msra.mxu0 0.0
    %1452 = vmatprep.subr.mxu0 0.0
    %1453 = vmatpush2.xpose.msra.mxu0 0.0
    %1454 = vmatprep.subr.mxu0 0.0
    %1455 = vmatpush2.xpose.msra.mxu0 0.0
    %1456 = vmatprep.subr.mxu0 0.0
    %1457 = vmatpush2.xpose.msra.mxu0 0.0
    %1458 = vmatprep.subr.mxu0 0.0
    %1459 = vmatpush2.xpose.msra.mxu0 0.0
    %1460 = vmatprep.subr.mxu0 0.0
    %1461 = vmatpush2.xpose.msra.mxu0 0.0
    %1462 = vmatprep.subr.mxu0 0.0
    %1463 = vmatpush2.xpose.msra.mxu0 0.0
    %1464 = vmatprep.subr.mxu0 0.0
    %1465 = vmatpush2.xpose.msra.mxu0 0.0
    %1466 = vmatprep.subr.mxu0 0.0
    %1467 = vmatpush2.xpose.msra.mxu0 0.0
    %1468 = vmatprep.subr.mxu0 0.0
    %1469 = vmatpush2.xpose.msra.mxu0 0.0
    %1470 = vmatprep.subr.mxu0 0.0
    %1471 = vmatpush2.xpose.msra.mxu0 0.0
    %1472 = vmatprep.subr.mxu0 0.0
    %1473 = vmatpush2.xpose.msra.mxu0 0.0
    %1474 = vmatprep.subr.mxu0 0.0
    %1475 = vmatpush2.xpose.msra.mxu0 0.0
    %1476 = vmatprep.mubr.f32.mxu0 0.0
    %1477 = vmatmul.mubr.f32.gmra.mxu0 %v1400
    %v1478 = vpop.f32.mrf.mxu0
    %v1479 = vadd.f32 0.0, %v1478
    %v1480 = vpop.f32.mrf.mxu0
    %1481 = vmatprep.mubr.f32.mxu0 0.0
    %1482 = vmatmul.mubr.f32.gmra.mxu0 %v1402
    %v1483 = vpop.f32.mrf.mxu0
    %v1484 = vadd.f32 0.0, %v1483
    %v1485 = vpop.f32.mrf.mxu0
    %1486 = vmatprep.mubr.f32.mxu0 0.0
    %1487 = vmatmul.mubr.f32.gmra.mxu0 %v1404
    %v1488 = vpop.f32.mrf.mxu0
    %v1489 = vadd.f32 0.0, %v1488
    %v1490 = vpop.f32.mrf.mxu0
    %1491 = vdwg.mxu0
    %v1492 = vmul.f32 %v1479, 0.25
    %v1493 = vmul.f32 %v1484, 0.25
    %v1494 = vmul.f32 %v1489, 0.25
    %v1495 = vadd.f32 %v1492, %v204
    %v1496 = vadd.f32 %v1493, %v205
    %v1497 = vadd.f32 %v1494, %v1148
    %v1498 = vsel %vm1256, %v1495, -inf
    %1499 = vmax.xlane.f32.xlu0 %v1498
    %v1500 = vpop.xlane.xlu0 %1499
    %v1501 = vsel %vm1256, %v1496, -inf
    %1502 = vmax.xlane.f32.xlu0 %v1501
    %v1503 = vpop.xlane.xlu0 %1502
    %v1504 = vsel %vm1256, %v1497, -inf
    %1505 = vmax.xlane.f32.xlu0 %v1504
    %v1506 = vpop.xlane.xlu0 %1505
    %v1507 = vsub.f32 %v1495, %v1500
    %v1508 = vsub.f32 %v1496, %v1503
    %v1509 = vsub.f32 %v1497, %v1506
    %v1510 = vmul.f32 %v1507, 1.442695
    %v1511 = vpow.pop %v1510
    %v1512 = vmul.f32 %v1508, 1.442695
    %v1513 = vpow.pop %v1512
    %v1514 = vmul.f32 %v1509, 1.442695
    %v1515 = vpow.pop %v1514
    %v1516 = vsel %vm1256, %v1511, 0.0
    %1517 = vadd.xlane.f32.xlu0 %v1516
    %v1518 = vpop.xlane.xlu0 %1517
    %v1519 = vsel %vm1256, %v1513, 0.0
    %1520 = vadd.xlane.f32.xlu0 %v1519
    %v1521 = vpop.xlane.xlu0 %1520
    %v1522 = vsel %vm1256, %v1515, 0.0
    %1523 = vadd.xlane.f32.xlu0 %v1522
    %v1524 = vpop.xlane.xlu0 %1523
    %v1525 = vrcp.pop %v1518
    %v1526 = vrcp.pop %v1521
    %v1527 = vrcp.pop %v1524
    %v1528 = vmul.f32 %v1511, %v1525
    %v1529 = vmul.f32 %v1513, %v1526
    %v1530 = vmul.f32 %v1515, %v1527
    %1531 = vrot.lane.b32.xlu0 %v1121, 48
    %v1532 = vpop.permute.xlu0 %1531
    %1533 = vrot.lane.b32.xlu0 %v1126, 48
    %v1534 = vpop.permute.xlu0 %1533
    %1535 = vrot.lane.b32.xlu0 %v1131, 48
    %v1536 = vpop.permute.xlu0 %1535
    %v1541 = vsel %vm1256, %v1528, 0
    %v1544 = vsel %vm1256, %v1529, 0
    %v1547 = vsel %vm1256, %v1530, 0
    %1549 = vmatprep.subr.mxu0 0.0
    %1550 = vmatpush1.msra.mxu0 0.0
    %1551 = vmatprep.subr.mxu0 0.0
    %1552 = vmatpush1.msra.mxu0 0.0
    %1553 = vmatprep.subr.mxu0 0.0
    %1554 = vmatpush1.msra.mxu0 0.0
    %1555 = vmatprep.subr.mxu0 0.0
    %1556 = vmatpush1.msra.mxu0 0.0
    %1557 = vmatprep.subr.mxu0 0.0
    %1558 = vmatpush1.msra.mxu0 0.0
    %1559 = vmatprep.subr.mxu0 0.0
    %1560 = vmatpush1.msra.mxu0 0.0
    %1561 = vmatprep.subr.mxu0 0.0
    %1562 = vmatpush1.msra.mxu0 0.0
    %1563 = vmatprep.subr.mxu0 0.0
    %1564 = vmatpush1.msra.mxu0 0.0
    %1565 = vmatprep.subr.mxu0 0.0
    %1566 = vmatpush1.msra.mxu0 0.0
    %1567 = vmatprep.subr.mxu0 0.0
    %1568 = vmatpush1.msra.mxu0 0.0
    %1569 = vmatprep.subr.mxu0 0.0
    %1570 = vmatpush1.msra.mxu0 0.0
    %1571 = vmatprep.subr.mxu0 0.0
    %1572 = vmatpush1.msra.mxu0 0.0
    %1573 = vmatprep.subr.mxu0 0.0
    %1574 = vmatpush1.msra.mxu0 0.0
    %1575 = vmatprep.subr.mxu0 0.0
    %1576 = vmatpush1.msra.mxu0 %v1536
    %1577 = vmatprep.subr.mxu0 0.0
    %1578 = vmatpush1.msra.mxu0 %v1534
    %1579 = vmatprep.subr.mxu0 0.0
    %1580 = vmatpush1.msra.mxu0 %v1532
    %1581 = vmatprep.subr.mxu0 0.0
    %1582 = vmatpush2.msra.mxu0 0.0
    %1583 = vmatprep.subr.mxu0 0.0
    %1584 = vmatpush2.msra.mxu0 0.0
    %1585 = vmatprep.subr.mxu0 0.0
    %1586 = vmatpush2.msra.mxu0 0.0
    %1587 = vmatprep.subr.mxu0 0.0
    %1588 = vmatpush2.msra.mxu0 0.0
    %1589 = vmatprep.subr.mxu0 0.0
    %1590 = vmatpush2.msra.mxu0 0.0
    %1591 = vmatprep.subr.mxu0 0.0
    %1592 = vmatpush2.msra.mxu0 0.0
    %1593 = vmatprep.subr.mxu0 0.0
    %1594 = vmatpush2.msra.mxu0 0.0
    %1595 = vmatprep.subr.mxu0 0.0
    %1596 = vmatpush2.msra.mxu0 0.0
    %1597 = vmatprep.subr.mxu0 0.0
    %1598 = vmatpush2.msra.mxu0 0.0
    %1599 = vmatprep.subr.mxu0 0.0
    %1600 = vmatpush2.msra.mxu0 0.0
    %1601 = vmatprep.subr.mxu0 0.0
    %1602 = vmatpush2.msra.mxu0 0.0
    %1603 = vmatprep.subr.mxu0 0.0
    %1604 = vmatpush2.msra.mxu0 0.0
    %1605 = vmatprep.subr.mxu0 0.0
    %1606 = vmatpush2.msra.mxu0 0.0
    %1607 = vmatprep.subr.mxu0 0.0
    %1608 = vmatpush2.msra.mxu0 0.0
    %1609 = vmatprep.subr.mxu0 0.0
    %1610 = vmatpush2.msra.mxu0 0.0
    %1611 = vmatprep.subr.mxu0 0.0
    %1612 = vmatpush2.msra.mxu0 0.0
    %1613 = vmatprep.mubr.f32.mxu0 0.0
    %1614 = vmatmul.mubr.f32.gmra.mxu0 %v1541
    %v1615 = vpop.f32.mrf.mxu0
    %v1616 = vadd.f32 0.0, %v1615
    %v1617 = vpop.f32.mrf.mxu0
    %1618 = vmatprep.mubr.f32.mxu0 0.0
    %1619 = vmatmul.mubr.f32.gmra.mxu0 %v1544
    %v1620 = vpop.f32.mrf.mxu0
    %v1621 = vadd.f32 0.0, %v1620
    %v1622 = vpop.f32.mrf.mxu0
    %1623 = vmatprep.mubr.f32.mxu0 0.0
    %1624 = vmatmul.mubr.f32.gmra.mxu0 %v1547
    %v1625 = vpop.f32.mrf.mxu0
    %v1626 = vadd.f32 0.0, %v1625
    %v1627 = vpop.f32.mrf.mxu0
    %1628 = vdwg.mxu0
    %1632 = vrot.lane.b32.xlu0 %v1616, 16
    %v1633 = vpop.permute.xlu0 %1632
    %1634 = vrot.lane.b32.xlu0 %v1621, 16
    %v1635 = vpop.permute.xlu0 %1634
    %1636 = vrot.lane.b32.xlu0 %v1626, 16
    %v1637 = vpop.permute.xlu0 %1636
    %v1641 = vsel %vm212, %v1375, %v1633
    %v1642 = vsel %vm212, %v1380, %v1635
    %v1643 = vsel %vm212, %v1385, %v1637
    %v1644 = vld [vmem:[#allocation2 + $0x128] sm:$0xff]
    %v1645 = vld [vmem:[#allocation2 + $0x130] sm:$0xff]
    %v1646 = vld [vmem:[#allocation2 + $0x138] sm:$0xff]
    %v1647 = vld [vmem:[#allocation2 + $0x140] sm:$0xff]
    %v1648 = vld [vmem:[#allocation2 + $0x148] sm:$0x1]
    %v1649 = vlaneseq
    %v1650 = vshrl.u32 %v1649, 7
    %v1651 = vsub.s32 0, %v1650
    %v1652 = vrot.slane %v1648, %v1651
    %v1654 = vsel %vm79, %v1641, 0
    %v1657 = vsel %vm79, %v1642, 0
    %v1660 = vsel %vm79, %v1643, 0
    %1662 = vmatprep.subr.mxu0 0.0
    %1663 = vmatpush1.msra.mxu0 0.0
    %1664 = vmatprep.subr.mxu0 0.0
    %1665 = vmatpush1.msra.mxu0 0.0
    %1666 = vmatprep.subr.mxu0 0.0
    %1667 = vmatpush1.msra.mxu0 0.0
    %1668 = vmatprep.subr.mxu0 0.0
    %1669 = vmatpush1.msra.mxu0 0.0
    %1670 = vmatprep.subr.mxu0 0.0
    %1671 = vmatpush1.msra.mxu0 0.0
    %1672 = vmatprep.subr.mxu0 0.0
    %1673 = vmatpush1.msra.mxu0 0.0
    %1674 = vmatprep.subr.mxu0 0.0
    %1675 = vmatpush1.msra.mxu0 0.0
    %1676 = vmatprep.subr.mxu0 0.0
    %1677 = vmatpush1.msra.mxu0 0.0
    %1678 = vmatprep.subr.mxu0 0.0
    %1679 = vmatpush1.msra.mxu0 0.0
    %1680 = vmatprep.subr.mxu0 0.0
    %1681 = vmatpush1.msra.mxu0 0.0
    %1682 = vmatprep.subr.mxu0 0.0
    %1683 = vmatpush1.msra.mxu0 0.0
    %1684 = vmatprep.subr.mxu0 0.0
    %1685 = vmatpush1.msra.mxu0 0.0
    %1686 = vmatprep.subr.mxu0 0.0
    %1687 = vmatpush1.msra.mxu0 %v1647
    %1688 = vmatprep.subr.mxu0 0.0
    %1689 = vmatpush1.msra.mxu0 %v1646
    %1690 = vmatprep.subr.mxu0 0.0
    %1691 = vmatpush1.msra.mxu0 %v1645
    %1692 = vmatprep.subr.mxu0 0.0
    %1693 = vmatpush1.msra.mxu0 %v1644
    %1694 = vmatprep.subr.mxu0 0.0
    %1695 = vmatpush2.msra.mxu0 0.0
    %1696 = vmatprep.subr.mxu0 0.0
    %1697 = vmatpush2.msra.mxu0 0.0
    %1698 = vmatprep.subr.mxu0 0.0
    %1699 = vmatpush2.msra.mxu0 0.0
    %1700 = vmatprep.subr.mxu0 0.0
    %1701 = vmatpush2.msra.mxu0 0.0
    %1702 = vmatprep.subr.mxu0 0.0
    %1703 = vmatpush2.msra.mxu0 0.0
    %1704 = vmatprep.subr.mxu0 0.0
    %1705 = vmatpush2.msra.mxu0 0.0
    %1706 = vmatprep.subr.mxu0 0.0
    %1707 = vmatpush2.msra.mxu0 0.0
    %1708 = vmatprep.subr.mxu0 0.0
    %1709 = vmatpush2.msra.mxu0 0.0
    %1710 = vmatprep.subr.mxu0 0.0
    %1711 = vmatpush2.msra.mxu0 0.0
    %1712 = vmatprep.subr.mxu0 0.0
    %1713 = vmatpush2.msra.mxu0 0.0
    %1714 = vmatprep.subr.mxu0 0.0
    %1715 = vmatpush2.msra.mxu0 0.0
    %1716 = vmatprep.subr.mxu0 0.0
    %1717 = vmatpush2.msra.mxu0 0.0
    %1718 = vmatprep.subr.mxu0 0.0
    %1719 = vmatpush2.msra.mxu0 0.0
    %1720 = vmatprep.subr.mxu0 0.0
    %1721 = vmatpush2.msra.mxu0 0.0
    %1722 = vmatprep.subr.mxu0 0.0
    %1723 = vmatpush2.msra.mxu0 0.0
    %1724 = vmatprep.subr.mxu0 0.0
    %1725 = vmatpush2.msra.mxu0 0.0
    %1726 = vmatprep.mubr.f32.mxu0 0.0
    %1727 = vmatmul.mubr.f32.gmra.mxu0 %v1654
    %v1728 = vpop.f32.mrf.mxu0
    %v1729 = vadd.f32 %v1652, %v1728
    %v1730 = vpop.f32.mrf.mxu0
    %1731 = vmatprep.mubr.f32.mxu0 0.0
    %1732 = vmatmul.mubr.f32.gmra.mxu0 %v1657
    %v1733 = vpop.f32.mrf.mxu0
    %v1734 = vadd.f32 %v1652, %v1733
    %v1735 = vpop.f32.mrf.mxu0
    %1736 = vmatprep.mubr.f32.mxu0 0.0
    %1737 = vmatmul.mubr.f32.gmra.mxu0 %v1660
    %v1738 = vpop.f32.mrf.mxu0
    %v1739 = vadd.f32 %v1652, %v1738
    %v1740 = vpop.f32.mrf.mxu0
    %1741 = vdwg.mxu0
    %v1742 = vld [vmem:[#allocation2 + $0x150] sm:$0xf]
    %v1743 = vadd.f32 %v1033, %v1729
    %v1744 = vadd.f32 %v1034, %v1734
    %v1745 = vadd.f32 %v1035, %v1739
    %v1746 = vsel %vm79, %v1743, 0.0
    %1747 = vadd.xlane.f32.xlu0 %v1746
    %v1748 = vpop.xlane.xlu0 %1747
    %v1749 = vsel %vm79, %v1744, 0.0
    %1750 = vadd.xlane.f32.xlu0 %v1749
    %v1751 = vpop.xlane.xlu0 %1750
    %v1752 = vsel %vm79, %v1745, 0.0
    %1753 = vadd.xlane.f32.xlu0 %v1752
    %v1754 = vpop.xlane.xlu0 %1753
    %v1755 = vmul.f32 %v1748, %v722
    %v1756 = vmul.f32 %v1751, %v722
    %v1757 = vmul.f32 %v1754, %v722
    %v1758 = vsub.f32 %v1743, %v1755
    %v1759 = vsub.f32 %v1744, %v1756
    %v1760 = vsub.f32 %v1745, %v1757
    %v1761 = vmul.f32 %v1758, %v1758
    %v1762 = vmul.f32 %v1759, %v1759
    %v1763 = vmul.f32 %v1760, %v1760
    %v1764 = vsel %vm79, %v1761, 0.0
    %1765 = vadd.xlane.f32.xlu0 %v1764
    %v1766 = vpop.xlane.xlu0 %1765
    %v1767 = vsel %vm79, %v1762, 0.0
    %1768 = vadd.xlane.f32.xlu0 %v1767
    %v1769 = vpop.xlane.xlu0 %1768
    %v1770 = vsel %vm79, %v1763, 0.0
    %1771 = vadd.xlane.f32.xlu0 %v1770
    %v1772 = vpop.xlane.xlu0 %1771
    %v1773 = vmul.f32 %v1766, %v722
    %v1774 = vmul.f32 %v1769, %v722
    %v1775 = vmul.f32 %v1772, %v722
    %v1776 = vadd.f32 %v1773, 1e-05
    %v1777 = vadd.f32 %v1774, 1e-05
    %v1778 = vadd.f32 %v1775, 1e-05
    %v1779 = vrsqrt.pop %v1776
    %v1780 = vrsqrt.pop %v1777
    %v1781 = vrsqrt.pop %v1778
    %v1782 = vmul.f32 %v1758, %v1779
    %v1783 = vmul.f32 %v1759, %v1780
    %v1784 = vmul.f32 %v1760, %v1781
    %v1785 = vlaneseq
    %v1786 = vshrl.u32 %v1785, 7
    %v1787 = vsub.s32 0, %v1786
    %v1788 = vrot.slane %v1742, %v1787
    %v1789 = vmul.f32 %v1782, %v1788
    %v1790 = vmul.f32 %v1783, %v1788
    %v1791 = vmul.f32 %v1784, %v1788
    %v1792 = vlaneseq
    %v1793 = vshrl.u32 %v1792, 7
    %v1794 = vsub.s32 1, %v1793
    %v1795 = vrot.slane %v1742, %v1794
    %v1796 = vadd.f32 %v1789, %v1795
    %v1797 = vadd.f32 %v1790, %v1795
    %v1798 = vadd.f32 %v1791, %v1795
    %v1799 = vld [vmem:[#allocation2 + $0x158] sm:$0xff]
    %v1800 = vld [vmem:[#allocation2 + $0x160] sm:$0xff]
    %v1801 = vld [vmem:[#allocation2 + $0x168] sm:$0xff]
    %v1802 = vld [vmem:[#allocation2 + $0x170] sm:$0xff]
    %v1803 = vld [vmem:[#allocation2 + $0x178] sm:$0x1]
    %v1804 = vlaneseq
    %v1805 = vshrl.u32 %v1804, 7
    %v1806 = vsub.s32 0, %v1805
    %v1807 = vrot.slane %v1803, %v1806
    %v1809 = vsel %vm79, %v1796, 0
    %v1812 = vsel %vm79, %v1797, 0
    %v1815 = vsel %vm79, %v1798, 0
    %1817 = vmatprep.subr.mxu0 0.0
    %1818 = vmatpush1.msra.mxu0 0.0
    %1819 = vmatprep.subr.mxu0 0.0
    %1820 = vmatpush1.msra.mxu0 0.0
    %1821 = vmatprep.subr.mxu0 0.0
    %1822 = vmatpush1.msra.mxu0 0.0
    %1823 = vmatprep.subr.mxu0 0.0
    %1824 = vmatpush1.msra.mxu0 0.0
    %1825 = vmatprep.subr.mxu0 0.0
    %1826 = vmatpush1.msra.mxu0 0.0
    %1827 = vmatprep.subr.mxu0 0.0
    %1828 = vmatpush1.msra.mxu0 0.0
    %1829 = vmatprep.subr.mxu0 0.0
    %1830 = vmatpush1.msra.mxu0 0.0
    %1831 = vmatprep.subr.mxu0 0.0
    %1832 = vmatpush1.msra.mxu0 0.0
    %1833 = vmatprep.subr.mxu0 0.0
    %1834 = vmatpush1.msra.mxu0 0.0
    %1835 = vmatprep.subr.mxu0 0.0
    %1836 = vmatpush1.msra.mxu0 0.0
    %1837 = vmatprep.subr.mxu0 0.0
    %1838 = vmatpush1.msra.mxu0 0.0
    %1839 = vmatprep.subr.mxu0 0.0
    %1840 = vmatpush1.msra.mxu0 0.0
    %1841 = vmatprep.subr.mxu0 0.0
    %1842 = vmatpush1.msra.mxu0 %v1802
    %1843 = vmatprep.subr.mxu0 0.0
    %1844 = vmatpush1.msra.mxu0 %v1801
    %1845 = vmatprep.subr.mxu0 0.0
    %1846 = vmatpush1.msra.mxu0 %v1800
    %1847 = vmatprep.subr.mxu0 0.0
    %1848 = vmatpush1.msra.mxu0 %v1799
    %1849 = vmatprep.subr.mxu0 0.0
    %1850 = vmatpush2.msra.mxu0 0.0
    %1851 = vmatprep.subr.mxu0 0.0
    %1852 = vmatpush2.msra.mxu0 0.0
    %1853 = vmatprep.subr.mxu0 0.0
    %1854 = vmatpush2.msra.mxu0 0.0
    %1855 = vmatprep.subr.mxu0 0.0
    %1856 = vmatpush2.msra.mxu0 0.0
    %1857 = vmatprep.subr.mxu0 0.0
    %1858 = vmatpush2.msra.mxu0 0.0
    %1859 = vmatprep.subr.mxu0 0.0
    %1860 = vmatpush2.msra.mxu0 0.0
    %1861 = vmatprep.subr.mxu0 0.0
    %1862 = vmatpush2.msra.mxu0 0.0
    %1863 = vmatprep.subr.mxu0 0.0
    %1864 = vmatpush2.msra.mxu0 0.0
    %1865 = vmatprep.subr.mxu0 0.0
    %1866 = vmatpush2.msra.mxu0 0.0
    %1867 = vmatprep.subr.mxu0 0.0
    %1868 = vmatpush2.msra.mxu0 0.0
    %1869 = vmatprep.subr.mxu0 0.0
    %1870 = vmatpush2.msra.mxu0 0.0
    %1871 = vmatprep.subr.mxu0 0.0
    %1872 = vmatpush2.msra.mxu0 0.0
    %1873 = vmatprep.subr.mxu0 0.0
    %1874 = vmatpush2.msra.mxu0 0.0
    %1875 = vmatprep.subr.mxu0 0.0
    %1876 = vmatpush2.msra.mxu0 0.0
    %1877 = vmatprep.subr.mxu0 0.0
    %1878 = vmatpush2.msra.mxu0 0.0
    %1879 = vmatprep.subr.mxu0 0.0
    %1880 = vmatpush2.msra.mxu0 0.0
    %1881 = vmatprep.mubr.f32.mxu0 0.0
    %1882 = vmatmul.mubr.f32.gmra.mxu0 %v1809
    %v1883 = vpop.f32.mrf.mxu0
    %v1884 = vadd.f32 %v1807, %v1883
    %v1885 = vpop.f32.mrf.mxu0
    %1886 = vmatprep.mubr.f32.mxu0 0.0
    %1887 = vmatmul.mubr.f32.gmra.mxu0 %v1812
    %v1888 = vpop.f32.mrf.mxu0
    %v1889 = vadd.f32 %v1807, %v1888
    %v1890 = vpop.f32.mrf.mxu0
    %1891 = vmatprep.mubr.f32.mxu0 0.0
    %1892 = vmatmul.mubr.f32.gmra.mxu0 %v1815
    %v1893 = vpop.f32.mrf.mxu0
    %v1894 = vadd.f32 %v1807, %v1893
    %v1895 = vpop.f32.mrf.mxu0
    %1896 = vdwg.mxu0
    %v1897 = vmax.f32 %v1884, 0.0
    %v1898 = vmax.f32 %v1889, 0.0
    %v1899 = vmax.f32 %v1894, 0.0
    %v1900 = vld [vmem:[#allocation2 + $0x180] sm:$0xff]
    %v1901 = vld [vmem:[#allocation2 + $0x188] sm:$0xff]
    %v1902 = vld [vmem:[#allocation2 + $0x190] sm:$0xff]
    %v1903 = vld [vmem:[#allocation2 + $0x198] sm:$0xff]
    %v1904 = vld [vmem:[#allocation2 + $0x1a0] sm:$0xff]
    %v1905 = vld [vmem:[#allocation2 + $0x1a8] sm:$0xff]
    %v1906 = vld [vmem:[#allocation2 + $0x1b0] sm:$0xff]
    %v1907 = vld [vmem:[#allocation2 + $0x1b8] sm:$0xff]
    %v1908 = vld [vmem:[#allocation2 + $0x1c0] sm:$0x1]
    %v1909 = vlaneseq
    %v1910 = vshrl.u32 %v1909, 7
    %v1911 = vsub.s32 0, %v1910
    %v1912 = vrot.slane %v1908, %v1911
    %v1914 = vsel %vm860, %v1897, 0
    %v1917 = vsel %vm860, %v1898, 0
    %v1920 = vsel %vm860, %v1899, 0
    %1922 = vmatprep.subr.mxu0 0.0
    %1923 = vmatpush1.msra.mxu0 0.0
    %1924 = vmatprep.subr.mxu0 0.0
    %1925 = vmatpush1.msra.mxu0 0.0
    %1926 = vmatprep.subr.mxu0 0.0
    %1927 = vmatpush1.msra.mxu0 0.0
    %1928 = vmatprep.subr.mxu0 0.0
    %1929 = vmatpush1.msra.mxu0 0.0
    %1930 = vmatprep.subr.mxu0 0.0
    %1931 = vmatpush1.msra.mxu0 0.0
    %1932 = vmatprep.subr.mxu0 0.0
    %1933 = vmatpush1.msra.mxu0 0.0
    %1934 = vmatprep.subr.mxu0 0.0
    %1935 = vmatpush1.msra.mxu0 0.0
    %1936 = vmatprep.subr.mxu0 0.0
    %1937 = vmatpush1.msra.mxu0 0.0
    %1938 = vmatprep.subr.mxu0 0.0
    %1939 = vmatpush1.msra.mxu0 %v1907
    %1940 = vmatprep.subr.mxu0 0.0
    %1941 = vmatpush1.msra.mxu0 %v1906
    %1942 = vmatprep.subr.mxu0 0.0
    %1943 = vmatpush1.msra.mxu0 %v1905
    %1944 = vmatprep.subr.mxu0 0.0
    %1945 = vmatpush1.msra.mxu0 %v1904
    %1946 = vmatprep.subr.mxu0 0.0
    %1947 = vmatpush1.msra.mxu0 %v1903
    %1948 = vmatprep.subr.mxu0 0.0
    %1949 = vmatpush1.msra.mxu0 %v1902
    %1950 = vmatprep.subr.mxu0 0.0
    %1951 = vmatpush1.msra.mxu0 %v1901
    %1952 = vmatprep.subr.mxu0 0.0
    %1953 = vmatpush1.msra.mxu0 %v1900
    %1954 = vmatprep.subr.mxu0 0.0
    %1955 = vmatpush2.msra.mxu0 0.0
    %1956 = vmatprep.subr.mxu0 0.0
    %1957 = vmatpush2.msra.mxu0 0.0
    %1958 = vmatprep.subr.mxu0 0.0
    %1959 = vmatpush2.msra.mxu0 0.0
    %1960 = vmatprep.subr.mxu0 0.0
    %1961 = vmatpush2.msra.mxu0 0.0
    %1962 = vmatprep.subr.mxu0 0.0
    %1963 = vmatpush2.msra.mxu0 0.0
    %1964 = vmatprep.subr.mxu0 0.0
    %1965 = vmatpush2.msra.mxu0 0.0
    %1966 = vmatprep.subr.mxu0 0.0
    %1967 = vmatpush2.msra.mxu0 0.0
    %1968 = vmatprep.subr.mxu0 0.0
    %1969 = vmatpush2.msra.mxu0 0.0
    %1970 = vmatprep.subr.mxu0 0.0
    %1971 = vmatpush2.msra.mxu0 0.0
    %1972 = vmatprep.subr.mxu0 0.0
    %1973 = vmatpush2.msra.mxu0 0.0
    %1974 = vmatprep.subr.mxu0 0.0
    %1975 = vmatpush2.msra.mxu0 0.0
    %1976 = vmatprep.subr.mxu0 0.0
    %1977 = vmatpush2.msra.mxu0 0.0
    %1978 = vmatprep.subr.mxu0 0.0
    %1979 = vmatpush2.msra.mxu0 0.0
    %1980 = vmatprep.subr.mxu0 0.0
    %1981 = vmatpush2.msra.mxu0 0.0
    %1982 = vmatprep.subr.mxu0 0.0
    %1983 = vmatpush2.msra.mxu0 0.0
    %1984 = vmatprep.subr.mxu0 0.0
    %1985 = vmatpush2.msra.mxu0 0.0
    %1986 = vmatprep.mubr.f32.mxu0 0.0
    %1987 = vmatmul.mubr.f32.gmra.mxu0 %v1914
    %v1988 = vpop.f32.mrf.mxu0
    %v1989 = vadd.f32 %v1912, %v1988
    %v1990 = vpop.f32.mrf.mxu0
    %1991 = vmatprep.mubr.f32.mxu0 0.0
    %1992 = vmatmul.mubr.f32.gmra.mxu0 %v1917
    %v1993 = vpop.f32.mrf.mxu0
    %v1994 = vadd.f32 %v1912, %v1993
    %v1995 = vpop.f32.mrf.mxu0
    %1996 = vmatprep.mubr.f32.mxu0 0.0
    %1997 = vmatmul.mubr.f32.gmra.mxu0 %v1920
    %v1998 = vpop.f32.mrf.mxu0
    %v1999 = vadd.f32 %v1912, %v1998
    %v2000 = vpop.f32.mrf.mxu0
    %2001 = vdwg.mxu0
    %v2002 = vadd.f32 %v1796, %v1989
    %v2003 = vadd.f32 %v1797, %v1994
    %v2004 = vadd.f32 %v1798, %v1999
    %v2005 = vsel %vm79, %v2002, 0.0
    %2006 = vadd.xlane.f32.xlu0 %v2005
    %v2007 = vpop.xlane.xlu0 %2006
    %v2008 = vsel %vm79, %v2003, 0.0
    %2009 = vadd.xlane.f32.xlu0 %v2008
    %v2010 = vpop.xlane.xlu0 %2009
    %v2011 = vsel %vm79, %v2004, 0.0
    %2012 = vadd.xlane.f32.xlu0 %v2011
    %v2013 = vpop.xlane.xlu0 %2012
    %v2014 = vmul.f32 %v2007, %v722
    %v2015 = vmul.f32 %v2010, %v722
    %v2016 = vmul.f32 %v2013, %v722
    %v2017 = vsub.f32 %v2002, %v2014
    %v2018 = vsub.f32 %v2003, %v2015
    %v2019 = vsub.f32 %v2004, %v2016
    %v2020 = vmul.f32 %v2017, %v2017
    %v2021 = vmul.f32 %v2018, %v2018
    %v2022 = vmul.f32 %v2019, %v2019
    %v2023 = vsel %vm79, %v2020, 0.0
    %2024 = vadd.xlane.f32.xlu0 %v2023
    %v2025 = vpop.xlane.xlu0 %2024
    %v2026 = vsel %vm79, %v2021, 0.0
    %2027 = vadd.xlane.f32.xlu0 %v2026
    %v2028 = vpop.xlane.xlu0 %2027
    %v2029 = vsel %vm79, %v2022, 0.0
    %2030 = vadd.xlane.f32.xlu0 %v2029
    %v2031 = vpop.xlane.xlu0 %2030
    %v2032 = vmul.f32 %v2025, %v722
    %v2033 = vmul.f32 %v2028, %v722
    %v2034 = vmul.f32 %v2031, %v722
    %v2035 = vadd.f32 %v2032, 1e-05
    %v2036 = vadd.f32 %v2033, 1e-05
    %v2037 = vadd.f32 %v2034, 1e-05
    %v2038 = vrsqrt.pop %v2035
    %v2039 = vrsqrt.pop %v2036
    %v2040 = vrsqrt.pop %v2037
    %v2041 = vmul.f32 %v2017, %v2038
    %v2042 = vmul.f32 %v2018, %v2039
    %v2043 = vmul.f32 %v2019, %v2040
    %v2044 = vlaneseq
    %v2045 = vshrl.u32 %v2044, 7
    %v2046 = vsub.s32 2, %v2045
    %v2047 = vrot.slane %v1742, %v2046
    %v2048 = vmul.f32 %v2041, %v2047
    %v2049 = vmul.f32 %v2042, %v2047
    %v2050 = vmul.f32 %v2043, %v2047
    %v2051 = vlaneseq
    %v2052 = vshrl.u32 %v2051, 7
    %v2053 = vsub.s32 3, %v2052
    %v2054 = vrot.slane %v1742, %v2053
    %v2055 = vadd.f32 %v2048, %v2054
    %v2056 = vadd.f32 %v2049, %v2054
    %v2057 = vadd.f32 %v2050, %v2054
    %v2058 = vld [vmem:[#allocation2 + $0x1c8] sm:$0xff]
    %v2059 = vld [vmem:[#allocation2 + $0x1d0] sm:$0xff]
    %v2060 = vld [vmem:[#allocation2 + $0x1d8] sm:$0xff]
    %v2061 = vld [vmem:[#allocation2 + $0x1e0] sm:$0xff]
    %v2062 = vld [vmem:[#allocation2 + $0x1e8] sm:$0xff]
    %v2063 = vld [vmem:[#allocation2 + $0x1f0] sm:$0xff]
    %v2064 = vld [vmem:[#allocation2 + $0x1f8] sm:$0xff]
    %v2065 = vld [vmem:[#allocation2 + $0x200] sm:$0xff]
    %v2067 = vrot.slane %v2055, 2
    %v2068 = vsel %vm79, %v2067, 0
    %2070 = vmatprep.subr.mxu0 0.0
    %2071 = vmatpush1.msra.mxu0 0.0
    %2072 = vmatprep.subr.mxu0 0.0
    %2073 = vmatpush1.msra.mxu0 0.0
    %2074 = vmatprep.subr.mxu0 0.0
    %2075 = vmatpush1.msra.mxu0 0.0
    %2076 = vmatprep.subr.mxu0 0.0
    %2077 = vmatpush1.msra.mxu0 0.0
    %2078 = vmatprep.subr.mxu0 0.0
    %2079 = vmatpush1.msra.mxu0 0.0
    %2080 = vmatprep.subr.mxu0 0.0
    %2081 = vmatpush1.msra.mxu0 0.0
    %2082 = vmatprep.subr.mxu0 0.0
    %2083 = vmatpush1.msra.mxu0 0.0
    %2084 = vmatprep.subr.mxu0 0.0
    %2085 = vmatpush1.msra.mxu0 0.0
    %2086 = vmatprep.subr.mxu0 0.0
    %2087 = vmatpush1.msra.mxu0 0.0
    %2088 = vmatprep.subr.mxu0 0.0
    %2089 = vmatpush1.msra.mxu0 0.0
    %2090 = vmatprep.subr.mxu0 0.0
    %2091 = vmatpush1.msra.mxu0 0.0
    %2092 = vmatprep.subr.mxu0 0.0
    %2093 = vmatpush1.msra.mxu0 0.0
    %2094 = vmatprep.subr.mxu0 0.0
    %2095 = vmatpush1.msra.mxu0 %v2065
    %2096 = vmatprep.subr.mxu0 0.0
    %2097 = vmatpush1.msra.mxu0 %v2064
    %2098 = vmatprep.subr.mxu0 0.0
    %2099 = vmatpush1.msra.mxu0 %v2063
    %2100 = vmatprep.subr.mxu0 0.0
    %2101 = vmatpush1.msra.mxu0 %v2062
    %2102 = vmatprep.subr.mxu0 0.0
    %2103 = vmatpush2.msra.mxu0 0.0
    %2104 = vmatprep.subr.mxu0 0.0
    %2105 = vmatpush2.msra.mxu0 0.0
    %2106 = vmatprep.subr.mxu0 0.0
    %2107 = vmatpush2.msra.mxu0 0.0
    %2108 = vmatprep.subr.mxu0 0.0
    %2109 = vmatpush2.msra.mxu0 0.0
    %2110 = vmatprep.subr.mxu0 0.0
    %2111 = vmatpush2.msra.mxu0 0.0
    %2112 = vmatprep.subr.mxu0 0.0
    %2113 = vmatpush2.msra.mxu0 0.0
    %2114 = vmatprep.subr.mxu0 0.0
    %2115 = vmatpush2.msra.mxu0 0.0
    %2116 = vmatprep.subr.mxu0 0.0
    %2117 = vmatpush2.msra.mxu0 0.0
    %2118 = vmatprep.subr.mxu0 0.0
    %2119 = vmatpush2.msra.mxu0 0.0
    %2120 = vmatprep.subr.mxu0 0.0
    %2121 = vmatpush2.msra.mxu0 0.0
    %2122 = vmatprep.subr.mxu0 0.0
    %2123 = vmatpush2.msra.mxu0 0.0
    %2124 = vmatprep.subr.mxu0 0.0
    %2125 = vmatpush2.msra.mxu0 0.0
    %2126 = vmatprep.subr.mxu0 0.0
    %2127 = vmatpush2.msra.mxu0 0.0
    %2128 = vmatprep.subr.mxu0 0.0
    %2129 = vmatpush2.msra.mxu0 0.0
    %2130 = vmatprep.subr.mxu0 0.0
    %2131 = vmatpush2.msra.mxu0 0.0
    %2132 = vmatprep.subr.mxu0 0.0
    %2133 = vmatpush2.msra.mxu0 0.0
    %2134 = vmatprep.mubr.f32.mxu0 0.0
    %2135 = vmatmul.mubr.f32.gmra.mxu0 %v2068
    %v2136 = vpop.f32.mrf.mxu0
    %v2137 = vadd.f32 0.0, %v2136
    %v2138 = vpop.f32.mrf.mxu0
    %2139 = vdwg.mxu0
    %v2140 = vld [vmem:[#allocation2 + $0x208] sm:$0xff]
    %v2141 = vld [vmem:[#allocation2 + $0x210] sm:$0xff]
    %v2142 = vld [vmem:[#allocation2 + $0x218] sm:$0xff]
    %v2143 = vld [vmem:[#allocation2 + $0x220] sm:$0xff]
    %v2144 = vld [vmem:[#allocation2 + $0x228] sm:$0xff]
    %v2145 = vld [vmem:[#allocation2 + $0x230] sm:$0xff]
    %v2146 = vld [vmem:[#allocation2 + $0x238] sm:$0xff]
    %v2147 = vld [vmem:[#allocation2 + $0x240] sm:$0xff]
    %v2148 = vrot.slane %v2055, 6
    %v2149 = vsel %vm79, %v2148, 0
    %2151 = vmatprep.subr.mxu0 0.0
    %2152 = vmatpush1.msra.mxu0 0.0
    %2153 = vmatprep.subr.mxu0 0.0
    %2154 = vmatpush1.msra.mxu0 0.0
    %2155 = vmatprep.subr.mxu0 0.0
    %2156 = vmatpush1.msra.mxu0 0.0
    %2157 = vmatprep.subr.mxu0 0.0
    %2158 = vmatpush1.msra.mxu0 0.0
    %2159 = vmatprep.subr.mxu0 0.0
    %2160 = vmatpush1.msra.mxu0 0.0
    %2161 = vmatprep.subr.mxu0 0.0
    %2162 = vmatpush1.msra.mxu0 0.0
    %2163 = vmatprep.subr.mxu0 0.0
    %2164 = vmatpush1.msra.mxu0 0.0
    %2165 = vmatprep.subr.mxu0 0.0
    %2166 = vmatpush1.msra.mxu0 0.0
    %2167 = vmatprep.subr.mxu0 0.0
    %2168 = vmatpush1.msra.mxu0 0.0
    %2169 = vmatprep.subr.mxu0 0.0
    %2170 = vmatpush1.msra.mxu0 0.0
    %2171 = vmatprep.subr.mxu0 0.0
    %2172 = vmatpush1.msra.mxu0 0.0
    %2173 = vmatprep.subr.mxu0 0.0
    %2174 = vmatpush1.msra.mxu0 0.0
    %2175 = vmatprep.subr.mxu0 0.0
    %2176 = vmatpush1.msra.mxu0 %v2147
    %2177 = vmatprep.subr.mxu0 0.0
    %2178 = vmatpush1.msra.mxu0 %v2146
    %2179 = vmatprep.subr.mxu0 0.0
    %2180 = vmatpush1.msra.mxu0 %v2145
    %2181 = vmatprep.subr.mxu0 0.0
    %2182 = vmatpush1.msra.mxu0 %v2144
    %2183 = vmatprep.subr.mxu0 0.0
    %2184 = vmatpush2.msra.mxu0 0.0
    %2185 = vmatprep.subr.mxu0 0.0
    %2186 = vmatpush2.msra.mxu0 0.0
    %2187 = vmatprep.subr.mxu0 0.0
    %2188 = vmatpush2.msra.mxu0 0.0
    %2189 = vmatprep.subr.mxu0 0.0
    %2190 = vmatpush2.msra.mxu0 0.0
    %2191 = vmatprep.subr.mxu0 0.0
    %2192 = vmatpush2.msra.mxu0 0.0
    %2193 = vmatprep.subr.mxu0 0.0
    %2194 = vmatpush2.msra.mxu0 0.0
    %2195 = vmatprep.subr.mxu0 0.0
    %2196 = vmatpush2.msra.mxu0 0.0
    %2197 = vmatprep.subr.mxu0 0.0
    %2198 = vmatpush2.msra.mxu0 0.0
    %2199 = vmatprep.subr.mxu0 0.0
    %2200 = vmatpush2.msra.mxu0 0.0
    %2201 = vmatprep.subr.mxu0 0.0
    %2202 = vmatpush2.msra.mxu0 0.0
    %2203 = vmatprep.subr.mxu0 0.0
    %2204 = vmatpush2.msra.mxu0 0.0
    %2205 = vmatprep.subr.mxu0 0.0
    %2206 = vmatpush2.msra.mxu0 0.0
    %2207 = vmatprep.subr.mxu0 0.0
    %2208 = vmatpush2.msra.mxu0 0.0
    %2209 = vmatprep.subr.mxu0 0.0
    %2210 = vmatpush2.msra.mxu0 0.0
    %2211 = vmatprep.subr.mxu0 0.0
    %2212 = vmatpush2.msra.mxu0 0.0
    %2213 = vmatprep.subr.mxu0 0.0
    %2214 = vmatpush2.msra.mxu0 0.0
    %2215 = vmatprep.mubr.f32.mxu0 0.0
    %2216 = vmatmul.mubr.f32.gmra.mxu0 %v2149
    %v2217 = vpop.f32.mrf.mxu0
    %v2218 = vadd.f32 0.0, %v2217
    %v2219 = vpop.f32.mrf.mxu0
    %2220 = vdwg.mxu0
    %v2221 = vld [vmem:[#allocation2 + $0x248] sm:$0xff]
    %v2222 = vld [vmem:[#allocation2 + $0x250] sm:$0xff]
    %v2223 = vld [vmem:[#allocation2 + $0x258] sm:$0xff]
    %v2224 = vld [vmem:[#allocation2 + $0x260] sm:$0xff]
    %v2225 = vld [vmem:[#allocation2 + $0x268] sm:$0xff]
    %v2226 = vld [vmem:[#allocation2 + $0x270] sm:$0xff]
    %v2227 = vld [vmem:[#allocation2 + $0x278] sm:$0xff]
    %v2228 = vld [vmem:[#allocation2 + $0x280] sm:$0xff]
    %v2230 = vrot.slane %v2056, 2
    %v2231 = vsel %vm79, %v2230, 0
    %2233 = vmatprep.subr.mxu0 0.0
    %2234 = vmatpush1.msra.mxu0 0.0
    %2235 = vmatprep.subr.mxu0 0.0
    %2236 = vmatpush1.msra.mxu0 0.0
    %2237 = vmatprep.subr.mxu0 0.0
    %2238 = vmatpush1.msra.mxu0 0.0
    %2239 = vmatprep.subr.mxu0 0.0
    %2240 = vmatpush1.msra.mxu0 0.0
    %2241 = vmatprep.subr.mxu0 0.0
    %2242 = vmatpush1.msra.mxu0 0.0
    %2243 = vmatprep.subr.mxu0 0.0
    %2244 = vmatpush1.msra.mxu0 0.0
    %2245 = vmatprep.subr.mxu0 0.0
    %2246 = vmatpush1.msra.mxu0 0.0
    %2247 = vmatprep.subr.mxu0 0.0
    %2248 = vmatpush1.msra.mxu0 0.0
    %2249 = vmatprep.subr.mxu0 0.0
    %2250 = vmatpush1.msra.mxu0 0.0
    %2251 = vmatprep.subr.mxu0 0.0
    %2252 = vmatpush1.msra.mxu0 0.0
    %2253 = vmatprep.subr.mxu0 0.0
    %2254 = vmatpush1.msra.mxu0 0.0
    %2255 = vmatprep.subr.mxu0 0.0
    %2256 = vmatpush1.msra.mxu0 0.0
    %2257 = vmatprep.subr.mxu0 0.0
    %2258 = vmatpush1.msra.mxu0 %v2228
    %2259 = vmatprep.subr.mxu0 0.0
    %2260 = vmatpush1.msra.mxu0 %v2227
    %2261 = vmatprep.subr.mxu0 0.0
    %2262 = vmatpush1.msra.mxu0 %v2226
    %2263 = vmatprep.subr.mxu0 0.0
    %2264 = vmatpush1.msra.mxu0 %v2225
    %2265 = vmatprep.subr.mxu0 0.0
    %2266 = vmatpush2.msra.mxu0 0.0
    %2267 = vmatprep.subr.mxu0 0.0
    %2268 = vmatpush2.msra.mxu0 0.0
    %2269 = vmatprep.subr.mxu0 0.0
    %2270 = vmatpush2.msra.mxu0 0.0
    %2271 = vmatprep.subr.mxu0 0.0
    %2272 = vmatpush2.msra.mxu0 0.0
    %2273 = vmatprep.subr.mxu0 0.0
    %2274 = vmatpush2.msra.mxu0 0.0
    %2275 = vmatprep.subr.mxu0 0.0
    %2276 = vmatpush2.msra.mxu0 0.0
    %2277 = vmatprep.subr.mxu0 0.0
    %2278 = vmatpush2.msra.mxu0 0.0
    %2279 = vmatprep.subr.mxu0 0.0
    %2280 = vmatpush2.msra.mxu0 0.0
    %2281 = vmatprep.subr.mxu0 0.0
    %2282 = vmatpush2.msra.mxu0 0.0
    %2283 = vmatprep.subr.mxu0 0.0
    %2284 = vmatpush2.msra.mxu0 0.0
    %2285 = vmatprep.subr.mxu0 0.0
    %2286 = vmatpush2.msra.mxu0 0.0
    %2287 = vmatprep.subr.mxu0 0.0
    %2288 = vmatpush2.msra.mxu0 0.0
    %2289 = vmatprep.subr.mxu0 0.0
    %2290 = vmatpush2.msra.mxu0 0.0
    %2291 = vmatprep.subr.mxu0 0.0
    %2292 = vmatpush2.msra.mxu0 0.0
    %2293 = vmatprep.subr.mxu0 0.0
    %2294 = vmatpush2.msra.mxu0 0.0
    %2295 = vmatprep.subr.mxu0 0.0
    %2296 = vmatpush2.msra.mxu0 0.0
    %2297 = vmatprep.mubr.f32.mxu0 0.0
    %2298 = vmatmul.mubr.f32.gmra.mxu0 %v2231
    %v2299 = vpop.f32.mrf.mxu0
    %v2300 = vadd.f32 0.0, %v2299
    %v2301 = vpop.f32.mrf.mxu0
    %2302 = vdwg.mxu0
    %v2303 = vld [vmem:[#allocation2 + $0x288] sm:$0xff]
    %v2304 = vld [vmem:[#allocation2 + $0x290] sm:$0xff]
    %v2305 = vld [vmem:[#allocation2 + $0x298] sm:$0xff]
    %v2306 = vld [vmem:[#allocation2 + $0x2a0] sm:$0xff]
    %v2307 = vld [vmem:[#allocation2 + $0x2a8] sm:$0xff]
    %v2308 = vld [vmem:[#allocation2 + $0x2b0] sm:$0xff]
    %v2309 = vld [vmem:[#allocation2 + $0x2b8] sm:$0xff]
    %v2310 = vld [vmem:[#allocation2 + $0x2c0] sm:$0xff]
    %v2311 = vrot.slane %v2056, 6
    %v2312 = vsel %vm79, %v2311, 0
    %2314 = vmatprep.subr.mxu0 0.0
    %2315 = vmatpush1.msra.mxu0 0.0
    %2316 = vmatprep.subr.mxu0 0.0
    %2317 = vmatpush1.msra.mxu0 0.0
    %2318 = vmatprep.subr.mxu0 0.0
    %2319 = vmatpush1.msra.mxu0 0.0
    %2320 = vmatprep.subr.mxu0 0.0
    %2321 = vmatpush1.msra.mxu0 0.0
    %2322 = vmatprep.subr.mxu0 0.0
    %2323 = vmatpush1.msra.mxu0 0.0
    %2324 = vmatprep.subr.mxu0 0.0
    %2325 = vmatpush1.msra.mxu0 0.0
    %2326 = vmatprep.subr.mxu0 0.0
    %2327 = vmatpush1.msra.mxu0 0.0
    %2328 = vmatprep.subr.mxu0 0.0
    %2329 = vmatpush1.msra.mxu0 0.0
    %2330 = vmatprep.subr.mxu0 0.0
    %2331 = vmatpush1.msra.mxu0 0.0
    %2332 = vmatprep.subr.mxu0 0.0
    %2333 = vmatpush1.msra.mxu0 0.0
    %2334 = vmatprep.subr.mxu0 0.0
    %2335 = vmatpush1.msra.mxu0 0.0
    %2336 = vmatprep.subr.mxu0 0.0
    %2337 = vmatpush1.msra.mxu0 0.0
    %2338 = vmatprep.subr.mxu0 0.0
    %2339 = vmatpush1.msra.mxu0 %v2310
    %2340 = vmatprep.subr.mxu0 0.0
    %2341 = vmatpush1.msra.mxu0 %v2309
    %2342 = vmatprep.subr.mxu0 0.0
    %2343 = vmatpush1.msra.mxu0 %v2308
    %2344 = vmatprep.subr.mxu0 0.0
    %2345 = vmatpush1.msra.mxu0 %v2307
    %2346 = vmatprep.subr.mxu0 0.0
    %2347 = vmatpush2.msra.mxu0 0.0
    %2348 = vmatprep.subr.mxu0 0.0
    %2349 = vmatpush2.msra.mxu0 0.0
    %2350 = vmatprep.subr.mxu0 0.0
    %2351 = vmatpush2.msra.mxu0 0.0
    %2352 = vmatprep.subr.mxu0 0.0
    %2353 = vmatpush2.msra.mxu0 0.0
    %2354 = vmatprep.subr.mxu0 0.0
    %2355 = vmatpush2.msra.mxu0 0.0
    %2356 = vmatprep.subr.mxu0 0.0
    %2357 = vmatpush2.msra.mxu0 0.0
    %2358 = vmatprep.subr.mxu0 0.0
    %2359 = vmatpush2.msra.mxu0 0.0
    %2360 = vmatprep.subr.mxu0 0.0
    %2361 = vmatpush2.msra.mxu0 0.0
    %2362 = vmatprep.subr.mxu0 0.0
    %2363 = vmatpush2.msra.mxu0 0.0
    %2364 = vmatprep.subr.mxu0 0.0
    %2365 = vmatpush2.msra.mxu0 0.0
    %2366 = vmatprep.subr.mxu0 0.0
    %2367 = vmatpush2.msra.mxu0 0.0
    %2368 = vmatprep.subr.mxu0 0.0
    %2369 = vmatpush2.msra.mxu0 0.0
    %2370 = vmatprep.subr.mxu0 0.0
    %2371 = vmatpush2.msra.mxu0 0.0
    %2372 = vmatprep.subr.mxu0 0.0
    %2373 = vmatpush2.msra.mxu0 0.0
    %2374 = vmatprep.subr.mxu0 0.0
    %2375 = vmatpush2.msra.mxu0 0.0
    %2376 = vmatprep.subr.mxu0 0.0
    %2377 = vmatpush2.msra.mxu0 0.0
    %2378 = vmatprep.mubr.f32.mxu0 0.0
    %2379 = vmatmul.mubr.f32.gmra.mxu0 %v2312
    %v2380 = vpop.f32.mrf.mxu0
    %v2381 = vadd.f32 0.0, %v2380
    %v2382 = vpop.f32.mrf.mxu0
    %2383 = vdwg.mxu0
    %v2384 = vld [vmem:[#allocation2 + $0x2c8] sm:$0xff]
    %v2385 = vld [vmem:[#allocation2 + $0x2d0] sm:$0xff]
    %v2386 = vld [vmem:[#allocation2 + $0x2d8] sm:$0xff]
    %v2387 = vld [vmem:[#allocation2 + $0x2e0] sm:$0xff]
    %v2388 = vld [vmem:[#allocation2 + $0x2e8] sm:$0xff]
    %v2389 = vld [vmem:[#allocation2 + $0x2f0] sm:$0xff]
    %v2390 = vld [vmem:[#allocation2 + $0x2f8] sm:$0xff]
    %v2391 = vld [vmem:[#allocation2 + $0x300] sm:$0xff]
    %v2393 = vrot.slane %v2057, 2
    %v2394 = vsel %vm79, %v2393, 0
    %2396 = vmatprep.subr.mxu0 0.0
    %2397 = vmatpush1.msra.mxu0 0.0
    %2398 = vmatprep.subr.mxu0 0.0
    %2399 = vmatpush1.msra.mxu0 0.0
    %2400 = vmatprep.subr.mxu0 0.0
    %2401 = vmatpush1.msra.mxu0 0.0
    %2402 = vmatprep.subr.mxu0 0.0
    %2403 = vmatpush1.msra.mxu0 0.0
    %2404 = vmatprep.subr.mxu0 0.0
    %2405 = vmatpush1.msra.mxu0 0.0
    %2406 = vmatprep.subr.mxu0 0.0
    %2407 = vmatpush1.msra.mxu0 0.0
    %2408 = vmatprep.subr.mxu0 0.0
    %2409 = vmatpush1.msra.mxu0 0.0
    %2410 = vmatprep.subr.mxu0 0.0
    %2411 = vmatpush1.msra.mxu0 0.0
    %2412 = vmatprep.subr.mxu0 0.0
    %2413 = vmatpush1.msra.mxu0 0.0
    %2414 = vmatprep.subr.mxu0 0.0
    %2415 = vmatpush1.msra.mxu0 0.0
    %2416 = vmatprep.subr.mxu0 0.0
    %2417 = vmatpush1.msra.mxu0 0.0
    %2418 = vmatprep.subr.mxu0 0.0
    %2419 = vmatpush1.msra.mxu0 0.0
    %2420 = vmatprep.subr.mxu0 0.0
    %2421 = vmatpush1.msra.mxu0 %v2391
    %2422 = vmatprep.subr.mxu0 0.0
    %2423 = vmatpush1.msra.mxu0 %v2390
    %2424 = vmatprep.subr.mxu0 0.0
    %2425 = vmatpush1.msra.mxu0 %v2389
    %2426 = vmatprep.subr.mxu0 0.0
    %2427 = vmatpush1.msra.mxu0 %v2388
    %2428 = vmatprep.subr.mxu0 0.0
    %2429 = vmatpush2.msra.mxu0 0.0
    %2430 = vmatprep.subr.mxu0 0.0
    %2431 = vmatpush2.msra.mxu0 0.0
    %2432 = vmatprep.subr.mxu0 0.0
    %2433 = vmatpush2.msra.mxu0 0.0
    %2434 = vmatprep.subr.mxu0 0.0
    %2435 = vmatpush2.msra.mxu0 0.0
    %2436 = vmatprep.subr.mxu0 0.0
    %2437 = vmatpush2.msra.mxu0 0.0
    %2438 = vmatprep.subr.mxu0 0.0
    %2439 = vmatpush2.msra.mxu0 0.0
    %2440 = vmatprep.subr.mxu0 0.0
    %2441 = vmatpush2.msra.mxu0 0.0
    %2442 = vmatprep.subr.mxu0 0.0
    %2443 = vmatpush2.msra.mxu0 0.0
    %2444 = vmatprep.subr.mxu0 0.0
    %2445 = vmatpush2.msra.mxu0 0.0
    %2446 = vmatprep.subr.mxu0 0.0
    %2447 = vmatpush2.msra.mxu0 0.0
    %2448 = vmatprep.subr.mxu0 0.0
    %2449 = vmatpush2.msra.mxu0 0.0
    %2450 = vmatprep.subr.mxu0 0.0
    %2451 = vmatpush2.msra.mxu0 0.0
    %2452 = vmatprep.subr.mxu0 0.0
    %2453 = vmatpush2.msra.mxu0 0.0
    %2454 = vmatprep.subr.mxu0 0.0
    %2455 = vmatpush2.msra.mxu0 0.0
    %2456 = vmatprep.subr.mxu0 0.0
    %2457 = vmatpush2.msra.mxu0 0.0
    %2458 = vmatprep.subr.mxu0 0.0
    %2459 = vmatpush2.msra.mxu0 0.0
    %2460 = vmatprep.mubr.f32.mxu0 0.0
    %2461 = vmatmul.mubr.f32.gmra.mxu0 %v2394
    %v2462 = vpop.f32.mrf.mxu0
    %v2463 = vadd.f32 0.0, %v2462
    %v2464 = vpop.f32.mrf.mxu0
    %2465 = vdwg.mxu0
    %v2466 = vld [vmem:[#allocation2 + $0x308] sm:$0xff]
    %v2467 = vld [vmem:[#allocation2 + $0x310] sm:$0xff]
    %v2468 = vld [vmem:[#allocation2 + $0x318] sm:$0xff]
    %v2469 = vld [vmem:[#allocation2 + $0x320] sm:$0xff]
    %v2470 = vld [vmem:[#allocation2 + $0x328] sm:$0xff]
    %v2471 = vld [vmem:[#allocation2 + $0x330] sm:$0xff]
    %v2472 = vld [vmem:[#allocation2 + $0x338] sm:$0xff]
    %v2473 = vld [vmem:[#allocation2 + $0x340] sm:$0xff]
    %v2474 = vrot.slane %v2057, 6
    %v2475 = vsel %vm79, %v2474, 0
    %2477 = vmatprep.subr.mxu0 0.0
    %2478 = vmatpush1.msra.mxu0 0.0
    %2479 = vmatprep.subr.mxu0 0.0
    %2480 = vmatpush1.msra.mxu0 0.0
    %2481 = vmatprep.subr.mxu0 0.0
    %2482 = vmatpush1.msra.mxu0 0.0
    %2483 = vmatprep.subr.mxu0 0.0
    %2484 = vmatpush1.msra.mxu0 0.0
    %2485 = vmatprep.subr.mxu0 0.0
    %2486 = vmatpush1.msra.mxu0 0.0
    %2487 = vmatprep.subr.mxu0 0.0
    %2488 = vmatpush1.msra.mxu0 0.0
    %2489 = vmatprep.subr.mxu0 0.0
    %2490 = vmatpush1.msra.mxu0 0.0
    %2491 = vmatprep.subr.mxu0 0.0
    %2492 = vmatpush1.msra.mxu0 0.0
    %2493 = vmatprep.subr.mxu0 0.0
    %2494 = vmatpush1.msra.mxu0 0.0
    %2495 = vmatprep.subr.mxu0 0.0
    %2496 = vmatpush1.msra.mxu0 0.0
    %2497 = vmatprep.subr.mxu0 0.0
    %2498 = vmatpush1.msra.mxu0 0.0
    %2499 = vmatprep.subr.mxu0 0.0
    %2500 = vmatpush1.msra.mxu0 0.0
    %2501 = vmatprep.subr.mxu0 0.0
    %2502 = vmatpush1.msra.mxu0 %v2473
    %2503 = vmatprep.subr.mxu0 0.0
    %2504 = vmatpush1.msra.mxu0 %v2472
    %2505 = vmatprep.subr.mxu0 0.0
    %2506 = vmatpush1.msra.mxu0 %v2471
    %2507 = vmatprep.subr.mxu0 0.0
    %2508 = vmatpush1.msra.mxu0 %v2470
    %2509 = vmatprep.subr.mxu0 0.0
    %2510 = vmatpush2.msra.mxu0 0.0
    %2511 = vmatprep.subr.mxu0 0.0
    %2512 = vmatpush2.msra.mxu0 0.0
    %2513 = vmatprep.subr.mxu0 0.0
    %2514 = vmatpush2.msra.mxu0 0.0
    %2515 = vmatprep.subr.mxu0 0.0
    %2516 = vmatpush2.msra.mxu0 0.0
    %2517 = vmatprep.subr.mxu0 0.0
    %2518 = vmatpush2.msra.mxu0 0.0
    %2519 = vmatprep.subr.mxu0 0.0
    %2520 = vmatpush2.msra.mxu0 0.0
    %2521 = vmatprep.subr.mxu0 0.0
    %2522 = vmatpush2.msra.mxu0 0.0
    %2523 = vmatprep.subr.mxu0 0.0
    %2524 = vmatpush2.msra.mxu0 0.0
    %2525 = vmatprep.subr.mxu0 0.0
    %2526 = vmatpush2.msra.mxu0 0.0
    %2527 = vmatprep.subr.mxu0 0.0
    %2528 = vmatpush2.msra.mxu0 0.0
    %2529 = vmatprep.subr.mxu0 0.0
    %2530 = vmatpush2.msra.mxu0 0.0
    %2531 = vmatprep.subr.mxu0 0.0
    %2532 = vmatpush2.msra.mxu0 0.0
    %2533 = vmatprep.subr.mxu0 0.0
    %2534 = vmatpush2.msra.mxu0 0.0
    %2535 = vmatprep.subr.mxu0 0.0
    %2536 = vmatpush2.msra.mxu0 0.0
    %2537 = vmatprep.subr.mxu0 0.0
    %2538 = vmatpush2.msra.mxu0 0.0
    %2539 = vmatprep.subr.mxu0 0.0
    %2540 = vmatpush2.msra.mxu0 0.0
    %2541 = vmatprep.mubr.f32.mxu0 0.0
    %2542 = vmatmul.mubr.f32.gmra.mxu0 %v2475
    %v2543 = vpop.f32.mrf.mxu0
    %v2544 = vadd.f32 0.0, %v2543
    %v2545 = vpop.f32.mrf.mxu0
    %2546 = vdwg.mxu0
    %v2547 = vsel %vm79, %v2055, 0
    %2549 = vmatprep.subr.mxu0 0.0
    %2550 = vmatpush1.msra.mxu0 0.0
    %2551 = vmatprep.subr.mxu0 0.0
    %2552 = vmatpush1.msra.mxu0 0.0
    %2553 = vmatprep.subr.mxu0 0.0
    %2554 = vmatpush1.msra.mxu0 0.0
    %2555 = vmatprep.subr.mxu0 0.0
    %2556 = vmatpush1.msra.mxu0 0.0
    %2557 = vmatprep.subr.mxu0 0.0
    %2558 = vmatpush1.msra.mxu0 0.0
    %2559 = vmatprep.subr.mxu0 0.0
    %2560 = vmatpush1.msra.mxu0 0.0
    %2561 = vmatprep.subr.mxu0 0.0
    %2562 = vmatpush1.msra.mxu0 0.0
    %2563 = vmatprep.subr.mxu0 0.0
    %2564 = vmatpush1.msra.mxu0 0.0
    %2565 = vmatprep.subr.mxu0 0.0
    %2566 = vmatpush1.msra.mxu0 0.0
    %2567 = vmatprep.subr.mxu0 0.0
    %2568 = vmatpush1.msra.mxu0 0.0
    %2569 = vmatprep.subr.mxu0 0.0
    %2570 = vmatpush1.msra.mxu0 0.0
    %2571 = vmatprep.subr.mxu0 0.0
    %2572 = vmatpush1.msra.mxu0 0.0
    %2573 = vmatprep.subr.mxu0 0.0
    %2574 = vmatpush1.msra.mxu0 %v2061
    %2575 = vmatprep.subr.mxu0 0.0
    %2576 = vmatpush1.msra.mxu0 %v2060
    %2577 = vmatprep.subr.mxu0 0.0
    %2578 = vmatpush1.msra.mxu0 %v2059
    %2579 = vmatprep.subr.mxu0 0.0
    %2580 = vmatpush1.msra.mxu0 %v2058
    %2581 = vmatprep.subr.mxu0 0.0
    %2582 = vmatpush2.msra.mxu0 0.0
    %2583 = vmatprep.subr.mxu0 0.0
    %2584 = vmatpush2.msra.mxu0 0.0
    %2585 = vmatprep.subr.mxu0 0.0
    %2586 = vmatpush2.msra.mxu0 0.0
    %2587 = vmatprep.subr.mxu0 0.0
    %2588 = vmatpush2.msra.mxu0 0.0
    %2589 = vmatprep.subr.mxu0 0.0
    %2590 = vmatpush2.msra.mxu0 0.0
    %2591 = vmatprep.subr.mxu0 0.0
    %2592 = vmatpush2.msra.mxu0 0.0
    %2593 = vmatprep.subr.mxu0 0.0
    %2594 = vmatpush2.msra.mxu0 0.0
    %2595 = vmatprep.subr.mxu0 0.0
    %2596 = vmatpush2.msra.mxu0 0.0
    %2597 = vmatprep.subr.mxu0 0.0
    %2598 = vmatpush2.msra.mxu0 0.0
    %2599 = vmatprep.subr.mxu0 0.0
    %2600 = vmatpush2.msra.mxu0 0.0
    %2601 = vmatprep.subr.mxu0 0.0
    %2602 = vmatpush2.msra.mxu0 0.0
    %2603 = vmatprep.subr.mxu0 0.0
    %2604 = vmatpush2.msra.mxu0 0.0
    %2605 = vmatprep.subr.mxu0 0.0
    %2606 = vmatpush2.msra.mxu0 0.0
    %2607 = vmatprep.subr.mxu0 0.0
    %2608 = vmatpush2.msra.mxu0 0.0
    %2609 = vmatprep.subr.mxu0 0.0
    %2610 = vmatpush2.msra.mxu0 0.0
    %2611 = vmatprep.subr.mxu0 0.0
    %2612 = vmatpush2.msra.mxu0 0.0
    %2613 = vmatprep.mubr.f32.mxu0 0.0
    %2614 = vmatmul.mubr.f32.gmra.mxu0 %v2547
    %v2615 = vpop.f32.mrf.mxu0
    %v2616 = vadd.f32 %v2137, %v2615
    %v2617 = vpop.f32.mrf.mxu0
    %2618 = vdwg.mxu0
    %v2619 = vrot.slane %v2055, 4
    %v2620 = vsel %vm79, %v2619, 0
    %2622 = vmatprep.subr.mxu0 0.0
    %2623 = vmatpush1.msra.mxu0 0.0
    %2624 = vmatprep.subr.mxu0 0.0
    %2625 = vmatpush1.msra.mxu0 0.0
    %2626 = vmatprep.subr.mxu0 0.0
    %2627 = vmatpush1.msra.mxu0 0.0
    %2628 = vmatprep.subr.mxu0 0.0
    %2629 = vmatpush1.msra.mxu0 0.0
    %2630 = vmatprep.subr.mxu0 0.0
    %2631 = vmatpush1.msra.mxu0 0.0
    %2632 = vmatprep.subr.mxu0 0.0
    %2633 = vmatpush1.msra.mxu0 0.0
    %2634 = vmatprep.subr.mxu0 0.0
    %2635 = vmatpush1.msra.mxu0 0.0
    %2636 = vmatprep.subr.mxu0 0.0
    %2637 = vmatpush1.msra.mxu0 0.0
    %2638 = vmatprep.subr.mxu0 0.0
    %2639 = vmatpush1.msra.mxu0 0.0
    %2640 = vmatprep.subr.mxu0 0.0
    %2641 = vmatpush1.msra.mxu0 0.0
    %2642 = vmatprep.subr.mxu0 0.0
    %2643 = vmatpush1.msra.mxu0 0.0
    %2644 = vmatprep.subr.mxu0 0.0
    %2645 = vmatpush1.msra.mxu0 0.0
    %2646 = vmatprep.subr.mxu0 0.0
    %2647 = vmatpush1.msra.mxu0 %v2143
    %2648 = vmatprep.subr.mxu0 0.0
    %2649 = vmatpush1.msra.mxu0 %v2142
    %2650 = vmatprep.subr.mxu0 0.0
    %2651 = vmatpush1.msra.mxu0 %v2141
    %2652 = vmatprep.subr.mxu0 0.0
    %2653 = vmatpush1.msra.mxu0 %v2140
    %2654 = vmatprep.subr.mxu0 0.0
    %2655 = vmatpush2.msra.mxu0 0.0
    %2656 = vmatprep.subr.mxu0 0.0
    %2657 = vmatpush2.msra.mxu0 0.0
    %2658 = vmatprep.subr.mxu0 0.0
    %2659 = vmatpush2.msra.mxu0 0.0
    %2660 = vmatprep.subr.mxu0 0.0
    %2661 = vmatpush2.msra.mxu0 0.0
    %2662 = vmatprep.subr.mxu0 0.0
    %2663 = vmatpush2.msra.mxu0 0.0
    %2664 = vmatprep.subr.mxu0 0.0
    %2665 = vmatpush2.msra.mxu0 0.0
    %2666 = vmatprep.subr.mxu0 0.0
    %2667 = vmatpush2.msra.mxu0 0.0
    %2668 = vmatprep.subr.mxu0 0.0
    %2669 = vmatpush2.msra.mxu0 0.0
    %2670 = vmatprep.subr.mxu0 0.0
    %2671 = vmatpush2.msra.mxu0 0.0
    %2672 = vmatprep.subr.mxu0 0.0
    %2673 = vmatpush2.msra.mxu0 0.0
    %2674 = vmatprep.subr.mxu0 0.0
    %2675 = vmatpush2.msra.mxu0 0.0
    %2676 = vmatprep.subr.mxu0 0.0
    %2677 = vmatpush2.msra.mxu0 0.0
    %2678 = vmatprep.subr.mxu0 0.0
    %2679 = vmatpush2.msra.mxu0 0.0
    %2680 = vmatprep.subr.mxu0 0.0
    %2681 = vmatpush2.msra.mxu0 0.0
    %2682 = vmatprep.subr.mxu0 0.0
    %2683 = vmatpush2.msra.mxu0 0.0
    %2684 = vmatprep.subr.mxu0 0.0
    %2685 = vmatpush2.msra.mxu0 0.0
    %2686 = vmatprep.mubr.f32.mxu0 0.0
    %2687 = vmatmul.mubr.f32.gmra.mxu0 %v2620
    %v2688 = vpop.f32.mrf.mxu0
    %v2689 = vadd.f32 %v2218, %v2688
    %v2690 = vpop.f32.mrf.mxu0
    %2691 = vdwg.mxu0
    %v2692 = vsel %vm79, %v2056, 0
    %2694 = vmatprep.subr.mxu0 0.0
    %2695 = vmatpush1.msra.mxu0 0.0
    %2696 = vmatprep.subr.mxu0 0.0
    %2697 = vmatpush1.msra.mxu0 0.0
    %2698 = vmatprep.subr.mxu0 0.0
    %2699 = vmatpush1.msra.mxu0 0.0
    %2700 = vmatprep.subr.mxu0 0.0
    %2701 = vmatpush1.msra.mxu0 0.0
    %2702 = vmatprep.subr.mxu0 0.0
    %2703 = vmatpush1.msra.mxu0 0.0
    %2704 = vmatprep.subr.mxu0 0.0
    %2705 = vmatpush1.msra.mxu0 0.0
    %2706 = vmatprep.subr.mxu0 0.0
    %2707 = vmatpush1.msra.mxu0 0.0
    %2708 = vmatprep.subr.mxu0 0.0
    %2709 = vmatpush1.msra.mxu0 0.0
    %2710 = vmatprep.subr.mxu0 0.0
    %2711 = vmatpush1.msra.mxu0 0.0
    %2712 = vmatprep.subr.mxu0 0.0
    %2713 = vmatpush1.msra.mxu0 0.0
    %2714 = vmatprep.subr.mxu0 0.0
    %2715 = vmatpush1.msra.mxu0 0.0
    %2716 = vmatprep.subr.mxu0 0.0
    %2717 = vmatpush1.msra.mxu0 0.0
    %2718 = vmatprep.subr.mxu0 0.0
    %2719 = vmatpush1.msra.mxu0 %v2224
    %2720 = vmatprep.subr.mxu0 0.0
    %2721 = vmatpush1.msra.mxu0 %v2223
    %2722 = vmatprep.subr.mxu0 0.0
    %2723 = vmatpush1.msra.mxu0 %v2222
    %2724 = vmatprep.subr.mxu0 0.0
    %2725 = vmatpush1.msra.mxu0 %v2221
    %2726 = vmatprep.subr.mxu0 0.0
    %2727 = vmatpush2.msra.mxu0 0.0
    %2728 = vmatprep.subr.mxu0 0.0
    %2729 = vmatpush2.msra.mxu0 0.0
    %2730 = vmatprep.subr.mxu0 0.0
    %2731 = vmatpush2.msra.mxu0 0.0
    %2732 = vmatprep.subr.mxu0 0.0
    %2733 = vmatpush2.msra.mxu0 0.0
    %2734 = vmatprep.subr.mxu0 0.0
    %2735 = vmatpush2.msra.mxu0 0.0
    %2736 = vmatprep.subr.mxu0 0.0
    %2737 = vmatpush2.msra.mxu0 0.0
    %2738 = vmatprep.subr.mxu0 0.0
    %2739 = vmatpush2.msra.mxu0 0.0
    %2740 = vmatprep.subr.mxu0 0.0
    %2741 = vmatpush2.msra.mxu0 0.0
    %2742 = vmatprep.subr.mxu0 0.0
    %2743 = vmatpush2.msra.mxu0 0.0
    %2744 = vmatprep.subr.mxu0 0.0
    %2745 = vmatpush2.msra.mxu0 0.0
    %2746 = vmatprep.subr.mxu0 0.0
    %2747 = vmatpush2.msra.mxu0 0.0
    %2748 = vmatprep.subr.mxu0 0.0
    %2749 = vmatpush2.msra.mxu0 0.0
    %2750 = vmatprep.subr.mxu0 0.0
    %2751 = vmatpush2.msra.mxu0 0.0
    %2752 = vmatprep.subr.mxu0 0.0
    %2753 = vmatpush2.msra.mxu0 0.0
    %2754 = vmatprep.subr.mxu0 0.0
    %2755 = vmatpush2.msra.mxu0 0.0
    %2756 = vmatprep.subr.mxu0 0.0
    %2757 = vmatpush2.msra.mxu0 0.0
    %2758 = vmatprep.mubr.f32.mxu0 0.0
    %2759 = vmatmul.mubr.f32.gmra.mxu0 %v2692
    %v2760 = vpop.f32.mrf.mxu0
    %v2761 = vadd.f32 %v2300, %v2760
    %v2762 = vpop.f32.mrf.mxu0
    %2763 = vdwg.mxu0
    %v2764 = vrot.slane %v2056, 4
    %v2765 = vsel %vm79, %v2764, 0
    %2767 = vmatprep.subr.mxu0 0.0
    %2768 = vmatpush1.msra.mxu0 0.0
    %2769 = vmatprep.subr.mxu0 0.0
    %2770 = vmatpush1.msra.mxu0 0.0
    %2771 = vmatprep.subr.mxu0 0.0
    %2772 = vmatpush1.msra.mxu0 0.0
    %2773 = vmatprep.subr.mxu0 0.0
    %2774 = vmatpush1.msra.mxu0 0.0
    %2775 = vmatprep.subr.mxu0 0.0
    %2776 = vmatpush1.msra.mxu0 0.0
    %2777 = vmatprep.subr.mxu0 0.0
    %2778 = vmatpush1.msra.mxu0 0.0
    %2779 = vmatprep.subr.mxu0 0.0
    %2780 = vmatpush1.msra.mxu0 0.0
    %2781 = vmatprep.subr.mxu0 0.0
    %2782 = vmatpush1.msra.mxu0 0.0
    %2783 = vmatprep.subr.mxu0 0.0
    %2784 = vmatpush1.msra.mxu0 0.0
    %2785 = vmatprep.subr.mxu0 0.0
    %2786 = vmatpush1.msra.mxu0 0.0
    %2787 = vmatprep.subr.mxu0 0.0
    %2788 = vmatpush1.msra.mxu0 0.0
    %2789 = vmatprep.subr.mxu0 0.0
    %2790 = vmatpush1.msra.mxu0 0.0
    %2791 = vmatprep.subr.mxu0 0.0
    %2792 = vmatpush1.msra.mxu0 %v2306
    %2793 = vmatprep.subr.mxu0 0.0
    %2794 = vmatpush1.msra.mxu0 %v2305
    %2795 = vmatprep.subr.mxu0 0.0
    %2796 = vmatpush1.msra.mxu0 %v2304
    %2797 = vmatprep.subr.mxu0 0.0
    %2798 = vmatpush1.msra.mxu0 %v2303
    %2799 = vmatprep.subr.mxu0 0.0
    %2800 = vmatpush2.msra.mxu0 0.0
    %2801 = vmatprep.subr.mxu0 0.0
    %2802 = vmatpush2.msra.mxu0 0.0
    %2803 = vmatprep.subr.mxu0 0.0
    %2804 = vmatpush2.msra.mxu0 0.0
    %2805 = vmatprep.subr.mxu0 0.0
    %2806 = vmatpush2.msra.mxu0 0.0
    %2807 = vmatprep.subr.mxu0 0.0
    %2808 = vmatpush2.msra.mxu0 0.0
    %2809 = vmatprep.subr.mxu0 0.0
    %2810 = vmatpush2.msra.mxu0 0.0
    %2811 = vmatprep.subr.mxu0 0.0
    %2812 = vmatpush2.msra.mxu0 0.0
    %2813 = vmatprep.subr.mxu0 0.0
    %2814 = vmatpush2.msra.mxu0 0.0
    %2815 = vmatprep.subr.mxu0 0.0
    %2816 = vmatpush2.msra.mxu0 0.0
    %2817 = vmatprep.subr.mxu0 0.0
    %2818 = vmatpush2.msra.mxu0 0.0
    %2819 = vmatprep.subr.mxu0 0.0
    %2820 = vmatpush2.msra.mxu0 0.0
    %2821 = vmatprep.subr.mxu0 0.0
    %2822 = vmatpush2.msra.mxu0 0.0
    %2823 = vmatprep.subr.mxu0 0.0
    %2824 = vmatpush2.msra.mxu0 0.0
    %2825 = vmatprep.subr.mxu0 0.0
    %2826 = vmatpush2.msra.mxu0 0.0
    %2827 = vmatprep.subr.mxu0 0.0
    %2828 = vmatpush2.msra.mxu0 0.0
    %2829 = vmatprep.subr.mxu0 0.0
    %2830 = vmatpush2.msra.mxu0 0.0
    %2831 = vmatprep.mubr.f32.mxu0 0.0
    %2832 = vmatmul.mubr.f32.gmra.mxu0 %v2765
    %v2833 = vpop.f32.mrf.mxu0
    %v2834 = vadd.f32 %v2381, %v2833
    %v2835 = vpop.f32.mrf.mxu0
    %2836 = vdwg.mxu0
    %v2837 = vsel %vm79, %v2057, 0
    %2839 = vmatprep.subr.mxu0 0.0
    %2840 = vmatpush1.msra.mxu0 0.0
    %2841 = vmatprep.subr.mxu0 0.0
    %2842 = vmatpush1.msra.mxu0 0.0
    %2843 = vmatprep.subr.mxu0 0.0
    %2844 = vmatpush1.msra.mxu0 0.0
    %2845 = vmatprep.subr.mxu0 0.0
    %2846 = vmatpush1.msra.mxu0 0.0
    %2847 = vmatprep.subr.mxu0 0.0
    %2848 = vmatpush1.msra.mxu0 0.0
    %2849 = vmatprep.subr.mxu0 0.0
    %2850 = vmatpush1.msra.mxu0 0.0
    %2851 = vmatprep.subr.mxu0 0.0
    %2852 = vmatpush1.msra.mxu0 0.0
    %2853 = vmatprep.subr.mxu0 0.0
    %2854 = vmatpush1.msra.mxu0 0.0
    %2855 = vmatprep.subr.mxu0 0.0
    %2856 = vmatpush1.msra.mxu0 0.0
    %2857 = vmatprep.subr.mxu0 0.0
    %2858 = vmatpush1.msra.mxu0 0.0
    %2859 = vmatprep.subr.mxu0 0.0
    %2860 = vmatpush1.msra.mxu0 0.0
    %2861 = vmatprep.subr.mxu0 0.0
    %2862 = vmatpush1.msra.mxu0 0.0
    %2863 = vmatprep.subr.mxu0 0.0
    %2864 = vmatpush1.msra.mxu0 %v2387
    %2865 = vmatprep.subr.mxu0 0.0
    %2866 = vmatpush1.msra.mxu0 %v2386
    %2867 = vmatprep.subr.mxu0 0.0
    %2868 = vmatpush1.msra.mxu0 %v2385
    %2869 = vmatprep.subr.mxu0 0.0
    %2870 = vmatpush1.msra.mxu0 %v2384
    %2871 = vmatprep.subr.mxu0 0.0
    %2872 = vmatpush2.msra.mxu0 0.0
    %2873 = vmatprep.subr.mxu0 0.0
    %2874 = vmatpush2.msra.mxu0 0.0
    %2875 = vmatprep.subr.mxu0 0.0
    %2876 = vmatpush2.msra.mxu0 0.0
    %2877 = vmatprep.subr.mxu0 0.0
    %2878 = vmatpush2.msra.mxu0 0.0
    %2879 = vmatprep.subr.mxu0 0.0
    %2880 = vmatpush2.msra.mxu0 0.0
    %2881 = vmatprep.subr.mxu0 0.0
    %2882 = vmatpush2.msra.mxu0 0.0
    %2883 = vmatprep.subr.mxu0 0.0
    %2884 = vmatpush2.msra.mxu0 0.0
    %2885 = vmatprep.subr.mxu0 0.0
    %2886 = vmatpush2.msra.mxu0 0.0
    %2887 = vmatprep.subr.mxu0 0.0
    %2888 = vmatpush2.msra.mxu0 0.0
    %2889 = vmatprep.subr.mxu0 0.0
    %2890 = vmatpush2.msra.mxu0 0.0
    %2891 = vmatprep.subr.mxu0 0.0
    %2892 = vmatpush2.msra.mxu0 0.0
    %2893 = vmatprep.subr.mxu0 0.0
    %2894 = vmatpush2.msra.mxu0 0.0
    %2895 = vmatprep.subr.mxu0 0.0
    %2896 = vmatpush2.msra.mxu0 0.0
    %2897 = vmatprep.subr.mxu0 0.0
    %2898 = vmatpush2.msra.mxu0 0.0
    %2899 = vmatprep.subr.mxu0 0.0
    %2900 = vmatpush2.msra.mxu0 0.0
    %2901 = vmatprep.subr.mxu0 0.0
    %2902 = vmatpush2.msra.mxu0 0.0
    %2903 = vmatprep.mubr.f32.mxu0 0.0
    %2904 = vmatmul.mubr.f32.gmra.mxu0 %v2837
    %v2905 = vpop.f32.mrf.mxu0
    %v2906 = vadd.f32 %v2463, %v2905
    %v2907 = vpop.f32.mrf.mxu0
    %2908 = vdwg.mxu0
    %v2909 = vrot.slane %v2057, 4
    %v2910 = vsel %vm79, %v2909, 0
    %2912 = vmatprep.subr.mxu0 0.0
    %2913 = vmatpush1.msra.mxu0 0.0
    %2914 = vmatprep.subr.mxu0 0.0
    %2915 = vmatpush1.msra.mxu0 0.0
    %2916 = vmatprep.subr.mxu0 0.0
    %2917 = vmatpush1.msra.mxu0 0.0
    %2918 = vmatprep.subr.mxu0 0.0
    %2919 = vmatpush1.msra.mxu0 0.0
    %2920 = vmatprep.subr.mxu0 0.0
    %2921 = vmatpush1.msra.mxu0 0.0
    %2922 = vmatprep.subr.mxu0 0.0
    %2923 = vmatpush1.msra.mxu0 0.0
    %2924 = vmatprep.subr.mxu0 0.0
    %2925 = vmatpush1.msra.mxu0 0.0
    %2926 = vmatprep.subr.mxu0 0.0
    %2927 = vmatpush1.msra.mxu0 0.0
    %2928 = vmatprep.subr.mxu0 0.0
    %2929 = vmatpush1.msra.mxu0 0.0
    %2930 = vmatprep.subr.mxu0 0.0
    %2931 = vmatpush1.msra.mxu0 0.0
    %2932 = vmatprep.subr.mxu0 0.0
    %2933 = vmatpush1.msra.mxu0 0.0
    %2934 = vmatprep.subr.mxu0 0.0
    %2935 = vmatpush1.msra.mxu0 0.0
    %2936 = vmatprep.subr.mxu0 0.0
    %2937 = vmatpush1.msra.mxu0 %v2469
    %2938 = vmatprep.subr.mxu0 0.0
    %2939 = vmatpush1.msra.mxu0 %v2468
    %2940 = vmatprep.subr.mxu0 0.0
    %2941 = vmatpush1.msra.mxu0 %v2467
    %2942 = vmatprep.subr.mxu0 0.0
    %2943 = vmatpush1.msra.mxu0 %v2466
    %2944 = vmatprep.subr.mxu0 0.0
    %2945 = vmatpush2.msra.mxu0 0.0
    %2946 = vmatprep.subr.mxu0 0.0
    %2947 = vmatpush2.msra.mxu0 0.0
    %2948 = vmatprep.subr.mxu0 0.0
    %2949 = vmatpush2.msra.mxu0 0.0
    %2950 = vmatprep.subr.mxu0 0.0
    %2951 = vmatpush2.msra.mxu0 0.0
    %2952 = vmatprep.subr.mxu0 0.0
    %2953 = vmatpush2.msra.mxu0 0.0
    %2954 = vmatprep.subr.mxu0 0.0
    %2955 = vmatpush2.msra.mxu0 0.0
    %2956 = vmatprep.subr.mxu0 0.0
    %2957 = vmatpush2.msra.mxu0 0.0
    %2958 = vmatprep.subr.mxu0 0.0
    %2959 = vmatpush2.msra.mxu0 0.0
    %2960 = vmatprep.subr.mxu0 0.0
    %2961 = vmatpush2.msra.mxu0 0.0
    %2962 = vmatprep.subr.mxu0 0.0
    %2963 = vmatpush2.msra.mxu0 0.0
    %2964 = vmatprep.subr.mxu0 0.0
    %2965 = vmatpush2.msra.mxu0 0.0
    %2966 = vmatprep.subr.mxu0 0.0
    %2967 = vmatpush2.msra.mxu0 0.0
    %2968 = vmatprep.subr.mxu0 0.0
    %2969 = vmatpush2.msra.mxu0 0.0
    %2970 = vmatprep.subr.mxu0 0.0
    %2971 = vmatpush2.msra.mxu0 0.0
    %2972 = vmatprep.subr.mxu0 0.0
    %2973 = vmatpush2.msra.mxu0 0.0
    %2974 = vmatprep.subr.mxu0 0.0
    %2975 = vmatpush2.msra.mxu0 0.0
    %2976 = vmatprep.mubr.f32.mxu0 0.0
    %2977 = vmatmul.mubr.f32.gmra.mxu0 %v2910
    %v2978 = vpop.f32.mrf.mxu0
    %v2979 = vadd.f32 %v2544, %v2978
    %v2980 = vpop.f32.mrf.mxu0
    %2981 = vdwg.mxu0
    %v2982 = vadd.f32 %v2616, %v2689
    %v2983 = vadd.f32 %v2761, %v2834
    %v2984 = vadd.f32 %v2906, %v2979
    %v2985 = vadd.f32 %v2982, %v2983
    %v2986 = vadd.f32 %v2985, %v2984
    %v2987 = vld [vmem:[#allocation2 + $0x348] sm:$0x1]
    %v2988 = vlaneseq
    %v2989 = vshrl.u32 %v2988, 7
    %v2990 = vsub.s32 0, %v2989
    %v2991 = vrot.slane %v2987, %v2990
    %v2992 = vadd.f32 %v2986, %v2991
    %v2993 = vmul.f32 %v2992, 0.5
    %v2994 = vmul.f32 %v2993, 1.442695
    %v2995 = vpow.pop %v2994
    %v2996 = vld [vmem:[%s2] sm:$0x3]
    %2998 = vrot.lane.b32.xlu0 %v2996, 32
    %v2999 = vpop.permute.xlu0 %2998
    %v3001 = vmul.f32 %v2995, %v2999
    %3003 = vrot.lane.b32.xlu0 %v3001, 96
    %v3004 = vpop.permute.xlu0 %3003
    %v3006 = vadd.f32 %v2992, %v3004
    %v3007 = vld [vmem:[#allocation2 + $0x350] sm:$0xff]
    %v3008 = vld [vmem:[#allocation2 + $0x358] sm:$0xff]
    %v3009 = vld [vmem:[#allocation2 + $0x360] sm:$0xff]
    %v3010 = vld [vmem:[#allocation2 + $0x368] sm:$0xff]
    %v3011 = vld [vmem:[#allocation2 + $0x370] sm:$0x1]
    %v3012 = vlaneseq
    %v3013 = vshrl.u32 %v3012, 7
    %v3014 = vsub.s32 0, %v3013
    %v3015 = vrot.slane %v3011, %v3014
    %v3017 = vsel %vm79, %v980, 0
    %v3020 = vsel %vm79, %v981, 0
    %3022 = vmatprep.subr.mxu0 0.0
    %3023 = vmatpush1.msra.mxu0 0.0
    %3024 = vmatprep.subr.mxu0 0.0
    %3025 = vmatpush1.msra.mxu0 0.0
    %3026 = vmatprep.subr.mxu0 0.0
    %3027 = vmatpush1.msra.mxu0 0.0
    %3028 = vmatprep.subr.mxu0 0.0
    %3029 = vmatpush1.msra.mxu0 0.0
    %3030 = vmatprep.subr.mxu0 0.0
    %3031 = vmatpush1.msra.mxu0 0.0
    %3032 = vmatprep.subr.mxu0 0.0
    %3033 = vmatpush1.msra.mxu0 0.0
    %3034 = vmatprep.subr.mxu0 0.0
    %3035 = vmatpush1.msra.mxu0 0.0
    %3036 = vmatprep.subr.mxu0 0.0
    %3037 = vmatpush1.msra.mxu0 0.0
    %3038 = vmatprep.subr.mxu0 0.0
    %3039 = vmatpush1.msra.mxu0 0.0
    %3040 = vmatprep.subr.mxu0 0.0
    %3041 = vmatpush1.msra.mxu0 0.0
    %3042 = vmatprep.subr.mxu0 0.0
    %3043 = vmatpush1.msra.mxu0 0.0
    %3044 = vmatprep.subr.mxu0 0.0
    %3045 = vmatpush1.msra.mxu0 0.0
    %3046 = vmatprep.subr.mxu0 0.0
    %3047 = vmatpush1.msra.mxu0 %v3010
    %3048 = vmatprep.subr.mxu0 0.0
    %3049 = vmatpush1.msra.mxu0 %v3009
    %3050 = vmatprep.subr.mxu0 0.0
    %3051 = vmatpush1.msra.mxu0 %v3008
    %3052 = vmatprep.subr.mxu0 0.0
    %3053 = vmatpush1.msra.mxu0 %v3007
    %3054 = vmatprep.subr.mxu0 0.0
    %3055 = vmatpush2.msra.mxu0 0.0
    %3056 = vmatprep.subr.mxu0 0.0
    %3057 = vmatpush2.msra.mxu0 0.0
    %3058 = vmatprep.subr.mxu0 0.0
    %3059 = vmatpush2.msra.mxu0 0.0
    %3060 = vmatprep.subr.mxu0 0.0
    %3061 = vmatpush2.msra.mxu0 0.0
    %3062 = vmatprep.subr.mxu0 0.0
    %3063 = vmatpush2.msra.mxu0 0.0
    %3064 = vmatprep.subr.mxu0 0.0
    %3065 = vmatpush2.msra.mxu0 0.0
    %3066 = vmatprep.subr.mxu0 0.0
    %3067 = vmatpush2.msra.mxu0 0.0
    %3068 = vmatprep.subr.mxu0 0.0
    %3069 = vmatpush2.msra.mxu0 0.0
    %3070 = vmatprep.subr.mxu0 0.0
    %3071 = vmatpush2.msra.mxu0 0.0
    %3072 = vmatprep.subr.mxu0 0.0
    %3073 = vmatpush2.msra.mxu0 0.0
    %3074 = vmatprep.subr.mxu0 0.0
    %3075 = vmatpush2.msra.mxu0 0.0
    %3076 = vmatprep.subr.mxu0 0.0
    %3077 = vmatpush2.msra.mxu0 0.0
    %3078 = vmatprep.subr.mxu0 0.0
    %3079 = vmatpush2.msra.mxu0 0.0
    %3080 = vmatprep.subr.mxu0 0.0
    %3081 = vmatpush2.msra.mxu0 0.0
    %3082 = vmatprep.subr.mxu0 0.0
    %3083 = vmatpush2.msra.mxu0 0.0
    %3084 = vmatprep.subr.mxu0 0.0
    %3085 = vmatpush2.msra.mxu0 0.0
    %3086 = vmatprep.mubr.f32.mxu0 0.0
    %3087 = vmatmul.mubr.f32.gmra.mxu0 %v3017
    %v3088 = vpop.f32.mrf.mxu0
    %v3089 = vadd.f32 %v3015, %v3088
    %v3090 = vpop.f32.mrf.mxu0
    %3091 = vmatprep.mubr.f32.mxu0 0.0
    %3092 = vmatmul.mubr.f32.gmra.mxu0 %v3020
    %v3093 = vpop.f32.mrf.mxu0
    %v3094 = vadd.f32 %v3015, %v3093
    %v3095 = vpop.f32.mrf.mxu0
    %3096 = vdwg.mxu0
    %v3097 = vmax.f32 %v3089, 0.0
    %v3098 = vmax.f32 %v3094, 0.0
    %v3099 = vld [vmem:[#allocation2 + $0x478] sm:$0xff]
    %v3100 = vld [vmem:[#allocation2 + $0x480] sm:$0xff]
    %v3101 = vld [vmem:[#allocation2 + $0x488] sm:$0xff]
    %v3102 = vld [vmem:[#allocation2 + $0x490] sm:$0xff]
    %v3103 = vld [vmem:[#allocation2 + $0x378] sm:$0xff]
    %v3104 = vld [vmem:[#allocation2 + $0x380] sm:$0xff]
    %v3105 = vld [vmem:[#allocation2 + $0x388] sm:$0xff]
    %v3106 = vld [vmem:[#allocation2 + $0x390] sm:$0xff]
    %v3108 = vsel %vm79, %v3097, 0
    %3110 = vmatprep.subr.mxu0 0.0
    %3111 = vmatpush1.msra.mxu0 0.0
    %3112 = vmatprep.subr.mxu0 0.0
    %3113 = vmatpush1.msra.mxu0 0.0
    %3114 = vmatprep.subr.mxu0 0.0
    %3115 = vmatpush1.msra.mxu0 0.0
    %3116 = vmatprep.subr.mxu0 0.0
    %3117 = vmatpush1.msra.mxu0 0.0
    %3118 = vmatprep.subr.mxu0 0.0
    %3119 = vmatpush1.msra.mxu0 0.0
    %3120 = vmatprep.subr.mxu0 0.0
    %3121 = vmatpush1.msra.mxu0 0.0
    %3122 = vmatprep.subr.mxu0 0.0
    %3123 = vmatpush1.msra.mxu0 0.0
    %3124 = vmatprep.subr.mxu0 0.0
    %3125 = vmatpush1.msra.mxu0 0.0
    %3126 = vmatprep.subr.mxu0 0.0
    %3127 = vmatpush1.msra.mxu0 0.0
    %3128 = vmatprep.subr.mxu0 0.0
    %3129 = vmatpush1.msra.mxu0 0.0
    %3130 = vmatprep.subr.mxu0 0.0
    %3131 = vmatpush1.msra.mxu0 0.0
    %3132 = vmatprep.subr.mxu0 0.0
    %3133 = vmatpush1.msra.mxu0 0.0
    %3134 = vmatprep.subr.mxu0 0.0
    %3135 = vmatpush1.msra.mxu0 %v3106
    %3136 = vmatprep.subr.mxu0 0.0
    %3137 = vmatpush1.msra.mxu0 %v3105
    %3138 = vmatprep.subr.mxu0 0.0
    %3139 = vmatpush1.msra.mxu0 %v3104
    %3140 = vmatprep.subr.mxu0 0.0
    %3141 = vmatpush1.msra.mxu0 %v3103
    %3142 = vmatprep.subr.mxu0 0.0
    %3143 = vmatpush2.msra.mxu0 0.0
    %3144 = vmatprep.subr.mxu0 0.0
    %3145 = vmatpush2.msra.mxu0 0.0
    %3146 = vmatprep.subr.mxu0 0.0
    %3147 = vmatpush2.msra.mxu0 0.0
    %3148 = vmatprep.subr.mxu0 0.0
    %3149 = vmatpush2.msra.mxu0 0.0
    %3150 = vmatprep.subr.mxu0 0.0
    %3151 = vmatpush2.msra.mxu0 0.0
    %3152 = vmatprep.subr.mxu0 0.0
    %3153 = vmatpush2.msra.mxu0 0.0
    %3154 = vmatprep.subr.mxu0 0.0
    %3155 = vmatpush2.msra.mxu0 0.0
    %3156 = vmatprep.subr.mxu0 0.0
    %3157 = vmatpush2.msra.mxu0 0.0
    %3158 = vmatprep.subr.mxu0 0.0
    %3159 = vmatpush2.msra.mxu0 0.0
    %3160 = vmatprep.subr.mxu0 0.0
    %3161 = vmatpush2.msra.mxu0 0.0
    %3162 = vmatprep.subr.mxu0 0.0
    %3163 = vmatpush2.msra.mxu0 0.0
    %3164 = vmatprep.subr.mxu0 0.0
    %3165 = vmatpush2.msra.mxu0 0.0
    %3166 = vmatprep.subr.mxu0 0.0
    %3167 = vmatpush2.msra.mxu0 0.0
    %3168 = vmatprep.subr.mxu0 0.0
    %3169 = vmatpush2.msra.mxu0 0.0
    %3170 = vmatprep.subr.mxu0 0.0
    %3171 = vmatpush2.msra.mxu0 0.0
    %3172 = vmatprep.subr.mxu0 0.0
    %3173 = vmatpush2.msra.mxu0 0.0
    %3174 = vmatprep.mubr.f32.mxu0 0.0
    %3175 = vmatmul.mubr.f32.gmra.mxu0 %v3108
    %v3176 = vpop.f32.mrf.mxu0
    %v3177 = vadd.f32 0.0, %v3176
    %v3178 = vpop.f32.mrf.mxu0
    %3179 = vdwg.mxu0
    %v3180 = vld [vmem:[#allocation2 + $0x398] sm:$0xff]
    %v3181 = vld [vmem:[#allocation2 + $0x3a0] sm:$0xff]
    %v3182 = vld [vmem:[#allocation2 + $0x3a8] sm:$0xff]
    %v3183 = vld [vmem:[#allocation2 + $0x3b0] sm:$0xff]
    %v3184 = vld [vmem:[#allocation2 + $0x3b8] sm:$0xff]
    %v3185 = vld [vmem:[#allocation2 + $0x3c0] sm:$0xff]
    %v3186 = vld [vmem:[#allocation2 + $0x3c8] sm:$0xff]
    %v3187 = vld [vmem:[#allocation2 + $0x3d0] sm:$0xff]
    %v3188 = vrot.slane %v3097, 4
    %v3189 = vsel %vm79, %v3188, 0
    %3191 = vmatprep.subr.mxu0 0.0
    %3192 = vmatpush1.msra.mxu0 0.0
    %3193 = vmatprep.subr.mxu0 0.0
    %3194 = vmatpush1.msra.mxu0 0.0
    %3195 = vmatprep.subr.mxu0 0.0
    %3196 = vmatpush1.msra.mxu0 0.0
    %3197 = vmatprep.subr.mxu0 0.0
    %3198 = vmatpush1.msra.mxu0 0.0
    %3199 = vmatprep.subr.mxu0 0.0
    %3200 = vmatpush1.msra.mxu0 0.0
    %3201 = vmatprep.subr.mxu0 0.0
    %3202 = vmatpush1.msra.mxu0 0.0
    %3203 = vmatprep.subr.mxu0 0.0
    %3204 = vmatpush1.msra.mxu0 0.0
    %3205 = vmatprep.subr.mxu0 0.0
    %3206 = vmatpush1.msra.mxu0 0.0
    %3207 = vmatprep.subr.mxu0 0.0
    %3208 = vmatpush1.msra.mxu0 0.0
    %3209 = vmatprep.subr.mxu0 0.0
    %3210 = vmatpush1.msra.mxu0 0.0
    %3211 = vmatprep.subr.mxu0 0.0
    %3212 = vmatpush1.msra.mxu0 0.0
    %3213 = vmatprep.subr.mxu0 0.0
    %3214 = vmatpush1.msra.mxu0 0.0
    %3215 = vmatprep.subr.mxu0 0.0
    %3216 = vmatpush1.msra.mxu0 %v3187
    %3217 = vmatprep.subr.mxu0 0.0
    %3218 = vmatpush1.msra.mxu0 %v3186
    %3219 = vmatprep.subr.mxu0 0.0
    %3220 = vmatpush1.msra.mxu0 %v3185
    %3221 = vmatprep.subr.mxu0 0.0
    %3222 = vmatpush1.msra.mxu0 %v3184
    %3223 = vmatprep.subr.mxu0 0.0
    %3224 = vmatpush2.msra.mxu0 0.0
    %3225 = vmatprep.subr.mxu0 0.0
    %3226 = vmatpush2.msra.mxu0 0.0
    %3227 = vmatprep.subr.mxu0 0.0
    %3228 = vmatpush2.msra.mxu0 0.0
    %3229 = vmatprep.subr.mxu0 0.0
    %3230 = vmatpush2.msra.mxu0 0.0
    %3231 = vmatprep.subr.mxu0 0.0
    %3232 = vmatpush2.msra.mxu0 0.0
    %3233 = vmatprep.subr.mxu0 0.0
    %3234 = vmatpush2.msra.mxu0 0.0
    %3235 = vmatprep.subr.mxu0 0.0
    %3236 = vmatpush2.msra.mxu0 0.0
    %3237 = vmatprep.subr.mxu0 0.0
    %3238 = vmatpush2.msra.mxu0 0.0
    %3239 = vmatprep.subr.mxu0 0.0
    %3240 = vmatpush2.msra.mxu0 0.0
    %3241 = vmatprep.subr.mxu0 0.0
    %3242 = vmatpush2.msra.mxu0 0.0
    %3243 = vmatprep.subr.mxu0 0.0
    %3244 = vmatpush2.msra.mxu0 0.0
    %3245 = vmatprep.subr.mxu0 0.0
    %3246 = vmatpush2.msra.mxu0 0.0
    %3247 = vmatprep.subr.mxu0 0.0
    %3248 = vmatpush2.msra.mxu0 0.0
    %3249 = vmatprep.subr.mxu0 0.0
    %3250 = vmatpush2.msra.mxu0 0.0
    %3251 = vmatprep.subr.mxu0 0.0
    %3252 = vmatpush2.msra.mxu0 0.0
    %3253 = vmatprep.subr.mxu0 0.0
    %3254 = vmatpush2.msra.mxu0 0.0
    %3255 = vmatprep.mubr.f32.mxu0 0.0
    %3256 = vmatmul.mubr.f32.gmra.mxu0 %v3189
    %v3257 = vpop.f32.mrf.mxu0
    %v3258 = vadd.f32 0.0, %v3257
    %v3259 = vpop.f32.mrf.mxu0
    %3260 = vdwg.mxu0
    %v3261 = vld [vmem:[#allocation2 + $0x3d8] sm:$0xff]
    %v3262 = vld [vmem:[#allocation2 + $0x3e0] sm:$0xff]
    %v3263 = vld [vmem:[#allocation2 + $0x3e8] sm:$0xff]
    %v3264 = vld [vmem:[#allocation2 + $0x3f0] sm:$0xff]
    %v3265 = vld [vmem:[#allocation2 + $0x3f8] sm:$0xff]
    %v3266 = vld [vmem:[#allocation2 + $0x400] sm:$0xff]
    %v3267 = vld [vmem:[#allocation2 + $0x408] sm:$0xff]
    %v3268 = vld [vmem:[#allocation2 + $0x410] sm:$0xff]
    %v3270 = vsel %vm79, %v3098, 0
    %3272 = vmatprep.subr.mxu0 0.0
    %3273 = vmatpush1.msra.mxu0 0.0
    %3274 = vmatprep.subr.mxu0 0.0
    %3275 = vmatpush1.msra.mxu0 0.0
    %3276 = vmatprep.subr.mxu0 0.0
    %3277 = vmatpush1.msra.mxu0 0.0
    %3278 = vmatprep.subr.mxu0 0.0
    %3279 = vmatpush1.msra.mxu0 0.0
    %3280 = vmatprep.subr.mxu0 0.0
    %3281 = vmatpush1.msra.mxu0 0.0
    %3282 = vmatprep.subr.mxu0 0.0
    %3283 = vmatpush1.msra.mxu0 0.0
    %3284 = vmatprep.subr.mxu0 0.0
    %3285 = vmatpush1.msra.mxu0 0.0
    %3286 = vmatprep.subr.mxu0 0.0
    %3287 = vmatpush1.msra.mxu0 0.0
    %3288 = vmatprep.subr.mxu0 0.0
    %3289 = vmatpush1.msra.mxu0 0.0
    %3290 = vmatprep.subr.mxu0 0.0
    %3291 = vmatpush1.msra.mxu0 0.0
    %3292 = vmatprep.subr.mxu0 0.0
    %3293 = vmatpush1.msra.mxu0 0.0
    %3294 = vmatprep.subr.mxu0 0.0
    %3295 = vmatpush1.msra.mxu0 0.0
    %3296 = vmatprep.subr.mxu0 0.0
    %3297 = vmatpush1.msra.mxu0 %v3268
    %3298 = vmatprep.subr.mxu0 0.0
    %3299 = vmatpush1.msra.mxu0 %v3267
    %3300 = vmatprep.subr.mxu0 0.0
    %3301 = vmatpush1.msra.mxu0 %v3266
    %3302 = vmatprep.subr.mxu0 0.0
    %3303 = vmatpush1.msra.mxu0 %v3265
    %3304 = vmatprep.subr.mxu0 0.0
    %3305 = vmatpush2.msra.mxu0 0.0
    %3306 = vmatprep.subr.mxu0 0.0
    %3307 = vmatpush2.msra.mxu0 0.0
    %3308 = vmatprep.subr.mxu0 0.0
    %3309 = vmatpush2.msra.mxu0 0.0
    %3310 = vmatprep.subr.mxu0 0.0
    %3311 = vmatpush2.msra.mxu0 0.0
    %3312 = vmatprep.subr.mxu0 0.0
    %3313 = vmatpush2.msra.mxu0 0.0
    %3314 = vmatprep.subr.mxu0 0.0
    %3315 = vmatpush2.msra.mxu0 0.0
    %3316 = vmatprep.subr.mxu0 0.0
    %3317 = vmatpush2.msra.mxu0 0.0
    %3318 = vmatprep.subr.mxu0 0.0
    %3319 = vmatpush2.msra.mxu0 0.0
    %3320 = vmatprep.subr.mxu0 0.0
    %3321 = vmatpush2.msra.mxu0 0.0
    %3322 = vmatprep.subr.mxu0 0.0
    %3323 = vmatpush2.msra.mxu0 0.0
    %3324 = vmatprep.subr.mxu0 0.0
    %3325 = vmatpush2.msra.mxu0 0.0
    %3326 = vmatprep.subr.mxu0 0.0
    %3327 = vmatpush2.msra.mxu0 0.0
    %3328 = vmatprep.subr.mxu0 0.0
    %3329 = vmatpush2.msra.mxu0 0.0
    %3330 = vmatprep.subr.mxu0 0.0
    %3331 = vmatpush2.msra.mxu0 0.0
    %3332 = vmatprep.subr.mxu0 0.0
    %3333 = vmatpush2.msra.mxu0 0.0
    %3334 = vmatprep.subr.mxu0 0.0
    %3335 = vmatpush2.msra.mxu0 0.0
    %3336 = vmatprep.mubr.f32.mxu0 0.0
    %3337 = vmatmul.mubr.f32.gmra.mxu0 %v3270
    %v3338 = vpop.f32.mrf.mxu0
    %v3339 = vadd.f32 0.0, %v3338
    %v3340 = vpop.f32.mrf.mxu0
    %3341 = vdwg.mxu0
    %v3342 = vld [vmem:[#allocation2 + $0x418] sm:$0xff]
    %v3343 = vld [vmem:[#allocation2 + $0x420] sm:$0xff]
    %v3344 = vld [vmem:[#allocation2 + $0x428] sm:$0xff]
    %v3345 = vld [vmem:[#allocation2 + $0x430] sm:$0xff]
    %v3346 = vld [vmem:[#allocation2 + $0x438] sm:$0xff]
    %v3347 = vld [vmem:[#allocation2 + $0x440] sm:$0xff]
    %v3348 = vld [vmem:[#allocation2 + $0x448] sm:$0xff]
    %v3349 = vld [vmem:[#allocation2 + $0x450] sm:$0xff]
    %v3350 = vrot.slane %v3098, 4
    %v3351 = vsel %vm79, %v3350, 0
    %3353 = vmatprep.subr.mxu0 0.0
    %3354 = vmatpush1.msra.mxu0 0.0
    %3355 = vmatprep.subr.mxu0 0.0
    %3356 = vmatpush1.msra.mxu0 0.0
    %3357 = vmatprep.subr.mxu0 0.0
    %3358 = vmatpush1.msra.mxu0 0.0
    %3359 = vmatprep.subr.mxu0 0.0
    %3360 = vmatpush1.msra.mxu0 0.0
    %3361 = vmatprep.subr.mxu0 0.0
    %3362 = vmatpush1.msra.mxu0 0.0
    %3363 = vmatprep.subr.mxu0 0.0
    %3364 = vmatpush1.msra.mxu0 0.0
    %3365 = vmatprep.subr.mxu0 0.0
    %3366 = vmatpush1.msra.mxu0 0.0
    %3367 = vmatprep.subr.mxu0 0.0
    %3368 = vmatpush1.msra.mxu0 0.0
    %3369 = vmatprep.subr.mxu0 0.0
    %3370 = vmatpush1.msra.mxu0 0.0
    %3371 = vmatprep.subr.mxu0 0.0
    %3372 = vmatpush1.msra.mxu0 0.0
    %3373 = vmatprep.subr.mxu0 0.0
    %3374 = vmatpush1.msra.mxu0 0.0
    %3375 = vmatprep.subr.mxu0 0.0
    %3376 = vmatpush1.msra.mxu0 0.0
    %3377 = vmatprep.subr.mxu0 0.0
    %3378 = vmatpush1.msra.mxu0 %v3349
    %3379 = vmatprep.subr.mxu0 0.0
    %3380 = vmatpush1.msra.mxu0 %v3348
    %3381 = vmatprep.subr.mxu0 0.0
    %3382 = vmatpush1.msra.mxu0 %v3347
    %3383 = vmatprep.subr.mxu0 0.0
    %3384 = vmatpush1.msra.mxu0 %v3346
    %3385 = vmatprep.subr.mxu0 0.0
    %3386 = vmatpush2.msra.mxu0 0.0
    %3387 = vmatprep.subr.mxu0 0.0
    %3388 = vmatpush2.msra.mxu0 0.0
    %3389 = vmatprep.subr.mxu0 0.0
    %3390 = vmatpush2.msra.mxu0 0.0
    %3391 = vmatprep.subr.mxu0 0.0
    %3392 = vmatpush2.msra.mxu0 0.0
    %3393 = vmatprep.subr.mxu0 0.0
    %3394 = vmatpush2.msra.mxu0 0.0
    %3395 = vmatprep.subr.mxu0 0.0
    %3396 = vmatpush2.msra.mxu0 0.0
    %3397 = vmatprep.subr.mxu0 0.0
    %3398 = vmatpush2.msra.mxu0 0.0
    %3399 = vmatprep.subr.mxu0 0.0
    %3400 = vmatpush2.msra.mxu0 0.0
    %3401 = vmatprep.subr.mxu0 0.0
    %3402 = vmatpush2.msra.mxu0 0.0
    %3403 = vmatprep.subr.mxu0 0.0
    %3404 = vmatpush2.msra.mxu0 0.0
    %3405 = vmatprep.subr.mxu0 0.0
    %3406 = vmatpush2.msra.mxu0 0.0
    %3407 = vmatprep.subr.mxu0 0.0
    %3408 = vmatpush2.msra.mxu0 0.0
    %3409 = vmatprep.subr.mxu0 0.0
    %3410 = vmatpush2.msra.mxu0 0.0
    %3411 = vmatprep.subr.mxu0 0.0
    %3412 = vmatpush2.msra.mxu0 0.0
    %3413 = vmatprep.subr.mxu0 0.0
    %3414 = vmatpush2.msra.mxu0 0.0
    %3415 = vmatprep.subr.mxu0 0.0
    %3416 = vmatpush2.msra.mxu0 0.0
    %3417 = vmatprep.mubr.f32.mxu0 0.0
    %3418 = vmatmul.mubr.f32.gmra.mxu0 %v3351
    %v3419 = vpop.f32.mrf.mxu0
    %v3420 = vadd.f32 0.0, %v3419
    %v3421 = vpop.f32.mrf.mxu0
    %3422 = vdwg.mxu0
    %v3423 = vld [vmem:[#allocation2 + $0x458] sm:$0xff]
    %v3424 = vld [vmem:[#allocation2 + $0x460] sm:$0xff]
    %v3425 = vld [vmem:[#allocation2 + $0x468] sm:$0xff]
    %v3426 = vld [vmem:[#allocation2 + $0x470] sm:$0xff]
    %v3427 = vrot.slane %v3098, 6
    %v3428 = vsel %vm79, %v3427, 0
    %3430 = vmatprep.subr.mxu0 0.0
    %3431 = vmatpush1.msra.mxu0 0.0
    %3432 = vmatprep.subr.mxu0 0.0
    %3433 = vmatpush1.msra.mxu0 0.0
    %3434 = vmatprep.subr.mxu0 0.0
    %3435 = vmatpush1.msra.mxu0 0.0
    %3436 = vmatprep.subr.mxu0 0.0
    %3437 = vmatpush1.msra.mxu0 0.0
    %3438 = vmatprep.subr.mxu0 0.0
    %3439 = vmatpush1.msra.mxu0 0.0
    %3440 = vmatprep.subr.mxu0 0.0
    %3441 = vmatpush1.msra.mxu0 0.0
    %3442 = vmatprep.subr.mxu0 0.0
    %3443 = vmatpush1.msra.mxu0 0.0
    %3444 = vmatprep.subr.mxu0 0.0
    %3445 = vmatpush1.msra.mxu0 0.0
    %3446 = vmatprep.subr.mxu0 0.0
    %3447 = vmatpush1.msra.mxu0 0.0
    %3448 = vmatprep.subr.mxu0 0.0
    %3449 = vmatpush1.msra.mxu0 0.0
    %3450 = vmatprep.subr.mxu0 0.0
    %3451 = vmatpush1.msra.mxu0 0.0
    %3452 = vmatprep.subr.mxu0 0.0
    %3453 = vmatpush1.msra.mxu0 0.0
    %3454 = vmatprep.subr.mxu0 0.0
    %3455 = vmatpush1.msra.mxu0 %v3426
    %3456 = vmatprep.subr.mxu0 0.0
    %3457 = vmatpush1.msra.mxu0 %v3425
    %3458 = vmatprep.subr.mxu0 0.0
    %3459 = vmatpush1.msra.mxu0 %v3424
    %3460 = vmatprep.subr.mxu0 0.0
    %3461 = vmatpush1.msra.mxu0 %v3423
    %3462 = vmatprep.subr.mxu0 0.0
    %3463 = vmatpush2.msra.mxu0 0.0
    %3464 = vmatprep.subr.mxu0 0.0
    %3465 = vmatpush2.msra.mxu0 0.0
    %3466 = vmatprep.subr.mxu0 0.0
    %3467 = vmatpush2.msra.mxu0 0.0
    %3468 = vmatprep.subr.mxu0 0.0
    %3469 = vmatpush2.msra.mxu0 0.0
    %3470 = vmatprep.subr.mxu0 0.0
    %3471 = vmatpush2.msra.mxu0 0.0
    %3472 = vmatprep.subr.mxu0 0.0
    %3473 = vmatpush2.msra.mxu0 0.0
    %3474 = vmatprep.subr.mxu0 0.0
    %3475 = vmatpush2.msra.mxu0 0.0
    %3476 = vmatprep.subr.mxu0 0.0
    %3477 = vmatpush2.msra.mxu0 0.0
    %3478 = vmatprep.subr.mxu0 0.0
    %3479 = vmatpush2.msra.mxu0 0.0
    %3480 = vmatprep.subr.mxu0 0.0
    %3481 = vmatpush2.msra.mxu0 0.0
    %3482 = vmatprep.subr.mxu0 0.0
    %3483 = vmatpush2.msra.mxu0 0.0
    %3484 = vmatprep.subr.mxu0 0.0
    %3485 = vmatpush2.msra.mxu0 0.0
    %3486 = vmatprep.subr.mxu0 0.0
    %3487 = vmatpush2.msra.mxu0 0.0
    %3488 = vmatprep.subr.mxu0 0.0
    %3489 = vmatpush2.msra.mxu0 0.0
    %3490 = vmatprep.subr.mxu0 0.0
    %3491 = vmatpush2.msra.mxu0 0.0
    %3492 = vmatprep.subr.mxu0 0.0
    %3493 = vmatpush2.msra.mxu0 0.0
    %3494 = vmatprep.mubr.f32.mxu0 0.0
    %3495 = vmatmul.mubr.f32.gmra.mxu0 %v3428
    %v3496 = vpop.f32.mrf.mxu0
    %v3497 = vadd.f32 0.0, %v3496
    %v3498 = vpop.f32.mrf.mxu0
    %3499 = vdwg.mxu0
    %v3501 = vsel %vm79, %v3006, 0
    %3503 = vmatprep.subr.mxu0 0.0
    %3504 = vmatpush1.msra.mxu0 0.0
    %3505 = vmatprep.subr.mxu0 0.0
    %3506 = vmatpush1.msra.mxu0 0.0
    %3507 = vmatprep.subr.mxu0 0.0
    %3508 = vmatpush1.msra.mxu0 0.0
    %3509 = vmatprep.subr.mxu0 0.0
    %3510 = vmatpush1.msra.mxu0 0.0
    %3511 = vmatprep.subr.mxu0 0.0
    %3512 = vmatpush1.msra.mxu0 0.0
    %3513 = vmatprep.subr.mxu0 0.0
    %3514 = vmatpush1.msra.mxu0 0.0
    %3515 = vmatprep.subr.mxu0 0.0
    %3516 = vmatpush1.msra.mxu0 0.0
    %3517 = vmatprep.subr.mxu0 0.0
    %3518 = vmatpush1.msra.mxu0 0.0
    %3519 = vmatprep.subr.mxu0 0.0
    %3520 = vmatpush1.msra.mxu0 0.0
    %3521 = vmatprep.subr.mxu0 0.0
    %3522 = vmatpush1.msra.mxu0 0.0
    %3523 = vmatprep.subr.mxu0 0.0
    %3524 = vmatpush1.msra.mxu0 0.0
    %3525 = vmatprep.subr.mxu0 0.0
    %3526 = vmatpush1.msra.mxu0 0.0
    %3527 = vmatprep.subr.mxu0 0.0
    %3528 = vmatpush1.msra.mxu0 %v3102
    %3529 = vmatprep.subr.mxu0 0.0
    %3530 = vmatpush1.msra.mxu0 %v3101
    %3531 = vmatprep.subr.mxu0 0.0
    %3532 = vmatpush1.msra.mxu0 %v3100
    %3533 = vmatprep.subr.mxu0 0.0
    %3534 = vmatpush1.msra.mxu0 %v3099
    %3535 = vmatprep.subr.mxu0 0.0
    %3536 = vmatpush2.msra.mxu0 0.0
    %3537 = vmatprep.subr.mxu0 0.0
    %3538 = vmatpush2.msra.mxu0 0.0
    %3539 = vmatprep.subr.mxu0 0.0
    %3540 = vmatpush2.msra.mxu0 0.0
    %3541 = vmatprep.subr.mxu0 0.0
    %3542 = vmatpush2.msra.mxu0 0.0
    %3543 = vmatprep.subr.mxu0 0.0
    %3544 = vmatpush2.msra.mxu0 0.0
    %3545 = vmatprep.subr.mxu0 0.0
    %3546 = vmatpush2.msra.mxu0 0.0
    %3547 = vmatprep.subr.mxu0 0.0
    %3548 = vmatpush2.msra.mxu0 0.0
    %3549 = vmatprep.subr.mxu0 0.0
    %3550 = vmatpush2.msra.mxu0 0.0
    %3551 = vmatprep.subr.mxu0 0.0
    %3552 = vmatpush2.msra.mxu0 0.0
    %3553 = vmatprep.subr.mxu0 0.0
    %3554 = vmatpush2.msra.mxu0 0.0
    %3555 = vmatprep.subr.mxu0 0.0
    %3556 = vmatpush2.msra.mxu0 0.0
    %3557 = vmatprep.subr.mxu0 0.0
    %3558 = vmatpush2.msra.mxu0 0.0
    %3559 = vmatprep.subr.mxu0 0.0
    %3560 = vmatpush2.msra.mxu0 0.0
    %3561 = vmatprep.subr.mxu0 0.0
    %3562 = vmatpush2.msra.mxu0 0.0
    %3563 = vmatprep.subr.mxu0 0.0
    %3564 = vmatpush2.msra.mxu0 0.0
    %3565 = vmatprep.subr.mxu0 0.0
    %3566 = vmatpush2.msra.mxu0 0.0
    %3567 = vmatprep.mubr.f32.mxu0 0.0
    %3568 = vmatmul.mubr.f32.gmra.mxu0 %v3501
    %v3569 = vpop.f32.mrf.mxu0
    %v3570 = vadd.f32 %v3177, %v3569
    %v3571 = vpop.f32.mrf.mxu0
    %3572 = vdwg.mxu0
    %v3573 = vrot.slane %v3097, 2
    %v3574 = vsel %vm79, %v3573, 0
    %3576 = vmatprep.subr.mxu0 0.0
    %3577 = vmatpush1.msra.mxu0 0.0
    %3578 = vmatprep.subr.mxu0 0.0
    %3579 = vmatpush1.msra.mxu0 0.0
    %3580 = vmatprep.subr.mxu0 0.0
    %3581 = vmatpush1.msra.mxu0 0.0
    %3582 = vmatprep.subr.mxu0 0.0
    %3583 = vmatpush1.msra.mxu0 0.0
    %3584 = vmatprep.subr.mxu0 0.0
    %3585 = vmatpush1.msra.mxu0 0.0
    %3586 = vmatprep.subr.mxu0 0.0
    %3587 = vmatpush1.msra.mxu0 0.0
    %3588 = vmatprep.subr.mxu0 0.0
    %3589 = vmatpush1.msra.mxu0 0.0
    %3590 = vmatprep.subr.mxu0 0.0
    %3591 = vmatpush1.msra.mxu0 0.0
    %3592 = vmatprep.subr.mxu0 0.0
    %3593 = vmatpush1.msra.mxu0 0.0
    %3594 = vmatprep.subr.mxu0 0.0
    %3595 = vmatpush1.msra.mxu0 0.0
    %3596 = vmatprep.subr.mxu0 0.0
    %3597 = vmatpush1.msra.mxu0 0.0
    %3598 = vmatprep.subr.mxu0 0.0
    %3599 = vmatpush1.msra.mxu0 0.0
    %3600 = vmatprep.subr.mxu0 0.0
    %3601 = vmatpush1.msra.mxu0 %v3183
    %3602 = vmatprep.subr.mxu0 0.0
    %3603 = vmatpush1.msra.mxu0 %v3182
    %3604 = vmatprep.subr.mxu0 0.0
    %3605 = vmatpush1.msra.mxu0 %v3181
    %3606 = vmatprep.subr.mxu0 0.0
    %3607 = vmatpush1.msra.mxu0 %v3180
    %3608 = vmatprep.subr.mxu0 0.0
    %3609 = vmatpush2.msra.mxu0 0.0
    %3610 = vmatprep.subr.mxu0 0.0
    %3611 = vmatpush2.msra.mxu0 0.0
    %3612 = vmatprep.subr.mxu0 0.0
    %3613 = vmatpush2.msra.mxu0 0.0
    %3614 = vmatprep.subr.mxu0 0.0
    %3615 = vmatpush2.msra.mxu0 0.0
    %3616 = vmatprep.subr.mxu0 0.0
    %3617 = vmatpush2.msra.mxu0 0.0
    %3618 = vmatprep.subr.mxu0 0.0
    %3619 = vmatpush2.msra.mxu0 0.0
    %3620 = vmatprep.subr.mxu0 0.0
    %3621 = vmatpush2.msra.mxu0 0.0
    %3622 = vmatprep.subr.mxu0 0.0
    %3623 = vmatpush2.msra.mxu0 0.0
    %3624 = vmatprep.subr.mxu0 0.0
    %3625 = vmatpush2.msra.mxu0 0.0
    %3626 = vmatprep.subr.mxu0 0.0
    %3627 = vmatpush2.msra.mxu0 0.0
    %3628 = vmatprep.subr.mxu0 0.0
    %3629 = vmatpush2.msra.mxu0 0.0
    %3630 = vmatprep.subr.mxu0 0.0
    %3631 = vmatpush2.msra.mxu0 0.0
    %3632 = vmatprep.subr.mxu0 0.0
    %3633 = vmatpush2.msra.mxu0 0.0
    %3634 = vmatprep.subr.mxu0 0.0
    %3635 = vmatpush2.msra.mxu0 0.0
    %3636 = vmatprep.subr.mxu0 0.0
    %3637 = vmatpush2.msra.mxu0 0.0
    %3638 = vmatprep.subr.mxu0 0.0
    %3639 = vmatpush2.msra.mxu0 0.0
    %3640 = vmatprep.mubr.f32.mxu0 0.0
    %3641 = vmatmul.mubr.f32.gmra.mxu0 %v3574
    %v3642 = vpop.f32.mrf.mxu0
    %v3643 = vadd.f32 %v3258, %v3642
    %v3644 = vpop.f32.mrf.mxu0
    %3645 = vdwg.mxu0
    %v3646 = vrot.slane %v3097, 6
    %v3647 = vsel %vm79, %v3646, 0
    %3649 = vmatprep.subr.mxu0 0.0
    %3650 = vmatpush1.msra.mxu0 0.0
    %3651 = vmatprep.subr.mxu0 0.0
    %3652 = vmatpush1.msra.mxu0 0.0
    %3653 = vmatprep.subr.mxu0 0.0
    %3654 = vmatpush1.msra.mxu0 0.0
    %3655 = vmatprep.subr.mxu0 0.0
    %3656 = vmatpush1.msra.mxu0 0.0
    %3657 = vmatprep.subr.mxu0 0.0
    %3658 = vmatpush1.msra.mxu0 0.0
    %3659 = vmatprep.subr.mxu0 0.0
    %3660 = vmatpush1.msra.mxu0 0.0
    %3661 = vmatprep.subr.mxu0 0.0
    %3662 = vmatpush1.msra.mxu0 0.0
    %3663 = vmatprep.subr.mxu0 0.0
    %3664 = vmatpush1.msra.mxu0 0.0
    %3665 = vmatprep.subr.mxu0 0.0
    %3666 = vmatpush1.msra.mxu0 0.0
    %3667 = vmatprep.subr.mxu0 0.0
    %3668 = vmatpush1.msra.mxu0 0.0
    %3669 = vmatprep.subr.mxu0 0.0
    %3670 = vmatpush1.msra.mxu0 0.0
    %3671 = vmatprep.subr.mxu0 0.0
    %3672 = vmatpush1.msra.mxu0 0.0
    %3673 = vmatprep.subr.mxu0 0.0
    %3674 = vmatpush1.msra.mxu0 %v3264
    %3675 = vmatprep.subr.mxu0 0.0
    %3676 = vmatpush1.msra.mxu0 %v3263
    %3677 = vmatprep.subr.mxu0 0.0
    %3678 = vmatpush1.msra.mxu0 %v3262
    %3679 = vmatprep.subr.mxu0 0.0
    %3680 = vmatpush1.msra.mxu0 %v3261
    %3681 = vmatprep.subr.mxu0 0.0
    %3682 = vmatpush2.msra.mxu0 0.0
    %3683 = vmatprep.subr.mxu0 0.0
    %3684 = vmatpush2.msra.mxu0 0.0
    %3685 = vmatprep.subr.mxu0 0.0
    %3686 = vmatpush2.msra.mxu0 0.0
    %3687 = vmatprep.subr.mxu0 0.0
    %3688 = vmatpush2.msra.mxu0 0.0
    %3689 = vmatprep.subr.mxu0 0.0
    %3690 = vmatpush2.msra.mxu0 0.0
    %3691 = vmatprep.subr.mxu0 0.0
    %3692 = vmatpush2.msra.mxu0 0.0
    %3693 = vmatprep.subr.mxu0 0.0
    %3694 = vmatpush2.msra.mxu0 0.0
    %3695 = vmatprep.subr.mxu0 0.0
    %3696 = vmatpush2.msra.mxu0 0.0
    %3697 = vmatprep.subr.mxu0 0.0
    %3698 = vmatpush2.msra.mxu0 0.0
    %3699 = vmatprep.subr.mxu0 0.0
    %3700 = vmatpush2.msra.mxu0 0.0
    %3701 = vmatprep.subr.mxu0 0.0
    %3702 = vmatpush2.msra.mxu0 0.0
    %3703 = vmatprep.subr.mxu0 0.0
    %3704 = vmatpush2.msra.mxu0 0.0
    %3705 = vmatprep.subr.mxu0 0.0
    %3706 = vmatpush2.msra.mxu0 0.0
    %3707 = vmatprep.subr.mxu0 0.0
    %3708 = vmatpush2.msra.mxu0 0.0
    %3709 = vmatprep.subr.mxu0 0.0
    %3710 = vmatpush2.msra.mxu0 0.0
    %3711 = vmatprep.subr.mxu0 0.0
    %3712 = vmatpush2.msra.mxu0 0.0
    %3713 = vmatprep.mubr.f32.mxu0 0.0
    %3714 = vmatmul.mubr.f32.gmra.mxu0 %v3647
    %v3715 = vpop.f32.mrf.mxu0
    %v3716 = vadd.f32 %v3339, %v3715
    %v3717 = vpop.f32.mrf.mxu0
    %3718 = vdwg.mxu0
    %v3719 = vrot.slane %v3098, 2
    %v3720 = vsel %vm79, %v3719, 0
    %3722 = vmatprep.subr.mxu0 0.0
    %3723 = vmatpush1.msra.mxu0 0.0
    %3724 = vmatprep.subr.mxu0 0.0
    %3725 = vmatpush1.msra.mxu0 0.0
    %3726 = vmatprep.subr.mxu0 0.0
    %3727 = vmatpush1.msra.mxu0 0.0
    %3728 = vmatprep.subr.mxu0 0.0
    %3729 = vmatpush1.msra.mxu0 0.0
    %3730 = vmatprep.subr.mxu0 0.0
    %3731 = vmatpush1.msra.mxu0 0.0
    %3732 = vmatprep.subr.mxu0 0.0
    %3733 = vmatpush1.msra.mxu0 0.0
    %3734 = vmatprep.subr.mxu0 0.0
    %3735 = vmatpush1.msra.mxu0 0.0
    %3736 = vmatprep.subr.mxu0 0.0
    %3737 = vmatpush1.msra.mxu0 0.0
    %3738 = vmatprep.subr.mxu0 0.0
    %3739 = vmatpush1.msra.mxu0 0.0
    %3740 = vmatprep.subr.mxu0 0.0
    %3741 = vmatpush1.msra.mxu0 0.0
    %3742 = vmatprep.subr.mxu0 0.0
    %3743 = vmatpush1.msra.mxu0 0.0
    %3744 = vmatprep.subr.mxu0 0.0
    %3745 = vmatpush1.msra.mxu0 0.0
    %3746 = vmatprep.subr.mxu0 0.0
    %3747 = vmatpush1.msra.mxu0 %v3345
    %3748 = vmatprep.subr.mxu0 0.0
    %3749 = vmatpush1.msra.mxu0 %v3344
    %3750 = vmatprep.subr.mxu0 0.0
    %3751 = vmatpush1.msra.mxu0 %v3343
    %3752 = vmatprep.subr.mxu0 0.0
    %3753 = vmatpush1.msra.mxu0 %v3342
    %3754 = vmatprep.subr.mxu0 0.0
    %3755 = vmatpush2.msra.mxu0 0.0
    %3756 = vmatprep.subr.mxu0 0.0
    %3757 = vmatpush2.msra.mxu0 0.0
    %3758 = vmatprep.subr.mxu0 0.0
    %3759 = vmatpush2.msra.mxu0 0.0
    %3760 = vmatprep.subr.mxu0 0.0
    %3761 = vmatpush2.msra.mxu0 0.0
    %3762 = vmatprep.subr.mxu0 0.0
    %3763 = vmatpush2.msra.mxu0 0.0
    %3764 = vmatprep.subr.mxu0 0.0
    %3765 = vmatpush2.msra.mxu0 0.0
    %3766 = vmatprep.subr.mxu0 0.0
    %3767 = vmatpush2.msra.mxu0 0.0
    %3768 = vmatprep.subr.mxu0 0.0
    %3769 = vmatpush2.msra.mxu0 0.0
    %3770 = vmatprep.subr.mxu0 0.0
    %3771 = vmatpush2.msra.mxu0 0.0
    %3772 = vmatprep.subr.mxu0 0.0
    %3773 = vmatpush2.msra.mxu0 0.0
    %3774 = vmatprep.subr.mxu0 0.0
    %3775 = vmatpush2.msra.mxu0 0.0
    %3776 = vmatprep.subr.mxu0 0.0
    %3777 = vmatpush2.msra.mxu0 0.0
    %3778 = vmatprep.subr.mxu0 0.0
    %3779 = vmatpush2.msra.mxu0 0.0
    %3780 = vmatprep.subr.mxu0 0.0
    %3781 = vmatpush2.msra.mxu0 0.0
    %3782 = vmatprep.subr.mxu0 0.0
    %3783 = vmatpush2.msra.mxu0 0.0
    %3784 = vmatprep.subr.mxu0 0.0
    %3785 = vmatpush2.msra.mxu0 0.0
    %3786 = vmatprep.mubr.f32.mxu0 0.0
    %3787 = vmatmul.mubr.f32.gmra.mxu0 %v3720
    %v3788 = vpop.f32.mrf.mxu0
    %v3789 = vadd.f32 %v3420, %v3788
    %v3790 = vpop.f32.mrf.mxu0
    %3791 = vdwg.mxu0
    %v3792 = vadd.f32 %v3570, %v3643
    %v3793 = vadd.f32 %v3716, %v3789
    %v3794 = vadd.f32 %v3792, %v3793
    %v3795 = vadd.f32 %v3794, %v3497
    %v3796 = vld [vmem:[#allocation2 + $0x498] sm:$0x1]
    %v3797 = vlaneseq
    %v3798 = vshrl.u32 %v3797, 7
    %v3799 = vsub.s32 0, %v3798
    %v3800 = vrot.slane %v3796, %v3799
    %v3801 = vadd.f32 %v3795, %v3800
    %v3802 = vmax.f32 %v3801, 0.0
    %v3803 = vld [vmem:[#allocation2 + $0x4a0] sm:$0xff]
    %v3804 = vld [vmem:[#allocation2 + $0x4a8] sm:$0xff]
    %v3805 = vld [vmem:[#allocation2 + $0x4b0] sm:$0xff]
    %v3806 = vld [vmem:[#allocation2 + $0x4b8] sm:$0xff]
    %v3807 = vld [vmem:[#allocation2 + $0x4c0] sm:$0xff]
    %v3808 = vld [vmem:[#allocation2 + $0x4c8] sm:$0xff]
    %v3809 = vld [vmem:[#allocation2 + $0x4d0] sm:$0xff]
    %v3810 = vld [vmem:[#allocation2 + $0x4d8] sm:$0xff]
    %v3811 = vld [vmem:[#allocation2 + $0x4e0] sm:$0x1]
    %v3812 = vlaneseq
    %v3813 = vshrl.u32 %v3812, 7
    %v3814 = vsub.s32 0, %v3813
    %v3815 = vrot.slane %v3811, %v3814
    %v3817 = vsel %vm860, %v3802, 0
    %3819 = vmatprep.subr.mxu0 0.0
    %3820 = vmatpush1.msra.mxu0 0.0
    %3821 = vmatprep.subr.mxu0 0.0
    %3822 = vmatpush1.msra.mxu0 0.0
    %3823 = vmatprep.subr.mxu0 0.0
    %3824 = vmatpush1.msra.mxu0 0.0
    %3825 = vmatprep.subr.mxu0 0.0
    %3826 = vmatpush1.msra.mxu0 0.0
    %3827 = vmatprep.subr.mxu0 0.0
    %3828 = vmatpush1.msra.mxu0 0.0
    %3829 = vmatprep.subr.mxu0 0.0
    %3830 = vmatpush1.msra.mxu0 0.0
    %3831 = vmatprep.subr.mxu0 0.0
    %3832 = vmatpush1.msra.mxu0 0.0
    %3833 = vmatprep.subr.mxu0 0.0
    %3834 = vmatpush1.msra.mxu0 0.0
    %3835 = vmatprep.subr.mxu0 0.0
    %3836 = vmatpush1.msra.mxu0 %v3810
    %3837 = vmatprep.subr.mxu0 0.0
    %3838 = vmatpush1.msra.mxu0 %v3809
    %3839 = vmatprep.subr.mxu0 0.0
    %3840 = vmatpush1.msra.mxu0 %v3808
    %3841 = vmatprep.subr.mxu0 0.0
    %3842 = vmatpush1.msra.mxu0 %v3807
    %3843 = vmatprep.subr.mxu0 0.0
    %3844 = vmatpush1.msra.mxu0 %v3806
    %3845 = vmatprep.subr.mxu0 0.0
    %3846 = vmatpush1.msra.mxu0 %v3805
    %3847 = vmatprep.subr.mxu0 0.0
    %3848 = vmatpush1.msra.mxu0 %v3804
    %3849 = vmatprep.subr.mxu0 0.0
    %3850 = vmatpush1.msra.mxu0 %v3803
    %3851 = vmatprep.subr.mxu0 0.0
    %3852 = vmatpush2.msra.mxu0 0.0
    %3853 = vmatprep.subr.mxu0 0.0
    %3854 = vmatpush2.msra.mxu0 0.0
    %3855 = vmatprep.subr.mxu0 0.0
    %3856 = vmatpush2.msra.mxu0 0.0
    %3857 = vmatprep.subr.mxu0 0.0
    %3858 = vmatpush2.msra.mxu0 0.0
    %3859 = vmatprep.subr.mxu0 0.0
    %3860 = vmatpush2.msra.mxu0 0.0
    %3861 = vmatprep.subr.mxu0 0.0
    %3862 = vmatpush2.msra.mxu0 0.0
    %3863 = vmatprep.subr.mxu0 0.0
    %3864 = vmatpush2.msra.mxu0 0.0
    %3865 = vmatprep.subr.mxu0 0.0
    %3866 = vmatpush2.msra.mxu0 0.0
    %3867 = vmatprep.subr.mxu0 0.0
    %3868 = vmatpush2.msra.mxu0 0.0
    %3869 = vmatprep.subr.mxu0 0.0
    %3870 = vmatpush2.msra.mxu0 0.0
    %3871 = vmatprep.subr.mxu0 0.0
    %3872 = vmatpush2.msra.mxu0 0.0
    %3873 = vmatprep.subr.mxu0 0.0
    %3874 = vmatpush2.msra.mxu0 0.0
    %3875 = vmatprep.subr.mxu0 0.0
    %3876 = vmatpush2.msra.mxu0 0.0
    %3877 = vmatprep.subr.mxu0 0.0
    %3878 = vmatpush2.msra.mxu0 0.0
    %3879 = vmatprep.subr.mxu0 0.0
    %3880 = vmatpush2.msra.mxu0 0.0
    %3881 = vmatprep.subr.mxu0 0.0
    %3882 = vmatpush2.msra.mxu0 0.0
    %3883 = vmatprep.mubr.f32.mxu0 0.0
    %3884 = vmatmul.mubr.f32.gmra.mxu0 %v3817
    %v3885 = vpop.f32.mrf.mxu0
    %v3886 = vadd.f32 %v3815, %v3885
    %v3887 = vpop.f32.mrf.mxu0
    %3888 = vdwg.mxu0
    %3889 = vrot.lane.b32.xlu0 %v3006, 64
    %v3890 = vpop.permute.xlu0 %3889
    %3893 = vrot.lane.b32.xlu0 %v3886, 96
    %v3894 = vpop.permute.xlu0 %3893
    %v3896 = vsel %vm860, %v2992, %v3890
    %vm3897 = vcmask 785408
    %v3898 = vsel %vm3897, %v3896, %v3894
    %3899 = vst [vmem:[%s4] sm:$0x3] %v3898
    // Predicated region
    $region22: #{vae_forward.1} parent=1 // pred_check
      _
    $region23: #{vae_forward.1} parent=1 // pred_check_branch
      %3901 = sbr.rel (0) target = $region25
    $region24: #{vae_forward.1} parent=1 // pred_region
      _
    $region25: #{vae_forward.1} parent=1 // pred_fallthru
      _
    // Predicated region
    $region26: #{vae_forward.1} parent=1 // pred_check
      _
    $region27: #{vae_forward.1} parent=1 // pred_check_branch
      %3903 = sbr.rel (0) target = $region29
    $region28: #{vae_forward.1} parent=1 // pred_region
      _
    $region29: #{vae_forward.1} parent=1 // pred_fallthru
      _
    %3904 = vsyncpa [#allocation3], 1

</llo_original>
